<compile_context>
chip_gen: v6e
topology: v6e:2x2x1
jax: 0.10.0
libtpu: 0.0.40
codegen_flags: <defaults>
</compile_context>

<pallas_src>
import jax
import jax.numpy as jnp
from jax.experimental import pallas as pl
from jax.experimental.pallas import tpu as pltpu


def _attention_kernel(sproj_ref, enc_ref, we_ref, v_ref, o_ref):
    si = pl.program_id(1)
    block_s, bb, enc2 = enc_ref.shape
    dec_hid = we_ref.shape[1]

    # One MXU matmul covering the whole (block_s * block_b) tile.  block_b is forced
    # to a multiple of the sublane packing (8 rows f32, 16 rows bf16) in the wrapper,
    # so collapsing the two leading dims is layout-preserving (no VMEM copy).
    enc = enc_ref[...].reshape(block_s * bb, enc2)
    e = jnp.dot(enc, we_ref[...], preferred_element_type=jnp.float32)

    # Broadcast-add the hoisted s-projection (constant across src positions), tanh on
    # the EUP, then the v-projection as a VPU multiply + XLU lane reduction (avoids an
    # N=1 MXU matmul).
    e = e.reshape(block_s, bb, dec_hid) + sproj_ref[...][None, :, :]
    energy = jnp.tanh(e)
    att = jnp.sum(energy * v_ref[...][None, :, :], axis=-1)          # (block_s, bb)

    # Store raw scores for this src tile, lane-dense: batch on sublanes, src on lanes.
    start = pl.multiple_of(si * block_s, block_s)
    o_ref[:, pl.ds(start, block_s)] = att.T.astype(o_ref.dtype)

    # Softmax epilogue once the resident output block holds all raw scores.
    @pl.when(si == pl.num_programs(1) - 1)
    def _():
        scores = o_ref[...]                                          # (bb, src_len)
        m = jnp.max(scores, axis=-1, keepdims=True)
        p = jnp.exp(scores - m)
        inv = pl.reciprocal(jnp.sum(p, axis=-1, keepdims=True), approx=True)
        o_ref[...] = (p * inv).astype(o_ref.dtype)


def _vmem_info():
    """Returns (working_budget_bytes, physical_vmem_bytes), generation-aware."""
    try:
        cap = int(pltpu.get_tpu_info().vmem_capacity_bytes)
    except Exception:                      # non-TPU tracing / older runtimes
        cap = 64 << 20                     # conservative (v7x per-TC VMEM)
    budget = max(12 << 20, min(28 << 20, (2 * cap) // 5))
    return budget, cap


def _src_tile_candidates(src_len):
    cands = {src_len}
    for d in range(128, src_len, 128):     # lane-aligned divisors of src_len
        if src_len % d == 0:
            cands.add(d)
    return sorted(cands, reverse=True)


def attention_forward(s, enc_output, attn_w, v_w, *, block_b=None, block_s=None):
    """s: [batch, dec_hid]; enc_output: [src_len, batch, 2*enc_hid] (PyTorch layout).
    attn_w: [dec_hid, 2*enc_hid + dec_hid]; v_w: [1, dec_hid].
    Returns softmax attention weights of shape [batch, src_len] (float32)."""
    src_len, batch, enc2 = enc_output.shape
    dec_hid = s.shape[1]
    enc_isz = jnp.dtype(enc_output.dtype).itemsize
    align = 8 * max(1, 4 // enc_isz)       # sublane packing: 8 rows f32, 16 rows bf16

    # Split the concat weight: columns [:dec_hid] act on s, [dec_hid:] on enc.
    ws = attn_w[:, :dec_hid]
    we_t = jnp.transpose(attn_w[:, dec_hid:]).astype(enc_output.dtype)   # (enc2, dec_hid)
    s_proj = jnp.dot(s, jnp.transpose(ws)).astype(jnp.float32)           # (batch, dec_hid)

    budget, vmem_cap = _vmem_info()

    def row_bytes(bs):                     # VMEM bytes per batch row for a src tile bs
        return (3 * bs * enc2 * enc_isz    # double-buffered enc tile (+ slack)
                + 3 * bs * dec_hid * 4     # f32 e / energy / energy*v temporaries
                + 4 * src_len * 4          # resident out block + softmax temporaries
                + 2 * dec_hid * 4)         # s_proj block (double-buffered)

    const = 2 * (enc2 * dec_hid * enc_isz + dec_hid * 4) + (1 << 20)     # weights + margin
    usable = max(budget - const, 1 << 20)

    cands = _src_tile_candidates(src_len)
    if block_s is None:
        block_s = next((bs for bs in cands if usable // row_bytes(bs) >= align), cands[-1])
    else:
        block_s = int(block_s)
        assert src_len % block_s == 0, "block_s must divide src_len"
    cap_rows = max(align, int(usable // row_bytes(block_s)))

    if block_b is None:
        pad = (-batch) % align
        # TODO(synk): a masked tail store would avoid this (rare) enc_output pad copy.
        bpad = batch + pad
        cap_al = max(align, (cap_rows // align) * align)
        divs = [d for d in range(align, bpad + 1, align) if bpad % d == 0]
        fit = [d for d in divs if d <= cap_al]
        block_b = max(fit) if fit else align
        if block_b == bpad and bpad >= 2 * align:
            smaller = [d for d in divs if d < bpad and d <= cap_al]
            if smaller:                    # >=2 batch blocks keeps both v7x TCs busy
                block_b = max(smaller)
    else:
        block_b = max(align, (int(block_b) // align) * align)
        block_b = min(block_b, ((batch + align - 1) // align) * align)
        pad = (-batch) % block_b

    if pad:                                # pad rows give finite uniform rows, sliced off
        s_proj = jnp.pad(s_proj, ((0, pad), (0, 0)))
        enc_output = jnp.pad(enc_output, ((0, 0), (0, pad), (0, 0)))
    batch_pad = batch + pad
    n_b = batch_pad // block_b
    n_s = src_len // block_s

    est_total = const + block_b * row_bytes(block_s)
    vmem_limit = int(min(3 * vmem_cap // 4, max(est_total + (4 << 20), 16 << 20)))

    out = pl.pallas_call(
        _attention_kernel,
        out_shape=jax.ShapeDtypeStruct((batch_pad, src_len), jnp.float32),
        grid_spec=pltpu.PrefetchScalarGridSpec(
            num_scalar_prefetch=0,
            grid=(n_b, n_s),
            in_specs=[
                pl.BlockSpec((block_b, dec_hid), lambda b, t: (b, 0)),
                # enc stays in its original [src_len, batch, enc2] layout; batch and
                # src axes are blocked via the BlockSpec (no wrapper-side HBM copy).
                pl.BlockSpec((block_s, block_b, enc2), lambda b, t: (t, b, 0)),
                pl.BlockSpec((enc2, dec_hid), lambda b, t: (0, 0)),
                pl.BlockSpec((1, dec_hid), lambda b, t: (0, 0)),
            ],
            # Same output block index for every src tile -> resident accumulator in
            # VMEM, written back to HBM once per batch block.
            out_specs=pl.BlockSpec((block_b, src_len), lambda b, t: (b, 0)),
        ),
        compiler_params=pltpu.CompilerParams(
            dimension_semantics=("parallel", "arbitrary"),
            vmem_limit_bytes=vmem_limit),
    )(s_proj, enc_output, we_t, v_w)

    return out[:batch] if pad else out


def _reference(s, enc_output, attn_w, v_w):
    # Pure-JAX reference mirroring the PyTorch forward exactly (all f32).
    src_len = enc_output.shape[0]
    s_rep = jnp.repeat(s[:, None, :], src_len, axis=1)          # [batch, src_len, dec]
    enc = jnp.transpose(enc_output, (1, 0, 2)).astype(jnp.float32)
    cat = jnp.concatenate((s_rep, enc), axis=2)
    energy = jnp.tanh(jnp.einsum("bsi,oi->bso", cat, attn_w))
    attention = jnp.einsum("bso,po->bsp", energy, v_w)[:, :, 0]
    return jax.nn.softmax(attention, axis=1)


if __name__ == "__main__":
    batch, src_len = 16, 256
    enc_hid_dim, dec_hid_dim = 64, 64
    enc2 = enc_hid_dim * 2
    in_dim = enc2 + dec_hid_dim

    key = jax.random.PRNGKey(0)
    k1, k2, k3, k4 = jax.random.split(key, 4)

    # Deterministic "module parameters" (nn.Linear-style uniform init, no bias).
    attn_w = jax.random.uniform(k1, (dec_hid_dim, in_dim), jnp.float32,
                                -1.0 / in_dim ** 0.5, 1.0 / in_dim ** 0.5)
    v_w = jax.random.uniform(k2, (1, dec_hid_dim), jnp.float32,
                             -1.0 / dec_hid_dim ** 0.5, 1.0 / dec_hid_dim ** 0.5)

    # Inputs in PyTorch layout: s [batch, dec_hid], enc_output [src_len, batch, 2*enc_hid].
    s = jax.random.normal(k3, (batch, dec_hid_dim), jnp.float32)
    enc_output = jax.random.normal(k4, (src_len, batch, enc2), jnp.float32)

    ref = _reference(s, enc_output, attn_w, v_w)

    # Auto path: block_b=8 (two "parallel" batch blocks), block_s = src_len.
    out = jax.block_until_ready(attention_forward(s, enc_output, attn_w, v_w))
    assert out.shape == (batch, src_len)
    assert jnp.allclose(out, ref, atol=1e-4, rtol=1e-3), "mismatch vs reference (auto)"

    # Explicitly tiled src_len path (resident-output accumulator + epilogue softmax).
    out2 = jax.block_until_ready(
        attention_forward(s, enc_output, attn_w, v_w, block_b=8, block_s=128))
    assert jnp.allclose(out2, ref, atol=1e-4, rtol=1e-3), "mismatch vs reference (src-tiled)"

    # Producer-supplied bf16 enc_output (MXU-native, f32 accumulate, 16-row alignment).
    out3 = jax.block_until_ready(
        attention_forward(s, enc_output.astype(jnp.bfloat16), attn_w, v_w))
    assert jnp.allclose(out3, ref, atol=2e-3, rtol=5e-2), "mismatch vs reference (bf16 enc)"

    print("KERNEL_OK")
</pallas_src>

<mosaic_0001>
module attributes {stable_mosaic.version = 11 : i64} {
  func.func @_attention_kernel(%arg0: i32, %arg1: i32, %arg2: memref<8x64xf32, #tpu.memory_space<vmem>>, %arg3: memref<256x8x128xf32, #tpu.memory_space<vmem>>, %arg4: memref<128x64xf32, #tpu.memory_space<vmem>>, %arg5: memref<1x64xf32, #tpu.memory_space<vmem>>, %arg6: memref<8x256xf32, #tpu.memory_space<vmem>>) attributes {dimension_semantics = [#tpu.dimension_semantics<parallel>, #tpu.dimension_semantics<arbitrary>], iteration_bounds = array<i64: 2, 1>, scalar_prefetch = 0 : i64, scratch_operands = 0 : i64, tpu.core_type = #tpu.core_type<tc>, window_params = [{transform_indices = @transform_0, window_bounds = array<i64: 8, 64>}, {transform_indices = @transform_1, window_bounds = array<i64: 256, 8, 128>}, {pipeline_mode = #tpu.pipeline_mode<synchronous>, transform_indices = @transform_2, window_bounds = array<i64: 128, 64>}, {pipeline_mode = #tpu.pipeline_mode<synchronous>, transform_indices = @transform_3, window_bounds = array<i64: 1, 64>}, {transform_indices = @transform_4, window_bounds = array<i64: 8, 256>}]} {
    %c0 = arith.constant 0 : index
    %c0_0 = arith.constant 0 : index
    %c0_1 = arith.constant 0 : index
    %0 = vector.load %arg3[%c0, %c0_0, %c0_1] : memref<256x8x128xf32, #tpu.memory_space<vmem>>, vector<256x8x128xf32>
    %1 = vector.shape_cast %0 : vector<256x8x128xf32> to vector<2048x128xf32>
    %c0_2 = arith.constant 0 : index
    %c0_3 = arith.constant 0 : index
    %2 = vector.load %arg4[%c0_2, %c0_3] : memref<128x64xf32, #tpu.memory_space<vmem>>, vector<128x64xf32>
    %cst = arith.constant dense<0.000000e+00> : vector<2048x64xf32>
    %3 = tpu.matmul %1, %2, %cst {dimension_numbers = #tpu.dot_dimension_numbers<[1], [0], [0], [1], [0, 0, 1, 1], [], []>} : vector<2048x128xf32>, vector<128x64xf32>, vector<2048x64xf32> -> vector<2048x64xf32>
    %4 = vector.shape_cast %3 : vector<2048x64xf32> to vector<256x8x64xf32>
    %c0_4 = arith.constant 0 : index
    %c0_5 = arith.constant 0 : index
    %5 = vector.load %arg2[%c0_4, %c0_5] : memref<8x64xf32, #tpu.memory_space<vmem>>, vector<8x64xf32>
    %6 = vector.shape_cast %5 : vector<8x64xf32> to vector<1x8x64xf32>
    %7 = vector.broadcast %6 : vector<1x8x64xf32> to vector<256x8x64xf32>
    %8 = arith.addf %4, %7 : vector<256x8x64xf32>
    %9 = math.tanh %8 : vector<256x8x64xf32>
    %c0_6 = arith.constant 0 : index
    %c0_7 = arith.constant 0 : index
    %10 = vector.load %arg5[%c0_6, %c0_7] : memref<1x64xf32, #tpu.memory_space<vmem>>, vector<1x64xf32>
    %11 = vector.shape_cast %10 : vector<1x64xf32> to vector<1x1x64xf32>
    %12 = vector.broadcast %11 : vector<1x1x64xf32> to vector<256x8x64xf32>
    %13 = arith.mulf %9, %12 : vector<256x8x64xf32>
    %cst_8 = arith.constant dense<0.000000e+00> : vector<256x8xf32>
    %14 = vector.multi_reduction <add>, %13, %cst_8 [2] : vector<256x8x64xf32> to vector<256x8xf32>
    %c256_i32 = arith.constant 256 : i32
    %15 = arith.muli %arg1, %c256_i32 : i32
    %16 = tpu.assume_multiple %15, 256 : i32
    %17 = tpu.transpose %14, [1, 0] : vector<256x8xf32> -> vector<8x256xf32>
    %c0_9 = arith.constant 0 : index
    %18 = arith.index_cast %16 : i32 to index
    %19 = vector.load %arg6[%c0_9, %18] : memref<8x256xf32, #tpu.memory_space<vmem>>, vector<8x256xf32>
    tpu.vector_store %arg6[%c0_9, %18], %17 {strides = array<i32>} : memref<8x256xf32, #tpu.memory_space<vmem>>, vector<8x256xf32>,
    %c0_i32 = arith.constant 0 : i32
    %20 = arith.cmpi eq, %arg1, %c0_i32 : i32
    %21 = arith.extui %20 : i1 to i32
    %c0_i32_10 = arith.constant 0 : i32
    %22 = arith.cmpi ne, %21, %c0_i32_10 : i32
    scf.if %22 {
      %c0_11 = arith.constant 0 : index
      %c0_12 = arith.constant 0 : index
      %23 = vector.load %arg6[%c0_11, %c0_12] : memref<8x256xf32, #tpu.memory_space<vmem>>, vector<8x256xf32>
      %cst_13 = arith.constant dense<0xFF800000> : vector<8xf32>
      %24 = vector.multi_reduction <maximumf>, %23, %cst_13 [1] : vector<8x256xf32> to vector<8xf32>
      %25 = vector.shape_cast %24 : vector<8xf32> to vector<8x1xf32>
      %26 = vector.broadcast %25 : vector<8x1xf32> to vector<8x256xf32>
      %27 = arith.subf %23, %26 : vector<8x256xf32>
      %28 = math.exp %27 : vector<8x256xf32>
      %cst_14 = arith.constant dense<0.000000e+00> : vector<8xf32>
      %29 = vector.multi_reduction <add>, %28, %cst_14 [1] : vector<8x256xf32> to vector<8xf32>
      %30 = vector.shape_cast %29 : vector<8xf32> to vector<8x1xf32>
      %31 = tpu.reciprocal %30 {approx = true} : vector<8x1xf32> -> vector<8x1xf32>
      %32 = vector.broadcast %31 : vector<8x1xf32> to vector<8x256xf32>
      %33 = arith.mulf %28, %32 : vector<8x256xf32>
      %c0_15 = arith.constant 0 : index
      %c0_16 = arith.constant 0 : index
      %34 = vector.load %arg6[%c0_15, %c0_16] : memref<8x256xf32, #tpu.memory_space<vmem>>, vector<8x256xf32>
      tpu.vector_store %arg6[%c0_15, %c0_16], %33 {strides = array<i32>} : memref<8x256xf32, #tpu.memory_space<vmem>>, vector<8x256xf32>,
    } else {
    }
    return
  }
  func.func @transform_0(%arg0: i32, %arg1: i32) -> (i32, i32) {
    %c0_i32 = arith.constant 0 : i32
    %c0_i32_0 = arith.constant 0 : i32
    return %arg0, %c0_i32 : i32, i32
  }
  func.func @transform_1(%arg0: i32, %arg1: i32) -> (i32, i32, i32) {
    %c0_i32 = arith.constant 0 : i32
    %c0_i32_0 = arith.constant 0 : i32
    return %arg1, %arg0, %c0_i32 : i32, i32, i32
  }
  func.func @transform_2(%arg0: i32, %arg1: i32) -> (i32, i32) {
    %c0_i32 = arith.constant 0 : i32
    %c0_i32_0 = arith.constant 0 : i32
    %c0_i32_1 = arith.constant 0 : i32
    return %c0_i32, %c0_i32_0 : i32, i32
  }
  func.func @transform_3(%arg0: i32, %arg1: i32) -> (i32, i32) {
    %c0_i32 = arith.constant 0 : i32
    %c0_i32_0 = arith.constant 0 : i32
    %c0_i32_1 = arith.constant 0 : i32
    return %c0_i32, %c0_i32_0 : i32, i32
  }
  func.func @transform_4(%arg0: i32, %arg1: i32) -> (i32, i32) {
    %c0_i32 = arith.constant 0 : i32
    %c0_i32_0 = arith.constant 0 : i32
    return %arg0, %c0_i32 : i32, i32
  }
}

</mosaic_0001>

<llo_original>
// kernel: tpu_custom_call.1
$region0: #{tpu_custom_call.1}
  #allocation0 [shape = 'u32[]', space=smem, size = 0x4, offset = 0x4, fixed_abs, tag = 'smem constant byte address 0x4 - core index']
  #allocation1 [shape = 'u32[144,128]{1,0:T(1,128)}', space=vmem, size = 0x12000, scoped, tag = 'internal scratch']
  %s0 = inlined_call_operand.hbm [shape: f32[16,64], index: 0, kind: input, shape index: {}]
  %s1 = inlined_call_operand.hbm [shape: f32[256,16,128], index: 1, kind: input, shape index: {}]
  %s2 = inlined_call_operand.vmem [shape: f32[128,64], index: 2, kind: input, shape index: {}]
  %s3 = inlined_call_operand.hbm [shape: f32[1,64], index: 3, kind: input, shape index: {}]
  %s4 = inlined_call_operand.hbm [shape: f32[16,256], index: 4, kind: output, shape index: {}]
  %s5 = sld [smem:[#allocation0]]
  $region65: #{tpu_custom_call.1} parent=0
    _
  %s7 = ssub.s32 1, %s5
  %s8 = scalar_select 0, %s7, %s5
  $region1: #{tpu_custom_call.1} parent=0
    #allocation2 [shape = 'u8[8192]{0}', space=vmem, size = 0x2000, scoped, tag = 'input window, operand 0']
    #allocation3 [shape = 's32[2]{0}', space=sflag, size = 0x8, scoped, tag = 'scoped memory for tpu_custom_call.1']
    #allocation4 [shape = 's32[2]{0}', space=sflag, size = 0x8, scoped, tag = 'scoped memory for tpu_custom_call.1']
    #allocation5 [shape = 'u8[2097152]{0}', space=vmem, size = 0x200000, scoped, tag = 'input window, operand 1']
    #allocation6 [shape = 's32[2]{0}', space=sflag, size = 0x8, scoped, tag = 'scoped memory for tpu_custom_call.1']
    #allocation7 [shape = 'u8[512]{0}', space=vmem, size = 0x400, scoped, tag = 'input window, operand 3, single buffered']
    #allocation8 [shape = 'u8[16384]{0}', space=vmem, size = 0x4000, scoped, tag = 'output window, operand 0']
    %9 = vsyncpa [#allocation3], 0
    %s10 = scalar_lea.sflag [#allocation3], 1
    %11 = vsyncpa %s10, 0
    %12 = vsyncpa [#allocation6], 0
    %s13 = scalar_lea.sflag [#allocation6], 1
    %14 = vsyncpa %s13, 0
    %15 = vsyncpa [#allocation4], 0
    %s16 = scalar_lea.sflag [#allocation4], 1
    %17 = vsyncpa %s16, 0
    loop: start=0, step=1, limit=4
    $region2: #{tpu_custom_call.1} parent=1 // loop_pre_header
      _
    $region3: #{tpu_custom_call.1} parent=1 // loop_header
      %s19 = sphi 0, %s23
      %p20 = scmp.ge.s32.totalorder %s19, 4
      %s26 = sphi 0, %s38
      %s27 = sphi 0, %s34
      %s28 = sphi 0, %s26
      %s29 = sphi 0, %s27
      %s30 = sphi 0, %s28
      %s31 = sphi 0, %s29
      %s41 = sphi 0, %s43
      %s44 = sphi 0, %s41
      %s45 = sphi 0, %s44
      %s61 = sphi 0, %s45
      %s69 = sphi 0, %s71
      %s72 = sphi 0, %s69
      %s73 = sphi 0, %s72
      %s89 = sphi 0, %s73
      %s93 = sphi 0, %s93
      %s95 = sphi 0, %s93
      %s96 = sphi 0, %s95
      %s110 = sphi 0, %s96
      %s114 = sphi 0, %s114
      %s116 = sphi 0, %s114
      %s117 = sphi 0, %s116
      %s131 = sphi 0, %s117
      %s137 = sphi 0, %s139
      %s140 = sphi 0, %s137
      %s141 = sphi 0, %s140
      %s157 = sphi 0, %s141
    $region4: #{tpu_custom_call.1} parent=1 // loop_header_branch
      %22 = sbr.rel (%p20) target = $region8
    $region5: #{tpu_custom_call.1} parent=1 // loop_body
      %s24 = ssub.s32 %s19, 1
      %s25 = ssub.s32 %s19, 2
      %s32 = sadd.s32 1, %s27
      %p33 = scmp.ge.s32.totalorder %s32, 1
      %s34 = scalar_select %p33, 0, %s32
      %s35 = sadd.s32 1, %s26
      %s36 = scalar_select %p33, %s35, %s26
      %p37 = scmp.ge.s32.totalorder %s36, 2
      %s38 = scalar_select %p37, 0, %s36
      %s39 = ssub.s32 %s26, %s38
      %p40 = scmp.eq.s32.totalorder %s39, 0
      %s42 = sadd.s32 %s41, 1
      %s43 = scalar_select %p40, %s41, %s42
      %p46 = pneg %p40
      %p47 = scmp.eq.s32.totalorder %s19, 1
      %p48 = por %p46, %p47
      %p49 = scmp.ne.s32.totalorder %s41, %s44
      %p50 = scmp.eq.s32.totalorder %s19, 0
      %p51 = por %p49, %p50
      %p52 = scmp.ne.s32.totalorder %s41, %s44
      %p53 = scmp.eq.s32.totalorder %s24, 1
      %p54 = por %p52, %p53
      %p55 = scmp.ne.s32.totalorder %s44, %s45
      %p56 = scmp.eq.s32.totalorder %s24, 0
      %p57 = por %p55, %p56
      %p58 = scmp.ne.s32.totalorder %s44, %s45
      %p59 = scmp.eq.s32.totalorder %s25, 1
      %p60 = por %p58, %p59
      %p62 = scmp.ne.s32.totalorder %s45, %s61
      %p63 = scmp.eq.s32.totalorder %s25, 0
      %p64 = por %p62, %p63
      %s65 = ssub.s32 %s27, %s34
      %s66 = ssub.s32 %s26, %s38
      %s67 = sor.u32 %s65, %s66
      %p68 = scmp.eq.s32.totalorder %s67, 0
      %s70 = sadd.s32 %s69, 1
      %s71 = scalar_select %p68, %s69, %s70
      %p74 = pneg %p68
      %p75 = scmp.eq.s32.totalorder %s19, 1
      %p76 = por %p74, %p75
      %p77 = scmp.ne.s32.totalorder %s69, %s72
      %p78 = scmp.eq.s32.totalorder %s19, 0
      %p79 = por %p77, %p78
      %p80 = scmp.ne.s32.totalorder %s69, %s72
      %p81 = scmp.eq.s32.totalorder %s24, 1
      %p82 = por %p80, %p81
      %p83 = scmp.ne.s32.totalorder %s72, %s73
      %p84 = scmp.eq.s32.totalorder %s24, 0
      %p85 = por %p83, %p84
      %p86 = scmp.ne.s32.totalorder %s72, %s73
      %p87 = scmp.eq.s32.totalorder %s25, 1
      %p88 = por %p86, %p87
      %p90 = scmp.ne.s32.totalorder %s73, %s89
      %p91 = scmp.eq.s32.totalorder %s25, 0
      %p92 = por %p90, %p91
      %s94 = sadd.s32 %s93, 1
      %p97 = scmp.eq.s32.totalorder %s19, 1
      %p98 = scmp.ne.s32.totalorder %s93, %s95
      %p99 = scmp.eq.s32.totalorder %s19, 0
      %p100 = por %p98, %p99
      %p101 = scmp.ne.s32.totalorder %s93, %s95
      %p102 = scmp.eq.s32.totalorder %s24, 1
      %p103 = por %p101, %p102
      %p104 = scmp.ne.s32.totalorder %s95, %s96
      %p105 = scmp.eq.s32.totalorder %s24, 0
      %p106 = por %p104, %p105
      %p107 = scmp.ne.s32.totalorder %s95, %s96
      %p108 = scmp.eq.s32.totalorder %s25, 1
      %p109 = por %p107, %p108
      %p111 = scmp.ne.s32.totalorder %s96, %s110
      %p112 = scmp.eq.s32.totalorder %s25, 0
      %p113 = por %p111, %p112
      %s115 = sadd.s32 %s114, 1
      %p118 = scmp.eq.s32.totalorder %s19, 1
      %p119 = scmp.ne.s32.totalorder %s114, %s116
      %p120 = scmp.eq.s32.totalorder %s19, 0
      %p121 = por %p119, %p120
      %p122 = scmp.ne.s32.totalorder %s114, %s116
      %p123 = scmp.eq.s32.totalorder %s24, 1
      %p124 = por %p122, %p123
      %p125 = scmp.ne.s32.totalorder %s116, %s117
      %p126 = scmp.eq.s32.totalorder %s24, 0
      %p127 = por %p125, %p126
      %p128 = scmp.ne.s32.totalorder %s116, %s117
      %p129 = scmp.eq.s32.totalorder %s25, 1
      %p130 = por %p128, %p129
      %p132 = scmp.ne.s32.totalorder %s117, %s131
      %p133 = scmp.eq.s32.totalorder %s25, 0
      %p134 = por %p132, %p133
      %s135 = ssub.s32 %s26, %s38
      %p136 = scmp.eq.s32.totalorder %s135, 0
      %s138 = sadd.s32 %s137, 1
      %s139 = scalar_select %p136, %s137, %s138
      %p142 = pneg %p136
      %p143 = scmp.eq.s32.totalorder %s19, 1
      %p144 = por %p142, %p143
      %p145 = scmp.ne.s32.totalorder %s137, %s140
      %p146 = scmp.eq.s32.totalorder %s19, 0
      %p147 = por %p145, %p146
      %p148 = scmp.ne.s32.totalorder %s137, %s140
      %p149 = scmp.eq.s32.totalorder %s24, 1
      %p150 = por %p148, %p149
      %p151 = scmp.ne.s32.totalorder %s140, %s141
      %p152 = scmp.eq.s32.totalorder %s24, 0
      %p153 = por %p151, %p152
      %p154 = scmp.ne.s32.totalorder %s140, %s141
      %p155 = scmp.eq.s32.totalorder %s25, 1
      %p156 = por %p154, %p155
      %p158 = scmp.ne.s32.totalorder %s141, %s157
      %p159 = scmp.eq.s32.totalorder %s25, 0
      %p160 = por %p158, %p159
      %p161 = scmp.le.s32.totalorder 1, %s19
      %p162 = scmp.lt.s32.totalorder %s19, 3
      %p163 = pnand %p161, %p162
      %p164 = pneg %p163
      // Predicated region
      $region9: #{tpu_custom_call.1} parent=5 // pred_check
        _
      $region10: #{tpu_custom_call.1} parent=5 // pred_check_branch
        %166 = sbr.rel (%p163) target = $region12
      $region11: #{tpu_custom_call.1} parent=5 // pred_region
        %s167 = ssub.s32 %s19, 1
        // Predicated region
        $region13: #{tpu_custom_call.1} parent=11 // pred_check
          %p168 = pneg %p106
        $region14: #{tpu_custom_call.1} parent=11 // pred_check_branch
          %170 = sbr.rel (%p168) target = $region16
        $region15: #{tpu_custom_call.1} parent=11 // pred_region
          _
        $region16: #{tpu_custom_call.1} parent=11 // pred_fallthru
          _
        // Predicated region
        $region17: #{tpu_custom_call.1} parent=11 // pred_check
          %p171 = pneg %p127
        $region18: #{tpu_custom_call.1} parent=11 // pred_check_branch
          %173 = sbr.rel (%p171) target = $region20
        $region19: #{tpu_custom_call.1} parent=11 // pred_region
          %s175 = ssub.s32 16, 16
          %176 = vsyncadd [#allocation6], %s175
          %s178 = sshll.u32 [#allocation7], 4
          %s179 = int_to_ptr.vmem [resolvable:$true] %s178
          %181 = dma.hbm_to_vmem [thread:$0]  %s3, 16, %s179, [#allocation6]
        $region20: #{tpu_custom_call.1} parent=11 // pred_fallthru
          _
      $region12: #{tpu_custom_call.1} parent=5 // pred_fallthru
        _
      %p182 = scmp.lt.s32.totalorder %s19, 2
      // Predicated region
      $region21: #{tpu_custom_call.1} parent=5 // pred_check
        %p183 = pneg %p182
      $region22: #{tpu_custom_call.1} parent=5 // pred_check_branch
        %185 = sbr.rel (%p183) target = $region24
      $region23: #{tpu_custom_call.1} parent=5 // pred_region
        // Predicated region
        $region25: #{tpu_custom_call.1} parent=23 // pred_check
          %p186 = pneg %p51
        $region26: #{tpu_custom_call.1} parent=23 // pred_check_branch
          %188 = sbr.rel (%p186) target = $region28
        $region27: #{tpu_custom_call.1} parent=23 // pred_region
          %s189 = sand.u32 %s41, 1
          %s190 = scalar_lea.sflag [#allocation3], %s189
          %s191 = sand.u32 %s41, 1
          %s192 = smul.addr %s191, 8
          %s193 = scalar_lea.vmem [#allocation2], %s192
          %s195 = ssub.s32 128, 128
          %196 = vsyncadd %s190, %s195
          %s197 = smul.addr %s26, 128
          %s198 = scalar_lea.hbm %s0, %s197
          %s200 = sshll.u32 %s193, 4
          %s201 = int_to_ptr.vmem [resolvable:$true] %s200
          %203 = dma.hbm_to_vmem [thread:$0]  %s198, 128, %s201, %s190
        $region28: #{tpu_custom_call.1} parent=23 // pred_fallthru
          _
        // Predicated region
        $region29: #{tpu_custom_call.1} parent=23 // pred_check
          %p204 = pneg %p79
        $region30: #{tpu_custom_call.1} parent=23 // pred_check_branch
          %206 = sbr.rel (%p204) target = $region32
        $region31: #{tpu_custom_call.1} parent=23 // pred_region
          %s207 = sand.u32 %s19, 1
          %s208 = scalar_lea.sflag [#allocation6], %s207
          %s209 = sand.u32 %s69, 1
          %s210 = smul.addr %s209, 2048
          %s211 = scalar_lea.vmem [#allocation5], %s210
          %s212 = smul.u32 256, %s27
          %s214 = ssub.s32 32768, 32768
          %215 = vsyncadd %s208, %s214
          %s216 = smul.addr %s212, 2
          %s217 = sadd.s32 %s26, %s216
          %s218 = smul.addr %s217, 128
          %s219 = scalar_lea.hbm %s1, %s218
          %s220 = sshll.u32 %s211, 4
          %s221 = int_to_ptr.vmem [resolvable:$true] %s220
          %226 = dma.hbm_to_vmem [thread:$0]  %s219, 32768, %s221, %s208, 256, 128, 8
        $region32: #{tpu_custom_call.1} parent=23 // pred_fallthru
          _
      $region24: #{tpu_custom_call.1} parent=5 // pred_fallthru
        _
      %p227 = scmp.le.s32.totalorder 1, %s19
      %p228 = scmp.lt.s32.totalorder %s19, 3
      %p229 = pnand %p227, %p228
      %p230 = pneg %p229
      // Predicated region
      $region33: #{tpu_custom_call.1} parent=5 // pred_check
        _
      $region34: #{tpu_custom_call.1} parent=5 // pred_check_branch
        %232 = sbr.rel (%p229) target = $region36
      $region35: #{tpu_custom_call.1} parent=5 // pred_region
        %s233 = ssub.s32 %s19, 1
        %s234 = sand.u32 %s44, 1
        %s235 = scalar_lea.sflag [#allocation3], %s234
        %s236 = sand.u32 %s44, 1
        %s237 = smul.addr %s236, 8
        %s238 = scalar_lea.vmem [#allocation2], %s237
        // Predicated region
        $region37: #{tpu_custom_call.1} parent=35 // pred_check
          %p239 = pneg %p57
        $region38: #{tpu_custom_call.1} parent=35 // pred_check_branch
          %241 = sbr.rel (%p239) target = $region40
        $region39: #{tpu_custom_call.1} parent=35 // pred_region
          %242 = dma.done %s235, 128
        $region40: #{tpu_custom_call.1} parent=35 // pred_fallthru
          _
        %s243 = sand.u32 %s24, 1
        %s244 = scalar_lea.sflag [#allocation6], %s243
        %s245 = sand.u32 %s72, 1
        %s246 = smul.addr %s245, 2048
        %s247 = scalar_lea.vmem [#allocation5], %s246
        // Predicated region
        $region41: #{tpu_custom_call.1} parent=35 // pred_check
          %p248 = pneg %p85
        $region42: #{tpu_custom_call.1} parent=35 // pred_check_branch
          %250 = sbr.rel (%p248) target = $region44
        $region43: #{tpu_custom_call.1} parent=35 // pred_region
          %251 = dma.done %s244, 32768
        $region44: #{tpu_custom_call.1} parent=35 // pred_fallthru
          _
        // Predicated region
        $region45: #{tpu_custom_call.1} parent=35 // pred_check
          %p252 = pneg %p127
        $region46: #{tpu_custom_call.1} parent=35 // pred_check_branch
          %254 = sbr.rel (%p252) target = $region48
        $region47: #{tpu_custom_call.1} parent=35 // pred_region
          %255 = dma.done [#allocation6], 16
        $region48: #{tpu_custom_call.1} parent=35 // pred_fallthru
          _
        %s256 = sand.u32 %s44, 1
        %s257 = scalar_lea.sflag [#allocation3], %s256
        %s258 = sand.u32 %s44, 1
        %s259 = smul.addr %s258, 8
        %s260 = scalar_lea.vmem [#allocation2], %s259
        %p261 = pneg %p57
        %p262 = pneg %p54
        %s263 = sand.u32 %s24, 1
        %s264 = scalar_lea.sflag [#allocation6], %s263
        %s265 = sand.u32 %s72, 1
        %s266 = smul.addr %s265, 2048
        %s267 = scalar_lea.vmem [#allocation5], %s266
        %p268 = pneg %p85
        %p269 = pneg %p82
        %p270 = pneg %p106
        %p271 = pneg %p103
        %p272 = pneg %p127
        %p273 = pneg %p124
        %p274 = pneg %p153
        %p275 = pneg %p150
        %s276 = sand.u32 %s140, 1
        %s277 = scalar_lea.sflag [#allocation4], %s276
        %s278 = sand.u32 %s140, 1
        %s279 = smul.addr %s278, 16
        %s280 = scalar_lea.vmem [#allocation8], %s279
        %s281 = smul.u32 256, %s29
        %v282 = vld [vmem:[%s247] sm:$0xff]
        %v283 = vld [vmem:[%s247 + $0x8] sm:$0xff]
        %v284 = vld [vmem:[%s247 + $0x10] sm:$0xff]
        %v285 = vld [vmem:[%s247 + $0x18] sm:$0xff]
        %v286 = vld [vmem:[%s247 + $0x20] sm:$0xff]
        %v287 = vld [vmem:[%s247 + $0x28] sm:$0xff]
        %v288 = vld [vmem:[%s247 + $0x30] sm:$0xff]
        %v289 = vld [vmem:[%s247 + $0x38] sm:$0xff]
        %v290 = vld [vmem:[%s247 + $0x40] sm:$0xff]
        %v291 = vld [vmem:[%s247 + $0x48] sm:$0xff]
        %v292 = vld [vmem:[%s247 + $0x50] sm:$0xff]
        %v293 = vld [vmem:[%s247 + $0x58] sm:$0xff]
        %v294 = vld [vmem:[%s247 + $0x60] sm:$0xff]
        %v295 = vld [vmem:[%s247 + $0x68] sm:$0xff]
        %v296 = vld [vmem:[%s247 + $0x70] sm:$0xff]
        %v297 = vld [vmem:[%s247 + $0x78] sm:$0xff]
        %v298 = vld [vmem:[%s247 + $0x80] sm:$0xff]
        %v299 = vld [vmem:[%s247 + $0x88] sm:$0xff]
        %v300 = vld [vmem:[%s247 + $0x90] sm:$0xff]
        %v301 = vld [vmem:[%s247 + $0x98] sm:$0xff]
        %v302 = vld [vmem:[%s247 + $0xa0] sm:$0xff]
        %v303 = vld [vmem:[%s247 + $0xa8] sm:$0xff]
        %v304 = vld [vmem:[%s247 + $0xb0] sm:$0xff]
        %v305 = vld [vmem:[%s247 + $0xb8] sm:$0xff]
        %v306 = vld [vmem:[%s247 + $0xc0] sm:$0xff]
        %v307 = vld [vmem:[%s247 + $0xc8] sm:$0xff]
        %v308 = vld [vmem:[%s247 + $0xd0] sm:$0xff]
        %v309 = vld [vmem:[%s247 + $0xd8] sm:$0xff]
        %v310 = vld [vmem:[%s247 + $0xe0] sm:$0xff]
        %v311 = vld [vmem:[%s247 + $0xe8] sm:$0xff]
        %v312 = vld [vmem:[%s247 + $0xf0] sm:$0xff]
        %v313 = vld [vmem:[%s247 + $0xf8] sm:$0xff]
        %v314 = vld [vmem:[%s247 + $0x100] sm:$0xff]
        %v315 = vld [vmem:[%s247 + $0x108] sm:$0xff]
        %v316 = vld [vmem:[%s247 + $0x110] sm:$0xff]
        %v317 = vld [vmem:[%s247 + $0x118] sm:$0xff]
        %v318 = vld [vmem:[%s247 + $0x120] sm:$0xff]
        %v319 = vld [vmem:[%s247 + $0x128] sm:$0xff]
        %v320 = vld [vmem:[%s247 + $0x130] sm:$0xff]
        %v321 = vld [vmem:[%s247 + $0x138] sm:$0xff]
        %v322 = vld [vmem:[%s247 + $0x140] sm:$0xff]
        %v323 = vld [vmem:[%s247 + $0x148] sm:$0xff]
        %v324 = vld [vmem:[%s247 + $0x150] sm:$0xff]
        %v325 = vld [vmem:[%s247 + $0x158] sm:$0xff]
        %v326 = vld [vmem:[%s247 + $0x160] sm:$0xff]
        %v327 = vld [vmem:[%s247 + $0x168] sm:$0xff]
        %v328 = vld [vmem:[%s247 + $0x170] sm:$0xff]
        %v329 = vld [vmem:[%s247 + $0x178] sm:$0xff]
        %v330 = vld [vmem:[%s247 + $0x180] sm:$0xff]
        %v331 = vld [vmem:[%s247 + $0x188] sm:$0xff]
        %v332 = vld [vmem:[%s247 + $0x190] sm:$0xff]
        %v333 = vld [vmem:[%s247 + $0x198] sm:$0xff]
        %v334 = vld [vmem:[%s247 + $0x1a0] sm:$0xff]
        %v335 = vld [vmem:[%s247 + $0x1a8] sm:$0xff]
        %v336 = vld [vmem:[%s247 + $0x1b0] sm:$0xff]
        %v337 = vld [vmem:[%s247 + $0x1b8] sm:$0xff]
        %v338 = vld [vmem:[%s247 + $0x1c0] sm:$0xff]
        %v339 = vld [vmem:[%s247 + $0x1c8] sm:$0xff]
        %v340 = vld [vmem:[%s247 + $0x1d0] sm:$0xff]
        %v341 = vld [vmem:[%s247 + $0x1d8] sm:$0xff]
        %v342 = vld [vmem:[%s247 + $0x1e0] sm:$0xff]
        %v343 = vld [vmem:[%s247 + $0x1e8] sm:$0xff]
        %v344 = vld [vmem:[%s247 + $0x1f0] sm:$0xff]
        %v345 = vld [vmem:[%s247 + $0x1f8] sm:$0xff]
        %v346 = vld [vmem:[%s247 + $0x200] sm:$0xff]
        %v347 = vld [vmem:[%s247 + $0x208] sm:$0xff]
        %v348 = vld [vmem:[%s247 + $0x210] sm:$0xff]
        %v349 = vld [vmem:[%s247 + $0x218] sm:$0xff]
        %v350 = vld [vmem:[%s247 + $0x220] sm:$0xff]
        %v351 = vld [vmem:[%s247 + $0x228] sm:$0xff]
        %v352 = vld [vmem:[%s247 + $0x230] sm:$0xff]
        %v353 = vld [vmem:[%s247 + $0x238] sm:$0xff]
        %v354 = vld [vmem:[%s247 + $0x240] sm:$0xff]
        %v355 = vld [vmem:[%s247 + $0x248] sm:$0xff]
        %v356 = vld [vmem:[%s247 + $0x250] sm:$0xff]
        %v357 = vld [vmem:[%s247 + $0x258] sm:$0xff]
        %v358 = vld [vmem:[%s247 + $0x260] sm:$0xff]
        %v359 = vld [vmem:[%s247 + $0x268] sm:$0xff]
        %v360 = vld [vmem:[%s247 + $0x270] sm:$0xff]
        %v361 = vld [vmem:[%s247 + $0x278] sm:$0xff]
        %v362 = vld [vmem:[%s247 + $0x280] sm:$0xff]
        %v363 = vld [vmem:[%s247 + $0x288] sm:$0xff]
        %v364 = vld [vmem:[%s247 + $0x290] sm:$0xff]
        %v365 = vld [vmem:[%s247 + $0x298] sm:$0xff]
        %v366 = vld [vmem:[%s247 + $0x2a0] sm:$0xff]
        %v367 = vld [vmem:[%s247 + $0x2a8] sm:$0xff]
        %v368 = vld [vmem:[%s247 + $0x2b0] sm:$0xff]
        %v369 = vld [vmem:[%s247 + $0x2b8] sm:$0xff]
        %v370 = vld [vmem:[%s247 + $0x2c0] sm:$0xff]
        %v371 = vld [vmem:[%s247 + $0x2c8] sm:$0xff]
        %v372 = vld [vmem:[%s247 + $0x2d0] sm:$0xff]
        %v373 = vld [vmem:[%s247 + $0x2d8] sm:$0xff]
        %v374 = vld [vmem:[%s247 + $0x2e0] sm:$0xff]
        %v375 = vld [vmem:[%s247 + $0x2e8] sm:$0xff]
        %v376 = vld [vmem:[%s247 + $0x2f0] sm:$0xff]
        %v377 = vld [vmem:[%s247 + $0x2f8] sm:$0xff]
        %v378 = vld [vmem:[%s247 + $0x300] sm:$0xff]
        %v379 = vld [vmem:[%s247 + $0x308] sm:$0xff]
        %v380 = vld [vmem:[%s247 + $0x310] sm:$0xff]
        %v381 = vld [vmem:[%s247 + $0x318] sm:$0xff]
        %v382 = vld [vmem:[%s247 + $0x320] sm:$0xff]
        %v383 = vld [vmem:[%s247 + $0x328] sm:$0xff]
        %v384 = vld [vmem:[%s247 + $0x330] sm:$0xff]
        %v385 = vld [vmem:[%s247 + $0x338] sm:$0xff]
        %v386 = vld [vmem:[%s247 + $0x340] sm:$0xff]
        %v387 = vld [vmem:[%s247 + $0x348] sm:$0xff]
        %v388 = vld [vmem:[%s247 + $0x350] sm:$0xff]
        %v389 = vld [vmem:[%s247 + $0x358] sm:$0xff]
        %v390 = vld [vmem:[%s247 + $0x360] sm:$0xff]
        %v391 = vld [vmem:[%s247 + $0x368] sm:$0xff]
        %v392 = vld [vmem:[%s247 + $0x370] sm:$0xff]
        %v393 = vld [vmem:[%s247 + $0x378] sm:$0xff]
        %v394 = vld [vmem:[%s247 + $0x380] sm:$0xff]
        %v395 = vld [vmem:[%s247 + $0x388] sm:$0xff]
        %v396 = vld [vmem:[%s247 + $0x390] sm:$0xff]
        %v397 = vld [vmem:[%s247 + $0x398] sm:$0xff]
        %v398 = vld [vmem:[%s247 + $0x3a0] sm:$0xff]
        %v399 = vld [vmem:[%s247 + $0x3a8] sm:$0xff]
        %v400 = vld [vmem:[%s247 + $0x3b0] sm:$0xff]
        %v401 = vld [vmem:[%s247 + $0x3b8] sm:$0xff]
        %v402 = vld [vmem:[%s247 + $0x3c0] sm:$0xff]
        %v403 = vld [vmem:[%s247 + $0x3c8] sm:$0xff]
        %v404 = vld [vmem:[%s247 + $0x3d0] sm:$0xff]
        %v405 = vld [vmem:[%s247 + $0x3d8] sm:$0xff]
        %v406 = vld [vmem:[%s247 + $0x3e0] sm:$0xff]
        %v407 = vld [vmem:[%s247 + $0x3e8] sm:$0xff]
        %v408 = vld [vmem:[%s247 + $0x3f0] sm:$0xff]
        %v409 = vld [vmem:[%s247 + $0x3f8] sm:$0xff]
        %v410 = vld [vmem:[%s247 + $0x400] sm:$0xff]
        %v411 = vld [vmem:[%s247 + $0x408] sm:$0xff]
        %v412 = vld [vmem:[%s247 + $0x410] sm:$0xff]
        %v413 = vld [vmem:[%s247 + $0x418] sm:$0xff]
        %v414 = vld [vmem:[%s247 + $0x420] sm:$0xff]
        %v415 = vld [vmem:[%s247 + $0x428] sm:$0xff]
        %v416 = vld [vmem:[%s247 + $0x430] sm:$0xff]
        %v417 = vld [vmem:[%s247 + $0x438] sm:$0xff]
        %v418 = vld [vmem:[%s247 + $0x440] sm:$0xff]
        %v419 = vld [vmem:[%s247 + $0x448] sm:$0xff]
        %v420 = vld [vmem:[%s247 + $0x450] sm:$0xff]
        %v421 = vld [vmem:[%s247 + $0x458] sm:$0xff]
        %v422 = vld [vmem:[%s247 + $0x460] sm:$0xff]
        %v423 = vld [vmem:[%s247 + $0x468] sm:$0xff]
        %v424 = vld [vmem:[%s247 + $0x470] sm:$0xff]
        %v425 = vld [vmem:[%s247 + $0x478] sm:$0xff]
        %v426 = vld [vmem:[%s247 + $0x480] sm:$0xff]
        %v427 = vld [vmem:[%s247 + $0x488] sm:$0xff]
        %v428 = vld [vmem:[%s247 + $0x490] sm:$0xff]
        %v429 = vld [vmem:[%s247 + $0x498] sm:$0xff]
        %v430 = vld [vmem:[%s247 + $0x4a0] sm:$0xff]
        %v431 = vld [vmem:[%s247 + $0x4a8] sm:$0xff]
        %v432 = vld [vmem:[%s247 + $0x4b0] sm:$0xff]
        %v433 = vld [vmem:[%s247 + $0x4b8] sm:$0xff]
        %v434 = vld [vmem:[%s247 + $0x4c0] sm:$0xff]
        %v435 = vld [vmem:[%s247 + $0x4c8] sm:$0xff]
        %v436 = vld [vmem:[%s247 + $0x4d0] sm:$0xff]
        %v437 = vld [vmem:[%s247 + $0x4d8] sm:$0xff]
        %v438 = vld [vmem:[%s247 + $0x4e0] sm:$0xff]
        %v439 = vld [vmem:[%s247 + $0x4e8] sm:$0xff]
        %v440 = vld [vmem:[%s247 + $0x4f0] sm:$0xff]
        %v441 = vld [vmem:[%s247 + $0x4f8] sm:$0xff]
        %v442 = vld [vmem:[%s247 + $0x500] sm:$0xff]
        %v443 = vld [vmem:[%s247 + $0x508] sm:$0xff]
        %v444 = vld [vmem:[%s247 + $0x510] sm:$0xff]
        %v445 = vld [vmem:[%s247 + $0x518] sm:$0xff]
        %v446 = vld [vmem:[%s247 + $0x520] sm:$0xff]
        %v447 = vld [vmem:[%s247 + $0x528] sm:$0xff]
        %v448 = vld [vmem:[%s247 + $0x530] sm:$0xff]
        %v449 = vld [vmem:[%s247 + $0x538] sm:$0xff]
        %v450 = vld [vmem:[%s247 + $0x540] sm:$0xff]
        %v451 = vld [vmem:[%s247 + $0x548] sm:$0xff]
        %v452 = vld [vmem:[%s247 + $0x550] sm:$0xff]
        %v453 = vld [vmem:[%s247 + $0x558] sm:$0xff]
        %v454 = vld [vmem:[%s247 + $0x560] sm:$0xff]
        %v455 = vld [vmem:[%s247 + $0x568] sm:$0xff]
        %v456 = vld [vmem:[%s247 + $0x570] sm:$0xff]
        %v457 = vld [vmem:[%s247 + $0x578] sm:$0xff]
        %v458 = vld [vmem:[%s247 + $0x580] sm:$0xff]
        %v459 = vld [vmem:[%s247 + $0x588] sm:$0xff]
        %v460 = vld [vmem:[%s247 + $0x590] sm:$0xff]
        %v461 = vld [vmem:[%s247 + $0x598] sm:$0xff]
        %v462 = vld [vmem:[%s247 + $0x5a0] sm:$0xff]
        %v463 = vld [vmem:[%s247 + $0x5a8] sm:$0xff]
        %v464 = vld [vmem:[%s247 + $0x5b0] sm:$0xff]
        %v465 = vld [vmem:[%s247 + $0x5b8] sm:$0xff]
        %v466 = vld [vmem:[%s247 + $0x5c0] sm:$0xff]
        %v467 = vld [vmem:[%s247 + $0x5c8] sm:$0xff]
        %v468 = vld [vmem:[%s247 + $0x5d0] sm:$0xff]
        %v469 = vld [vmem:[%s247 + $0x5d8] sm:$0xff]
        %v470 = vld [vmem:[%s247 + $0x5e0] sm:$0xff]
        %v471 = vld [vmem:[%s247 + $0x5e8] sm:$0xff]
        %v472 = vld [vmem:[%s247 + $0x5f0] sm:$0xff]
        %v473 = vld [vmem:[%s247 + $0x5f8] sm:$0xff]
        %v474 = vld [vmem:[%s247 + $0x600] sm:$0xff]
        %v475 = vld [vmem:[%s247 + $0x608] sm:$0xff]
        %v476 = vld [vmem:[%s247 + $0x610] sm:$0xff]
        %v477 = vld [vmem:[%s247 + $0x618] sm:$0xff]
        %v478 = vld [vmem:[%s247 + $0x620] sm:$0xff]
        %v479 = vld [vmem:[%s247 + $0x628] sm:$0xff]
        %v480 = vld [vmem:[%s247 + $0x630] sm:$0xff]
        %v481 = vld [vmem:[%s247 + $0x638] sm:$0xff]
        %v482 = vld [vmem:[%s247 + $0x640] sm:$0xff]
        %v483 = vld [vmem:[%s247 + $0x648] sm:$0xff]
        %v484 = vld [vmem:[%s247 + $0x650] sm:$0xff]
        %v485 = vld [vmem:[%s247 + $0x658] sm:$0xff]
        %v486 = vld [vmem:[%s247 + $0x660] sm:$0xff]
        %v487 = vld [vmem:[%s247 + $0x668] sm:$0xff]
        %v488 = vld [vmem:[%s247 + $0x670] sm:$0xff]
        %v489 = vld [vmem:[%s247 + $0x678] sm:$0xff]
        %v490 = vld [vmem:[%s247 + $0x680] sm:$0xff]
        %v491 = vld [vmem:[%s247 + $0x688] sm:$0xff]
        %v492 = vld [vmem:[%s247 + $0x690] sm:$0xff]
        %v493 = vld [vmem:[%s247 + $0x698] sm:$0xff]
        %v494 = vld [vmem:[%s247 + $0x6a0] sm:$0xff]
        %v495 = vld [vmem:[%s247 + $0x6a8] sm:$0xff]
        %v496 = vld [vmem:[%s247 + $0x6b0] sm:$0xff]
        %v497 = vld [vmem:[%s247 + $0x6b8] sm:$0xff]
        %v498 = vld [vmem:[%s247 + $0x6c0] sm:$0xff]
        %v499 = vld [vmem:[%s247 + $0x6c8] sm:$0xff]
        %v500 = vld [vmem:[%s247 + $0x6d0] sm:$0xff]
        %v501 = vld [vmem:[%s247 + $0x6d8] sm:$0xff]
        %v502 = vld [vmem:[%s247 + $0x6e0] sm:$0xff]
        %v503 = vld [vmem:[%s247 + $0x6e8] sm:$0xff]
        %v504 = vld [vmem:[%s247 + $0x6f0] sm:$0xff]
        %v505 = vld [vmem:[%s247 + $0x6f8] sm:$0xff]
        %v506 = vld [vmem:[%s247 + $0x700] sm:$0xff]
        %v507 = vld [vmem:[%s247 + $0x708] sm:$0xff]
        %v508 = vld [vmem:[%s247 + $0x710] sm:$0xff]
        %v509 = vld [vmem:[%s247 + $0x718] sm:$0xff]
        %v510 = vld [vmem:[%s247 + $0x720] sm:$0xff]
        %v511 = vld [vmem:[%s247 + $0x728] sm:$0xff]
        %v512 = vld [vmem:[%s247 + $0x730] sm:$0xff]
        %v513 = vld [vmem:[%s247 + $0x738] sm:$0xff]
        %v514 = vld [vmem:[%s247 + $0x740] sm:$0xff]
        %v515 = vld [vmem:[%s247 + $0x748] sm:$0xff]
        %v516 = vld [vmem:[%s247 + $0x750] sm:$0xff]
        %v517 = vld [vmem:[%s247 + $0x758] sm:$0xff]
        %v518 = vld [vmem:[%s247 + $0x760] sm:$0xff]
        %v519 = vld [vmem:[%s247 + $0x768] sm:$0xff]
        %v520 = vld [vmem:[%s247 + $0x770] sm:$0xff]
        %v521 = vld [vmem:[%s247 + $0x778] sm:$0xff]
        %v522 = vld [vmem:[%s247 + $0x780] sm:$0xff]
        %v523 = vld [vmem:[%s247 + $0x788] sm:$0xff]
        %v524 = vld [vmem:[%s247 + $0x790] sm:$0xff]
        %v525 = vld [vmem:[%s247 + $0x798] sm:$0xff]
        %v526 = vld [vmem:[%s247 + $0x7a0] sm:$0xff]
        %v527 = vld [vmem:[%s247 + $0x7a8] sm:$0xff]
        %v528 = vld [vmem:[%s247 + $0x7b0] sm:$0xff]
        %v529 = vld [vmem:[%s247 + $0x7b8] sm:$0xff]
        %v530 = vld [vmem:[%s247 + $0x7c0] sm:$0xff]
        %v531 = vld [vmem:[%s247 + $0x7c8] sm:$0xff]
        %v532 = vld [vmem:[%s247 + $0x7d0] sm:$0xff]
        %v533 = vld [vmem:[%s247 + $0x7d8] sm:$0xff]
        %v534 = vld [vmem:[%s247 + $0x7e0] sm:$0xff]
        %v535 = vld [vmem:[%s247 + $0x7e8] sm:$0xff]
        %v536 = vld [vmem:[%s247 + $0x7f0] sm:$0xff]
        %v537 = vld [vmem:[%s247 + $0x7f8] sm:$0xff]
        %v538 = vld [vmem:[%s2] sm:$0xff]
        %v539 = vld [vmem:[%s2 + $0x8] sm:$0xff]
        %v540 = vld [vmem:[%s2 + $0x10] sm:$0xff]
        %v541 = vld [vmem:[%s2 + $0x18] sm:$0xff]
        %v542 = vld [vmem:[%s2 + $0x20] sm:$0xff]
        %v543 = vld [vmem:[%s2 + $0x28] sm:$0xff]
        %v544 = vld [vmem:[%s2 + $0x30] sm:$0xff]
        %v545 = vld [vmem:[%s2 + $0x38] sm:$0xff]
        %v546 = vld [vmem:[%s2 + $0x40] sm:$0xff]
        %v547 = vld [vmem:[%s2 + $0x48] sm:$0xff]
        %v548 = vld [vmem:[%s2 + $0x50] sm:$0xff]
        %v549 = vld [vmem:[%s2 + $0x58] sm:$0xff]
        %v550 = vld [vmem:[%s2 + $0x60] sm:$0xff]
        %v551 = vld [vmem:[%s2 + $0x68] sm:$0xff]
        %v552 = vld [vmem:[%s2 + $0x70] sm:$0xff]
        %v553 = vld [vmem:[%s2 + $0x78] sm:$0xff]
        %554 = vmatprep.subr.mxu0 0.0
        %555 = vmatpush1.msra.mxu0 %v553
        %556 = vmatprep.subr.mxu0 0.0
        %557 = vmatpush1.msra.mxu0 %v552
        %558 = vmatprep.subr.mxu0 0.0
        %559 = vmatpush1.msra.mxu0 %v551
        %560 = vmatprep.subr.mxu0 0.0
        %561 = vmatpush1.msra.mxu0 %v550
        %562 = vmatprep.subr.mxu0 0.0
        %563 = vmatpush1.msra.mxu0 %v549
        %564 = vmatprep.subr.mxu0 0.0
        %565 = vmatpush1.msra.mxu0 %v548
        %566 = vmatprep.subr.mxu0 0.0
        %567 = vmatpush1.msra.mxu0 %v547
        %568 = vmatprep.subr.mxu0 0.0
        %569 = vmatpush1.msra.mxu0 %v546
        %570 = vmatprep.subr.mxu0 0.0
        %571 = vmatpush1.msra.mxu0 %v545
        %572 = vmatprep.subr.mxu0 0.0
        %573 = vmatpush1.msra.mxu0 %v544
        %574 = vmatprep.subr.mxu0 0.0
        %575 = vmatpush1.msra.mxu0 %v543
        %576 = vmatprep.subr.mxu0 0.0
        %577 = vmatpush1.msra.mxu0 %v542
        %578 = vmatprep.subr.mxu0 0.0
        %579 = vmatpush1.msra.mxu0 %v541
        %580 = vmatprep.subr.mxu0 0.0
        %581 = vmatpush1.msra.mxu0 %v540
        %582 = vmatprep.subr.mxu0 0.0
        %583 = vmatpush1.msra.mxu0 %v539
        %584 = vmatprep.subr.mxu0 0.0
        %585 = vmatpush1.msra.mxu0 %v538
        %586 = vmatprep.subr.mxu0 0.0
        %587 = vmatpush2.msra.mxu0 0.0
        %588 = vmatprep.subr.mxu0 0.0
        %589 = vmatpush2.msra.mxu0 0.0
        %590 = vmatprep.subr.mxu0 0.0
        %591 = vmatpush2.msra.mxu0 0.0
        %592 = vmatprep.subr.mxu0 0.0
        %593 = vmatpush2.msra.mxu0 0.0
        %594 = vmatprep.subr.mxu0 0.0
        %595 = vmatpush2.msra.mxu0 0.0
        %596 = vmatprep.subr.mxu0 0.0
        %597 = vmatpush2.msra.mxu0 0.0
        %598 = vmatprep.subr.mxu0 0.0
        %599 = vmatpush2.msra.mxu0 0.0
        %600 = vmatprep.subr.mxu0 0.0
        %601 = vmatpush2.msra.mxu0 0.0
        %602 = vmatprep.subr.mxu0 0.0
        %603 = vmatpush2.msra.mxu0 0.0
        %604 = vmatprep.subr.mxu0 0.0
        %605 = vmatpush2.msra.mxu0 0.0
        %606 = vmatprep.subr.mxu0 0.0
        %607 = vmatpush2.msra.mxu0 0.0
        %608 = vmatprep.subr.mxu0 0.0
        %609 = vmatpush2.msra.mxu0 0.0
        %610 = vmatprep.subr.mxu0 0.0
        %611 = vmatpush2.msra.mxu0 0.0
        %612 = vmatprep.subr.mxu0 0.0
        %613 = vmatpush2.msra.mxu0 0.0
        %614 = vmatprep.subr.mxu0 0.0
        %615 = vmatpush2.msra.mxu0 0.0
        %616 = vmatprep.subr.mxu0 0.0
        %617 = vmatpush2.msra.mxu0 0.0
        %618 = vmatprep.mubr.f32.mxu0 0.0
        %619 = vmatmul.mubr.f32.gmra.mxu0 %v282
        %v620 = vpop.f32.mrf.mxu0
        %v621 = vadd.f32 0.0, %v620
        %v622 = vpop.f32.mrf.mxu0
        %623 = vmatprep.mubr.f32.mxu0 0.0
        %624 = vmatmul.mubr.f32.gmra.mxu0 %v283
        %v625 = vpop.f32.mrf.mxu0
        %v626 = vadd.f32 0.0, %v625
        %v627 = vpop.f32.mrf.mxu0
        %628 = vmatprep.mubr.f32.mxu0 0.0
        %629 = vmatmul.mubr.f32.gmra.mxu0 %v284
        %v630 = vpop.f32.mrf.mxu0
        %v631 = vadd.f32 0.0, %v630
        %v632 = vpop.f32.mrf.mxu0
        %633 = vmatprep.mubr.f32.mxu0 0.0
        %634 = vmatmul.mubr.f32.gmra.mxu0 %v285
        %v635 = vpop.f32.mrf.mxu0
        %v636 = vadd.f32 0.0, %v635
        %v637 = vpop.f32.mrf.mxu0
        %638 = vmatprep.mubr.f32.mxu0 0.0
        %639 = vmatmul.mubr.f32.gmra.mxu0 %v286
        %v640 = vpop.f32.mrf.mxu0
        %v641 = vadd.f32 0.0, %v640
        %v642 = vpop.f32.mrf.mxu0
        %643 = vmatprep.mubr.f32.mxu0 0.0
        %644 = vmatmul.mubr.f32.gmra.mxu0 %v287
        %v645 = vpop.f32.mrf.mxu0
        %v646 = vadd.f32 0.0, %v645
        %v647 = vpop.f32.mrf.mxu0
        %648 = vmatprep.mubr.f32.mxu0 0.0
        %649 = vmatmul.mubr.f32.gmra.mxu0 %v288
        %v650 = vpop.f32.mrf.mxu0
        %v651 = vadd.f32 0.0, %v650
        %v652 = vpop.f32.mrf.mxu0
        %653 = vmatprep.mubr.f32.mxu0 0.0
        %654 = vmatmul.mubr.f32.gmra.mxu0 %v289
        %v655 = vpop.f32.mrf.mxu0
        %v656 = vadd.f32 0.0, %v655
        %v657 = vpop.f32.mrf.mxu0
        %658 = vmatprep.mubr.f32.mxu0 0.0
        %659 = vmatmul.mubr.f32.gmra.mxu0 %v290
        %v660 = vpop.f32.mrf.mxu0
        %v661 = vadd.f32 0.0, %v660
        %v662 = vpop.f32.mrf.mxu0
        %663 = vmatprep.mubr.f32.mxu0 0.0
        %664 = vmatmul.mubr.f32.gmra.mxu0 %v291
        %v665 = vpop.f32.mrf.mxu0
        %v666 = vadd.f32 0.0, %v665
        %v667 = vpop.f32.mrf.mxu0
        %668 = vmatprep.mubr.f32.mxu0 0.0
        %669 = vmatmul.mubr.f32.gmra.mxu0 %v292
        %v670 = vpop.f32.mrf.mxu0
        %v671 = vadd.f32 0.0, %v670
        %v672 = vpop.f32.mrf.mxu0
        %673 = vmatprep.mubr.f32.mxu0 0.0
        %674 = vmatmul.mubr.f32.gmra.mxu0 %v293
        %v675 = vpop.f32.mrf.mxu0
        %v676 = vadd.f32 0.0, %v675
        %v677 = vpop.f32.mrf.mxu0
        %678 = vmatprep.mubr.f32.mxu0 0.0
        %679 = vmatmul.mubr.f32.gmra.mxu0 %v294
        %v680 = vpop.f32.mrf.mxu0
        %v681 = vadd.f32 0.0, %v680
        %v682 = vpop.f32.mrf.mxu0
        %683 = vmatprep.mubr.f32.mxu0 0.0
        %684 = vmatmul.mubr.f32.gmra.mxu0 %v295
        %v685 = vpop.f32.mrf.mxu0
        %v686 = vadd.f32 0.0, %v685
        %v687 = vpop.f32.mrf.mxu0
        %688 = vmatprep.mubr.f32.mxu0 0.0
        %689 = vmatmul.mubr.f32.gmra.mxu0 %v296
        %v690 = vpop.f32.mrf.mxu0
        %v691 = vadd.f32 0.0, %v690
        %v692 = vpop.f32.mrf.mxu0
        %693 = vmatprep.mubr.f32.mxu0 0.0
        %694 = vmatmul.mubr.f32.gmra.mxu0 %v297
        %v695 = vpop.f32.mrf.mxu0
        %v696 = vadd.f32 0.0, %v695
        %v697 = vpop.f32.mrf.mxu0
        %698 = vmatprep.mubr.f32.mxu0 0.0
        %699 = vmatmul.mubr.f32.gmra.mxu0 %v298
        %v700 = vpop.f32.mrf.mxu0
        %v701 = vadd.f32 0.0, %v700
        %v702 = vpop.f32.mrf.mxu0
        %703 = vmatprep.mubr.f32.mxu0 0.0
        %704 = vmatmul.mubr.f32.gmra.mxu0 %v299
        %v705 = vpop.f32.mrf.mxu0
        %v706 = vadd.f32 0.0, %v705
        %v707 = vpop.f32.mrf.mxu0
        %708 = vmatprep.mubr.f32.mxu0 0.0
        %709 = vmatmul.mubr.f32.gmra.mxu0 %v300
        %v710 = vpop.f32.mrf.mxu0
        %v711 = vadd.f32 0.0, %v710
        %v712 = vpop.f32.mrf.mxu0
        %713 = vmatprep.mubr.f32.mxu0 0.0
        %714 = vmatmul.mubr.f32.gmra.mxu0 %v301
        %v715 = vpop.f32.mrf.mxu0
        %v716 = vadd.f32 0.0, %v715
        %v717 = vpop.f32.mrf.mxu0
        %718 = vmatprep.mubr.f32.mxu0 0.0
        %719 = vmatmul.mubr.f32.gmra.mxu0 %v302
        %v720 = vpop.f32.mrf.mxu0
        %v721 = vadd.f32 0.0, %v720
        %v722 = vpop.f32.mrf.mxu0
        %723 = vmatprep.mubr.f32.mxu0 0.0
        %724 = vmatmul.mubr.f32.gmra.mxu0 %v303
        %v725 = vpop.f32.mrf.mxu0
        %v726 = vadd.f32 0.0, %v725
        %v727 = vpop.f32.mrf.mxu0
        %728 = vmatprep.mubr.f32.mxu0 0.0
        %729 = vmatmul.mubr.f32.gmra.mxu0 %v304
        %v730 = vpop.f32.mrf.mxu0
        %v731 = vadd.f32 0.0, %v730
        %v732 = vpop.f32.mrf.mxu0
        %733 = vmatprep.mubr.f32.mxu0 0.0
        %734 = vmatmul.mubr.f32.gmra.mxu0 %v305
        %v735 = vpop.f32.mrf.mxu0
        %v736 = vadd.f32 0.0, %v735
        %v737 = vpop.f32.mrf.mxu0
        %738 = vmatprep.mubr.f32.mxu0 0.0
        %739 = vmatmul.mubr.f32.gmra.mxu0 %v306
        %v740 = vpop.f32.mrf.mxu0
        %v741 = vadd.f32 0.0, %v740
        %v742 = vpop.f32.mrf.mxu0
        %743 = vmatprep.mubr.f32.mxu0 0.0
        %744 = vmatmul.mubr.f32.gmra.mxu0 %v307
        %v745 = vpop.f32.mrf.mxu0
        %v746 = vadd.f32 0.0, %v745
        %v747 = vpop.f32.mrf.mxu0
        %748 = vmatprep.mubr.f32.mxu0 0.0
        %749 = vmatmul.mubr.f32.gmra.mxu0 %v308
        %v750 = vpop.f32.mrf.mxu0
        %v751 = vadd.f32 0.0, %v750
        %v752 = vpop.f32.mrf.mxu0
        %753 = vmatprep.mubr.f32.mxu0 0.0
        %754 = vmatmul.mubr.f32.gmra.mxu0 %v309
        %v755 = vpop.f32.mrf.mxu0
        %v756 = vadd.f32 0.0, %v755
        %v757 = vpop.f32.mrf.mxu0
        %758 = vmatprep.mubr.f32.mxu0 0.0
        %759 = vmatmul.mubr.f32.gmra.mxu0 %v310
        %v760 = vpop.f32.mrf.mxu0
        %v761 = vadd.f32 0.0, %v760
        %v762 = vpop.f32.mrf.mxu0
        %763 = vmatprep.mubr.f32.mxu0 0.0
        %764 = vmatmul.mubr.f32.gmra.mxu0 %v311
        %v765 = vpop.f32.mrf.mxu0
        %v766 = vadd.f32 0.0, %v765
        %v767 = vpop.f32.mrf.mxu0
        %768 = vmatprep.mubr.f32.mxu0 0.0
        %769 = vmatmul.mubr.f32.gmra.mxu0 %v312
        %v770 = vpop.f32.mrf.mxu0
        %v771 = vadd.f32 0.0, %v770
        %v772 = vpop.f32.mrf.mxu0
        %773 = vmatprep.mubr.f32.mxu0 0.0
        %774 = vmatmul.mubr.f32.gmra.mxu0 %v313
        %v775 = vpop.f32.mrf.mxu0
        %v776 = vadd.f32 0.0, %v775
        %v777 = vpop.f32.mrf.mxu0
        %778 = vmatprep.mubr.f32.mxu0 0.0
        %779 = vmatmul.mubr.f32.gmra.mxu0 %v314
        %v780 = vpop.f32.mrf.mxu0
        %v781 = vadd.f32 0.0, %v780
        %v782 = vpop.f32.mrf.mxu0
        %783 = vmatprep.mubr.f32.mxu0 0.0
        %784 = vmatmul.mubr.f32.gmra.mxu0 %v315
        %v785 = vpop.f32.mrf.mxu0
        %v786 = vadd.f32 0.0, %v785
        %v787 = vpop.f32.mrf.mxu0
        %788 = vmatprep.mubr.f32.mxu0 0.0
        %789 = vmatmul.mubr.f32.gmra.mxu0 %v316
        %v790 = vpop.f32.mrf.mxu0
        %v791 = vadd.f32 0.0, %v790
        %v792 = vpop.f32.mrf.mxu0
        %793 = vmatprep.mubr.f32.mxu0 0.0
        %794 = vmatmul.mubr.f32.gmra.mxu0 %v317
        %v795 = vpop.f32.mrf.mxu0
        %v796 = vadd.f32 0.0, %v795
        %v797 = vpop.f32.mrf.mxu0
        %798 = vmatprep.mubr.f32.mxu0 0.0
        %799 = vmatmul.mubr.f32.gmra.mxu0 %v318
        %v800 = vpop.f32.mrf.mxu0
        %v801 = vadd.f32 0.0, %v800
        %v802 = vpop.f32.mrf.mxu0
        %803 = vmatprep.mubr.f32.mxu0 0.0
        %804 = vmatmul.mubr.f32.gmra.mxu0 %v319
        %v805 = vpop.f32.mrf.mxu0
        %v806 = vadd.f32 0.0, %v805
        %v807 = vpop.f32.mrf.mxu0
        %808 = vmatprep.mubr.f32.mxu0 0.0
        %809 = vmatmul.mubr.f32.gmra.mxu0 %v320
        %v810 = vpop.f32.mrf.mxu0
        %v811 = vadd.f32 0.0, %v810
        %v812 = vpop.f32.mrf.mxu0
        %813 = vmatprep.mubr.f32.mxu0 0.0
        %814 = vmatmul.mubr.f32.gmra.mxu0 %v321
        %v815 = vpop.f32.mrf.mxu0
        %v816 = vadd.f32 0.0, %v815
        %v817 = vpop.f32.mrf.mxu0
        %818 = vmatprep.mubr.f32.mxu0 0.0
        %819 = vmatmul.mubr.f32.gmra.mxu0 %v322
        %v820 = vpop.f32.mrf.mxu0
        %v821 = vadd.f32 0.0, %v820
        %v822 = vpop.f32.mrf.mxu0
        %823 = vmatprep.mubr.f32.mxu0 0.0
        %824 = vmatmul.mubr.f32.gmra.mxu0 %v323
        %v825 = vpop.f32.mrf.mxu0
        %v826 = vadd.f32 0.0, %v825
        %v827 = vpop.f32.mrf.mxu0
        %828 = vmatprep.mubr.f32.mxu0 0.0
        %829 = vmatmul.mubr.f32.gmra.mxu0 %v324
        %v830 = vpop.f32.mrf.mxu0
        %v831 = vadd.f32 0.0, %v830
        %v832 = vpop.f32.mrf.mxu0
        %833 = vmatprep.mubr.f32.mxu0 0.0
        %834 = vmatmul.mubr.f32.gmra.mxu0 %v325
        %v835 = vpop.f32.mrf.mxu0
        %v836 = vadd.f32 0.0, %v835
        %v837 = vpop.f32.mrf.mxu0
        %838 = vmatprep.mubr.f32.mxu0 0.0
        %839 = vmatmul.mubr.f32.gmra.mxu0 %v326
        %v840 = vpop.f32.mrf.mxu0
        %v841 = vadd.f32 0.0, %v840
        %v842 = vpop.f32.mrf.mxu0
        %843 = vmatprep.mubr.f32.mxu0 0.0
        %844 = vmatmul.mubr.f32.gmra.mxu0 %v327
        %v845 = vpop.f32.mrf.mxu0
        %v846 = vadd.f32 0.0, %v845
        %v847 = vpop.f32.mrf.mxu0
        %848 = vmatprep.mubr.f32.mxu0 0.0
        %849 = vmatmul.mubr.f32.gmra.mxu0 %v328
        %v850 = vpop.f32.mrf.mxu0
        %v851 = vadd.f32 0.0, %v850
        %v852 = vpop.f32.mrf.mxu0
        %853 = vmatprep.mubr.f32.mxu0 0.0
        %854 = vmatmul.mubr.f32.gmra.mxu0 %v329
        %v855 = vpop.f32.mrf.mxu0
        %v856 = vadd.f32 0.0, %v855
        %v857 = vpop.f32.mrf.mxu0
        %858 = vmatprep.mubr.f32.mxu0 0.0
        %859 = vmatmul.mubr.f32.gmra.mxu0 %v330
        %v860 = vpop.f32.mrf.mxu0
        %v861 = vadd.f32 0.0, %v860
        %v862 = vpop.f32.mrf.mxu0
        %863 = vmatprep.mubr.f32.mxu0 0.0
        %864 = vmatmul.mubr.f32.gmra.mxu0 %v331
        %v865 = vpop.f32.mrf.mxu0
        %v866 = vadd.f32 0.0, %v865
        %v867 = vpop.f32.mrf.mxu0
        %868 = vmatprep.mubr.f32.mxu0 0.0
        %869 = vmatmul.mubr.f32.gmra.mxu0 %v332
        %v870 = vpop.f32.mrf.mxu0
        %v871 = vadd.f32 0.0, %v870
        %v872 = vpop.f32.mrf.mxu0
        %873 = vmatprep.mubr.f32.mxu0 0.0
        %874 = vmatmul.mubr.f32.gmra.mxu0 %v333
        %v875 = vpop.f32.mrf.mxu0
        %v876 = vadd.f32 0.0, %v875
        %v877 = vpop.f32.mrf.mxu0
        %878 = vmatprep.mubr.f32.mxu0 0.0
        %879 = vmatmul.mubr.f32.gmra.mxu0 %v334
        %v880 = vpop.f32.mrf.mxu0
        %v881 = vadd.f32 0.0, %v880
        %v882 = vpop.f32.mrf.mxu0
        %883 = vmatprep.mubr.f32.mxu0 0.0
        %884 = vmatmul.mubr.f32.gmra.mxu0 %v335
        %v885 = vpop.f32.mrf.mxu0
        %v886 = vadd.f32 0.0, %v885
        %v887 = vpop.f32.mrf.mxu0
        %888 = vmatprep.mubr.f32.mxu0 0.0
        %889 = vmatmul.mubr.f32.gmra.mxu0 %v336
        %v890 = vpop.f32.mrf.mxu0
        %v891 = vadd.f32 0.0, %v890
        %v892 = vpop.f32.mrf.mxu0
        %893 = vmatprep.mubr.f32.mxu0 0.0
        %894 = vmatmul.mubr.f32.gmra.mxu0 %v337
        %v895 = vpop.f32.mrf.mxu0
        %v896 = vadd.f32 0.0, %v895
        %v897 = vpop.f32.mrf.mxu0
        %898 = vmatprep.mubr.f32.mxu0 0.0
        %899 = vmatmul.mubr.f32.gmra.mxu0 %v338
        %v900 = vpop.f32.mrf.mxu0
        %v901 = vadd.f32 0.0, %v900
        %v902 = vpop.f32.mrf.mxu0
        %903 = vmatprep.mubr.f32.mxu0 0.0
        %904 = vmatmul.mubr.f32.gmra.mxu0 %v339
        %v905 = vpop.f32.mrf.mxu0
        %v906 = vadd.f32 0.0, %v905
        %v907 = vpop.f32.mrf.mxu0
        %908 = vmatprep.mubr.f32.mxu0 0.0
        %909 = vmatmul.mubr.f32.gmra.mxu0 %v340
        %v910 = vpop.f32.mrf.mxu0
        %v911 = vadd.f32 0.0, %v910
        %v912 = vpop.f32.mrf.mxu0
        %913 = vmatprep.mubr.f32.mxu0 0.0
        %914 = vmatmul.mubr.f32.gmra.mxu0 %v341
        %v915 = vpop.f32.mrf.mxu0
        %v916 = vadd.f32 0.0, %v915
        %v917 = vpop.f32.mrf.mxu0
        %918 = vmatprep.mubr.f32.mxu0 0.0
        %919 = vmatmul.mubr.f32.gmra.mxu0 %v342
        %v920 = vpop.f32.mrf.mxu0
        %v921 = vadd.f32 0.0, %v920
        %v922 = vpop.f32.mrf.mxu0
        %923 = vmatprep.mubr.f32.mxu0 0.0
        %924 = vmatmul.mubr.f32.gmra.mxu0 %v343
        %v925 = vpop.f32.mrf.mxu0
        %v926 = vadd.f32 0.0, %v925
        %v927 = vpop.f32.mrf.mxu0
        %928 = vmatprep.mubr.f32.mxu0 0.0
        %929 = vmatmul.mubr.f32.gmra.mxu0 %v344
        %v930 = vpop.f32.mrf.mxu0
        %v931 = vadd.f32 0.0, %v930
        %v932 = vpop.f32.mrf.mxu0
        %933 = vmatprep.mubr.f32.mxu0 0.0
        %934 = vmatmul.mubr.f32.gmra.mxu0 %v345
        %v935 = vpop.f32.mrf.mxu0
        %v936 = vadd.f32 0.0, %v935
        %v937 = vpop.f32.mrf.mxu0
        %938 = vmatprep.mubr.f32.mxu0 0.0
        %939 = vmatmul.mubr.f32.gmra.mxu0 %v346
        %v940 = vpop.f32.mrf.mxu0
        %v941 = vadd.f32 0.0, %v940
        %v942 = vpop.f32.mrf.mxu0
        %943 = vmatprep.mubr.f32.mxu0 0.0
        %944 = vmatmul.mubr.f32.gmra.mxu0 %v347
        %v945 = vpop.f32.mrf.mxu0
        %v946 = vadd.f32 0.0, %v945
        %v947 = vpop.f32.mrf.mxu0
        %948 = vmatprep.mubr.f32.mxu0 0.0
        %949 = vmatmul.mubr.f32.gmra.mxu0 %v348
        %v950 = vpop.f32.mrf.mxu0
        %v951 = vadd.f32 0.0, %v950
        %v952 = vpop.f32.mrf.mxu0
        %953 = vmatprep.mubr.f32.mxu0 0.0
        %954 = vmatmul.mubr.f32.gmra.mxu0 %v349
        %v955 = vpop.f32.mrf.mxu0
        %v956 = vadd.f32 0.0, %v955
        %v957 = vpop.f32.mrf.mxu0
        %958 = vmatprep.mubr.f32.mxu0 0.0
        %959 = vmatmul.mubr.f32.gmra.mxu0 %v350
        %v960 = vpop.f32.mrf.mxu0
        %v961 = vadd.f32 0.0, %v960
        %v962 = vpop.f32.mrf.mxu0
        %963 = vmatprep.mubr.f32.mxu0 0.0
        %964 = vmatmul.mubr.f32.gmra.mxu0 %v351
        %v965 = vpop.f32.mrf.mxu0
        %v966 = vadd.f32 0.0, %v965
        %v967 = vpop.f32.mrf.mxu0
        %968 = vmatprep.mubr.f32.mxu0 0.0
        %969 = vmatmul.mubr.f32.gmra.mxu0 %v352
        %v970 = vpop.f32.mrf.mxu0
        %v971 = vadd.f32 0.0, %v970
        %v972 = vpop.f32.mrf.mxu0
        %973 = vmatprep.mubr.f32.mxu0 0.0
        %974 = vmatmul.mubr.f32.gmra.mxu0 %v353
        %v975 = vpop.f32.mrf.mxu0
        %v976 = vadd.f32 0.0, %v975
        %v977 = vpop.f32.mrf.mxu0
        %978 = vmatprep.mubr.f32.mxu0 0.0
        %979 = vmatmul.mubr.f32.gmra.mxu0 %v354
        %v980 = vpop.f32.mrf.mxu0
        %v981 = vadd.f32 0.0, %v980
        %v982 = vpop.f32.mrf.mxu0
        %983 = vmatprep.mubr.f32.mxu0 0.0
        %984 = vmatmul.mubr.f32.gmra.mxu0 %v355
        %v985 = vpop.f32.mrf.mxu0
        %v986 = vadd.f32 0.0, %v985
        %v987 = vpop.f32.mrf.mxu0
        %988 = vmatprep.mubr.f32.mxu0 0.0
        %989 = vmatmul.mubr.f32.gmra.mxu0 %v356
        %v990 = vpop.f32.mrf.mxu0
        %v991 = vadd.f32 0.0, %v990
        %v992 = vpop.f32.mrf.mxu0
        %993 = vmatprep.mubr.f32.mxu0 0.0
        %994 = vmatmul.mubr.f32.gmra.mxu0 %v357
        %v995 = vpop.f32.mrf.mxu0
        %v996 = vadd.f32 0.0, %v995
        %v997 = vpop.f32.mrf.mxu0
        %998 = vmatprep.mubr.f32.mxu0 0.0
        %999 = vmatmul.mubr.f32.gmra.mxu0 %v358
        %v1000 = vpop.f32.mrf.mxu0
        %v1001 = vadd.f32 0.0, %v1000
        %v1002 = vpop.f32.mrf.mxu0
        %1003 = vmatprep.mubr.f32.mxu0 0.0
        %1004 = vmatmul.mubr.f32.gmra.mxu0 %v359
        %v1005 = vpop.f32.mrf.mxu0
        %v1006 = vadd.f32 0.0, %v1005
        %v1007 = vpop.f32.mrf.mxu0
        %1008 = vmatprep.mubr.f32.mxu0 0.0
        %1009 = vmatmul.mubr.f32.gmra.mxu0 %v360
        %v1010 = vpop.f32.mrf.mxu0
        %v1011 = vadd.f32 0.0, %v1010
        %v1012 = vpop.f32.mrf.mxu0
        %1013 = vmatprep.mubr.f32.mxu0 0.0
        %1014 = vmatmul.mubr.f32.gmra.mxu0 %v361
        %v1015 = vpop.f32.mrf.mxu0
        %v1016 = vadd.f32 0.0, %v1015
        %v1017 = vpop.f32.mrf.mxu0
        %1018 = vmatprep.mubr.f32.mxu0 0.0
        %1019 = vmatmul.mubr.f32.gmra.mxu0 %v362
        %v1020 = vpop.f32.mrf.mxu0
        %v1021 = vadd.f32 0.0, %v1020
        %v1022 = vpop.f32.mrf.mxu0
        %1023 = vmatprep.mubr.f32.mxu0 0.0
        %1024 = vmatmul.mubr.f32.gmra.mxu0 %v363
        %v1025 = vpop.f32.mrf.mxu0
        %v1026 = vadd.f32 0.0, %v1025
        %v1027 = vpop.f32.mrf.mxu0
        %1028 = vmatprep.mubr.f32.mxu0 0.0
        %1029 = vmatmul.mubr.f32.gmra.mxu0 %v364
        %v1030 = vpop.f32.mrf.mxu0
        %v1031 = vadd.f32 0.0, %v1030
        %v1032 = vpop.f32.mrf.mxu0
        %1033 = vmatprep.mubr.f32.mxu0 0.0
        %1034 = vmatmul.mubr.f32.gmra.mxu0 %v365
        %v1035 = vpop.f32.mrf.mxu0
        %v1036 = vadd.f32 0.0, %v1035
        %v1037 = vpop.f32.mrf.mxu0
        %1038 = vmatprep.mubr.f32.mxu0 0.0
        %1039 = vmatmul.mubr.f32.gmra.mxu0 %v366
        %v1040 = vpop.f32.mrf.mxu0
        %v1041 = vadd.f32 0.0, %v1040
        %v1042 = vpop.f32.mrf.mxu0
        %1043 = vmatprep.mubr.f32.mxu0 0.0
        %1044 = vmatmul.mubr.f32.gmra.mxu0 %v367
        %v1045 = vpop.f32.mrf.mxu0
        %v1046 = vadd.f32 0.0, %v1045
        %v1047 = vpop.f32.mrf.mxu0
        %1048 = vmatprep.mubr.f32.mxu0 0.0
        %1049 = vmatmul.mubr.f32.gmra.mxu0 %v368
        %v1050 = vpop.f32.mrf.mxu0
        %v1051 = vadd.f32 0.0, %v1050
        %v1052 = vpop.f32.mrf.mxu0
        %1053 = vmatprep.mubr.f32.mxu0 0.0
        %1054 = vmatmul.mubr.f32.gmra.mxu0 %v369
        %v1055 = vpop.f32.mrf.mxu0
        %v1056 = vadd.f32 0.0, %v1055
        %v1057 = vpop.f32.mrf.mxu0
        %1058 = vmatprep.mubr.f32.mxu0 0.0
        %1059 = vmatmul.mubr.f32.gmra.mxu0 %v370
        %v1060 = vpop.f32.mrf.mxu0
        %v1061 = vadd.f32 0.0, %v1060
        %v1062 = vpop.f32.mrf.mxu0
        %1063 = vmatprep.mubr.f32.mxu0 0.0
        %1064 = vmatmul.mubr.f32.gmra.mxu0 %v371
        %v1065 = vpop.f32.mrf.mxu0
        %v1066 = vadd.f32 0.0, %v1065
        %v1067 = vpop.f32.mrf.mxu0
        %1068 = vmatprep.mubr.f32.mxu0 0.0
        %1069 = vmatmul.mubr.f32.gmra.mxu0 %v372
        %v1070 = vpop.f32.mrf.mxu0
        %v1071 = vadd.f32 0.0, %v1070
        %v1072 = vpop.f32.mrf.mxu0
        %1073 = vmatprep.mubr.f32.mxu0 0.0
        %1074 = vmatmul.mubr.f32.gmra.mxu0 %v373
        %v1075 = vpop.f32.mrf.mxu0
        %v1076 = vadd.f32 0.0, %v1075
        %v1077 = vpop.f32.mrf.mxu0
        %1078 = vmatprep.mubr.f32.mxu0 0.0
        %1079 = vmatmul.mubr.f32.gmra.mxu0 %v374
        %v1080 = vpop.f32.mrf.mxu0
        %v1081 = vadd.f32 0.0, %v1080
        %v1082 = vpop.f32.mrf.mxu0
        %1083 = vmatprep.mubr.f32.mxu0 0.0
        %1084 = vmatmul.mubr.f32.gmra.mxu0 %v375
        %v1085 = vpop.f32.mrf.mxu0
        %v1086 = vadd.f32 0.0, %v1085
        %v1087 = vpop.f32.mrf.mxu0
        %1088 = vmatprep.mubr.f32.mxu0 0.0
        %1089 = vmatmul.mubr.f32.gmra.mxu0 %v376
        %v1090 = vpop.f32.mrf.mxu0
        %v1091 = vadd.f32 0.0, %v1090
        %v1092 = vpop.f32.mrf.mxu0
        %1093 = vmatprep.mubr.f32.mxu0 0.0
        %1094 = vmatmul.mubr.f32.gmra.mxu0 %v377
        %v1095 = vpop.f32.mrf.mxu0
        %v1096 = vadd.f32 0.0, %v1095
        %v1097 = vpop.f32.mrf.mxu0
        %1098 = vmatprep.mubr.f32.mxu0 0.0
        %1099 = vmatmul.mubr.f32.gmra.mxu0 %v378
        %v1100 = vpop.f32.mrf.mxu0
        %v1101 = vadd.f32 0.0, %v1100
        %v1102 = vpop.f32.mrf.mxu0
        %1103 = vmatprep.mubr.f32.mxu0 0.0
        %1104 = vmatmul.mubr.f32.gmra.mxu0 %v379
        %v1105 = vpop.f32.mrf.mxu0
        %v1106 = vadd.f32 0.0, %v1105
        %v1107 = vpop.f32.mrf.mxu0
        %1108 = vmatprep.mubr.f32.mxu0 0.0
        %1109 = vmatmul.mubr.f32.gmra.mxu0 %v380
        %v1110 = vpop.f32.mrf.mxu0
        %v1111 = vadd.f32 0.0, %v1110
        %v1112 = vpop.f32.mrf.mxu0
        %1113 = vmatprep.mubr.f32.mxu0 0.0
        %1114 = vmatmul.mubr.f32.gmra.mxu0 %v381
        %v1115 = vpop.f32.mrf.mxu0
        %v1116 = vadd.f32 0.0, %v1115
        %v1117 = vpop.f32.mrf.mxu0
        %1118 = vmatprep.mubr.f32.mxu0 0.0
        %1119 = vmatmul.mubr.f32.gmra.mxu0 %v382
        %v1120 = vpop.f32.mrf.mxu0
        %v1121 = vadd.f32 0.0, %v1120
        %v1122 = vpop.f32.mrf.mxu0
        %1123 = vmatprep.mubr.f32.mxu0 0.0
        %1124 = vmatmul.mubr.f32.gmra.mxu0 %v383
        %v1125 = vpop.f32.mrf.mxu0
        %v1126 = vadd.f32 0.0, %v1125
        %v1127 = vpop.f32.mrf.mxu0
        %1128 = vmatprep.mubr.f32.mxu0 0.0
        %1129 = vmatmul.mubr.f32.gmra.mxu0 %v384
        %v1130 = vpop.f32.mrf.mxu0
        %v1131 = vadd.f32 0.0, %v1130
        %v1132 = vpop.f32.mrf.mxu0
        %1133 = vmatprep.mubr.f32.mxu0 0.0
        %1134 = vmatmul.mubr.f32.gmra.mxu0 %v385
        %v1135 = vpop.f32.mrf.mxu0
        %v1136 = vadd.f32 0.0, %v1135
        %v1137 = vpop.f32.mrf.mxu0
        %1138 = vmatprep.mubr.f32.mxu0 0.0
        %1139 = vmatmul.mubr.f32.gmra.mxu0 %v386
        %v1140 = vpop.f32.mrf.mxu0
        %v1141 = vadd.f32 0.0, %v1140
        %v1142 = vpop.f32.mrf.mxu0
        %1143 = vmatprep.mubr.f32.mxu0 0.0
        %1144 = vmatmul.mubr.f32.gmra.mxu0 %v387
        %v1145 = vpop.f32.mrf.mxu0
        %v1146 = vadd.f32 0.0, %v1145
        %v1147 = vpop.f32.mrf.mxu0
        %1148 = vmatprep.mubr.f32.mxu0 0.0
        %1149 = vmatmul.mubr.f32.gmra.mxu0 %v388
        %v1150 = vpop.f32.mrf.mxu0
        %v1151 = vadd.f32 0.0, %v1150
        %v1152 = vpop.f32.mrf.mxu0
        %1153 = vmatprep.mubr.f32.mxu0 0.0
        %1154 = vmatmul.mubr.f32.gmra.mxu0 %v389
        %v1155 = vpop.f32.mrf.mxu0
        %v1156 = vadd.f32 0.0, %v1155
        %v1157 = vpop.f32.mrf.mxu0
        %1158 = vmatprep.mubr.f32.mxu0 0.0
        %1159 = vmatmul.mubr.f32.gmra.mxu0 %v390
        %v1160 = vpop.f32.mrf.mxu0
        %v1161 = vadd.f32 0.0, %v1160
        %v1162 = vpop.f32.mrf.mxu0
        %1163 = vmatprep.mubr.f32.mxu0 0.0
        %1164 = vmatmul.mubr.f32.gmra.mxu0 %v391
        %v1165 = vpop.f32.mrf.mxu0
        %v1166 = vadd.f32 0.0, %v1165
        %v1167 = vpop.f32.mrf.mxu0
        %1168 = vmatprep.mubr.f32.mxu0 0.0
        %1169 = vmatmul.mubr.f32.gmra.mxu0 %v392
        %v1170 = vpop.f32.mrf.mxu0
        %v1171 = vadd.f32 0.0, %v1170
        %v1172 = vpop.f32.mrf.mxu0
        %1173 = vmatprep.mubr.f32.mxu0 0.0
        %1174 = vmatmul.mubr.f32.gmra.mxu0 %v393
        %v1175 = vpop.f32.mrf.mxu0
        %v1176 = vadd.f32 0.0, %v1175
        %v1177 = vpop.f32.mrf.mxu0
        %1178 = vmatprep.mubr.f32.mxu0 0.0
        %1179 = vmatmul.mubr.f32.gmra.mxu0 %v394
        %v1180 = vpop.f32.mrf.mxu0
        %v1181 = vadd.f32 0.0, %v1180
        %v1182 = vpop.f32.mrf.mxu0
        %1183 = vmatprep.mubr.f32.mxu0 0.0
        %1184 = vmatmul.mubr.f32.gmra.mxu0 %v395
        %v1185 = vpop.f32.mrf.mxu0
        %v1186 = vadd.f32 0.0, %v1185
        %v1187 = vpop.f32.mrf.mxu0
        %1188 = vmatprep.mubr.f32.mxu0 0.0
        %1189 = vmatmul.mubr.f32.gmra.mxu0 %v396
        %v1190 = vpop.f32.mrf.mxu0
        %v1191 = vadd.f32 0.0, %v1190
        %v1192 = vpop.f32.mrf.mxu0
        %1193 = vmatprep.mubr.f32.mxu0 0.0
        %1194 = vmatmul.mubr.f32.gmra.mxu0 %v397
        %v1195 = vpop.f32.mrf.mxu0
        %v1196 = vadd.f32 0.0, %v1195
        %v1197 = vpop.f32.mrf.mxu0
        %1198 = vmatprep.mubr.f32.mxu0 0.0
        %1199 = vmatmul.mubr.f32.gmra.mxu0 %v398
        %v1200 = vpop.f32.mrf.mxu0
        %v1201 = vadd.f32 0.0, %v1200
        %v1202 = vpop.f32.mrf.mxu0
        %1203 = vmatprep.mubr.f32.mxu0 0.0
        %1204 = vmatmul.mubr.f32.gmra.mxu0 %v399
        %v1205 = vpop.f32.mrf.mxu0
        %v1206 = vadd.f32 0.0, %v1205
        %v1207 = vpop.f32.mrf.mxu0
        %1208 = vmatprep.mubr.f32.mxu0 0.0
        %1209 = vmatmul.mubr.f32.gmra.mxu0 %v400
        %v1210 = vpop.f32.mrf.mxu0
        %v1211 = vadd.f32 0.0, %v1210
        %v1212 = vpop.f32.mrf.mxu0
        %1213 = vmatprep.mubr.f32.mxu0 0.0
        %1214 = vmatmul.mubr.f32.gmra.mxu0 %v401
        %v1215 = vpop.f32.mrf.mxu0
        %v1216 = vadd.f32 0.0, %v1215
        %v1217 = vpop.f32.mrf.mxu0
        %1218 = vmatprep.mubr.f32.mxu0 0.0
        %1219 = vmatmul.mubr.f32.gmra.mxu0 %v402
        %v1220 = vpop.f32.mrf.mxu0
        %v1221 = vadd.f32 0.0, %v1220
        %v1222 = vpop.f32.mrf.mxu0
        %1223 = vmatprep.mubr.f32.mxu0 0.0
        %1224 = vmatmul.mubr.f32.gmra.mxu0 %v403
        %v1225 = vpop.f32.mrf.mxu0
        %v1226 = vadd.f32 0.0, %v1225
        %v1227 = vpop.f32.mrf.mxu0
        %1228 = vmatprep.mubr.f32.mxu0 0.0
        %1229 = vmatmul.mubr.f32.gmra.mxu0 %v404
        %v1230 = vpop.f32.mrf.mxu0
        %v1231 = vadd.f32 0.0, %v1230
        %v1232 = vpop.f32.mrf.mxu0
        %1233 = vmatprep.mubr.f32.mxu0 0.0
        %1234 = vmatmul.mubr.f32.gmra.mxu0 %v405
        %v1235 = vpop.f32.mrf.mxu0
        %v1236 = vadd.f32 0.0, %v1235
        %v1237 = vpop.f32.mrf.mxu0
        %1238 = vmatprep.mubr.f32.mxu0 0.0
        %1239 = vmatmul.mubr.f32.gmra.mxu0 %v406
        %v1240 = vpop.f32.mrf.mxu0
        %v1241 = vadd.f32 0.0, %v1240
        %v1242 = vpop.f32.mrf.mxu0
        %1243 = vmatprep.mubr.f32.mxu0 0.0
        %1244 = vmatmul.mubr.f32.gmra.mxu0 %v407
        %v1245 = vpop.f32.mrf.mxu0
        %v1246 = vadd.f32 0.0, %v1245
        %v1247 = vpop.f32.mrf.mxu0
        %1248 = vmatprep.mubr.f32.mxu0 0.0
        %1249 = vmatmul.mubr.f32.gmra.mxu0 %v408
        %v1250 = vpop.f32.mrf.mxu0
        %v1251 = vadd.f32 0.0, %v1250
        %v1252 = vpop.f32.mrf.mxu0
        %1253 = vmatprep.mubr.f32.mxu0 0.0
        %1254 = vmatmul.mubr.f32.gmra.mxu0 %v409
        %v1255 = vpop.f32.mrf.mxu0
        %v1256 = vadd.f32 0.0, %v1255
        %v1257 = vpop.f32.mrf.mxu0
        %1258 = vmatprep.mubr.f32.mxu0 0.0
        %1259 = vmatmul.mubr.f32.gmra.mxu0 %v410
        %v1260 = vpop.f32.mrf.mxu0
        %v1261 = vadd.f32 0.0, %v1260
        %v1262 = vpop.f32.mrf.mxu0
        %1263 = vmatprep.mubr.f32.mxu0 0.0
        %1264 = vmatmul.mubr.f32.gmra.mxu0 %v411
        %v1265 = vpop.f32.mrf.mxu0
        %v1266 = vadd.f32 0.0, %v1265
        %v1267 = vpop.f32.mrf.mxu0
        %1268 = vmatprep.mubr.f32.mxu0 0.0
        %1269 = vmatmul.mubr.f32.gmra.mxu0 %v412
        %v1270 = vpop.f32.mrf.mxu0
        %v1271 = vadd.f32 0.0, %v1270
        %v1272 = vpop.f32.mrf.mxu0
        %1273 = vmatprep.mubr.f32.mxu0 0.0
        %1274 = vmatmul.mubr.f32.gmra.mxu0 %v413
        %v1275 = vpop.f32.mrf.mxu0
        %v1276 = vadd.f32 0.0, %v1275
        %v1277 = vpop.f32.mrf.mxu0
        %1278 = vmatprep.mubr.f32.mxu0 0.0
        %1279 = vmatmul.mubr.f32.gmra.mxu0 %v414
        %v1280 = vpop.f32.mrf.mxu0
        %v1281 = vadd.f32 0.0, %v1280
        %v1282 = vpop.f32.mrf.mxu0
        %1283 = vmatprep.mubr.f32.mxu0 0.0
        %1284 = vmatmul.mubr.f32.gmra.mxu0 %v415
        %v1285 = vpop.f32.mrf.mxu0
        %v1286 = vadd.f32 0.0, %v1285
        %v1287 = vpop.f32.mrf.mxu0
        %1288 = vmatprep.mubr.f32.mxu0 0.0
        %1289 = vmatmul.mubr.f32.gmra.mxu0 %v416
        %v1290 = vpop.f32.mrf.mxu0
        %v1291 = vadd.f32 0.0, %v1290
        %v1292 = vpop.f32.mrf.mxu0
        %1293 = vmatprep.mubr.f32.mxu0 0.0
        %1294 = vmatmul.mubr.f32.gmra.mxu0 %v417
        %v1295 = vpop.f32.mrf.mxu0
        %v1296 = vadd.f32 0.0, %v1295
        %v1297 = vpop.f32.mrf.mxu0
        %1298 = vmatprep.mubr.f32.mxu0 0.0
        %1299 = vmatmul.mubr.f32.gmra.mxu0 %v418
        %v1300 = vpop.f32.mrf.mxu0
        %v1301 = vadd.f32 0.0, %v1300
        %v1302 = vpop.f32.mrf.mxu0
        %1303 = vmatprep.mubr.f32.mxu0 0.0
        %1304 = vmatmul.mubr.f32.gmra.mxu0 %v419
        %v1305 = vpop.f32.mrf.mxu0
        %v1306 = vadd.f32 0.0, %v1305
        %v1307 = vpop.f32.mrf.mxu0
        %1308 = vmatprep.mubr.f32.mxu0 0.0
        %1309 = vmatmul.mubr.f32.gmra.mxu0 %v420
        %v1310 = vpop.f32.mrf.mxu0
        %v1311 = vadd.f32 0.0, %v1310
        %v1312 = vpop.f32.mrf.mxu0
        %1313 = vmatprep.mubr.f32.mxu0 0.0
        %1314 = vmatmul.mubr.f32.gmra.mxu0 %v421
        %v1315 = vpop.f32.mrf.mxu0
        %v1316 = vadd.f32 0.0, %v1315
        %v1317 = vpop.f32.mrf.mxu0
        %1318 = vmatprep.mubr.f32.mxu0 0.0
        %1319 = vmatmul.mubr.f32.gmra.mxu0 %v422
        %v1320 = vpop.f32.mrf.mxu0
        %v1321 = vadd.f32 0.0, %v1320
        %v1322 = vpop.f32.mrf.mxu0
        %1323 = vmatprep.mubr.f32.mxu0 0.0
        %1324 = vmatmul.mubr.f32.gmra.mxu0 %v423
        %v1325 = vpop.f32.mrf.mxu0
        %v1326 = vadd.f32 0.0, %v1325
        %v1327 = vpop.f32.mrf.mxu0
        %1328 = vmatprep.mubr.f32.mxu0 0.0
        %1329 = vmatmul.mubr.f32.gmra.mxu0 %v424
        %v1330 = vpop.f32.mrf.mxu0
        %v1331 = vadd.f32 0.0, %v1330
        %v1332 = vpop.f32.mrf.mxu0
        %1333 = vmatprep.mubr.f32.mxu0 0.0
        %1334 = vmatmul.mubr.f32.gmra.mxu0 %v425
        %v1335 = vpop.f32.mrf.mxu0
        %v1336 = vadd.f32 0.0, %v1335
        %v1337 = vpop.f32.mrf.mxu0
        %1338 = vmatprep.mubr.f32.mxu0 0.0
        %1339 = vmatmul.mubr.f32.gmra.mxu0 %v426
        %v1340 = vpop.f32.mrf.mxu0
        %v1341 = vadd.f32 0.0, %v1340
        %v1342 = vpop.f32.mrf.mxu0
        %1343 = vmatprep.mubr.f32.mxu0 0.0
        %1344 = vmatmul.mubr.f32.gmra.mxu0 %v427
        %v1345 = vpop.f32.mrf.mxu0
        %v1346 = vadd.f32 0.0, %v1345
        %v1347 = vpop.f32.mrf.mxu0
        %1348 = vmatprep.mubr.f32.mxu0 0.0
        %1349 = vmatmul.mubr.f32.gmra.mxu0 %v428
        %v1350 = vpop.f32.mrf.mxu0
        %v1351 = vadd.f32 0.0, %v1350
        %v1352 = vpop.f32.mrf.mxu0
        %1353 = vmatprep.mubr.f32.mxu0 0.0
        %1354 = vmatmul.mubr.f32.gmra.mxu0 %v429
        %v1355 = vpop.f32.mrf.mxu0
        %v1356 = vadd.f32 0.0, %v1355
        %v1357 = vpop.f32.mrf.mxu0
        %1358 = vmatprep.mubr.f32.mxu0 0.0
        %1359 = vmatmul.mubr.f32.gmra.mxu0 %v430
        %v1360 = vpop.f32.mrf.mxu0
        %v1361 = vadd.f32 0.0, %v1360
        %v1362 = vpop.f32.mrf.mxu0
        %1363 = vmatprep.mubr.f32.mxu0 0.0
        %1364 = vmatmul.mubr.f32.gmra.mxu0 %v431
        %v1365 = vpop.f32.mrf.mxu0
        %v1366 = vadd.f32 0.0, %v1365
        %v1367 = vpop.f32.mrf.mxu0
        %1368 = vmatprep.mubr.f32.mxu0 0.0
        %1369 = vmatmul.mubr.f32.gmra.mxu0 %v432
        %v1370 = vpop.f32.mrf.mxu0
        %v1371 = vadd.f32 0.0, %v1370
        %v1372 = vpop.f32.mrf.mxu0
        %1373 = vmatprep.mubr.f32.mxu0 0.0
        %1374 = vmatmul.mubr.f32.gmra.mxu0 %v433
        %v1375 = vpop.f32.mrf.mxu0
        %v1376 = vadd.f32 0.0, %v1375
        %v1377 = vpop.f32.mrf.mxu0
        %1378 = vmatprep.mubr.f32.mxu0 0.0
        %1379 = vmatmul.mubr.f32.gmra.mxu0 %v434
        %v1380 = vpop.f32.mrf.mxu0
        %v1381 = vadd.f32 0.0, %v1380
        %v1382 = vpop.f32.mrf.mxu0
        %1383 = vmatprep.mubr.f32.mxu0 0.0
        %1384 = vmatmul.mubr.f32.gmra.mxu0 %v435
        %v1385 = vpop.f32.mrf.mxu0
        %v1386 = vadd.f32 0.0, %v1385
        %v1387 = vpop.f32.mrf.mxu0
        %1388 = vmatprep.mubr.f32.mxu0 0.0
        %1389 = vmatmul.mubr.f32.gmra.mxu0 %v436
        %v1390 = vpop.f32.mrf.mxu0
        %v1391 = vadd.f32 0.0, %v1390
        %v1392 = vpop.f32.mrf.mxu0
        %1393 = vmatprep.mubr.f32.mxu0 0.0
        %1394 = vmatmul.mubr.f32.gmra.mxu0 %v437
        %v1395 = vpop.f32.mrf.mxu0
        %v1396 = vadd.f32 0.0, %v1395
        %v1397 = vpop.f32.mrf.mxu0
        %1398 = vmatprep.mubr.f32.mxu0 0.0
        %1399 = vmatmul.mubr.f32.gmra.mxu0 %v438
        %v1400 = vpop.f32.mrf.mxu0
        %v1401 = vadd.f32 0.0, %v1400
        %v1402 = vpop.f32.mrf.mxu0
        %1403 = vmatprep.mubr.f32.mxu0 0.0
        %1404 = vmatmul.mubr.f32.gmra.mxu0 %v439
        %v1405 = vpop.f32.mrf.mxu0
        %v1406 = vadd.f32 0.0, %v1405
        %v1407 = vpop.f32.mrf.mxu0
        %1408 = vmatprep.mubr.f32.mxu0 0.0
        %1409 = vmatmul.mubr.f32.gmra.mxu0 %v440
        %v1410 = vpop.f32.mrf.mxu0
        %v1411 = vadd.f32 0.0, %v1410
        %v1412 = vpop.f32.mrf.mxu0
        %1413 = vmatprep.mubr.f32.mxu0 0.0
        %1414 = vmatmul.mubr.f32.gmra.mxu0 %v441
        %v1415 = vpop.f32.mrf.mxu0
        %v1416 = vadd.f32 0.0, %v1415
        %v1417 = vpop.f32.mrf.mxu0
        %1418 = vmatprep.mubr.f32.mxu0 0.0
        %1419 = vmatmul.mubr.f32.gmra.mxu0 %v442
        %v1420 = vpop.f32.mrf.mxu0
        %v1421 = vadd.f32 0.0, %v1420
        %v1422 = vpop.f32.mrf.mxu0
        %1423 = vmatprep.mubr.f32.mxu0 0.0
        %1424 = vmatmul.mubr.f32.gmra.mxu0 %v443
        %v1425 = vpop.f32.mrf.mxu0
        %v1426 = vadd.f32 0.0, %v1425
        %v1427 = vpop.f32.mrf.mxu0
        %1428 = vmatprep.mubr.f32.mxu0 0.0
        %1429 = vmatmul.mubr.f32.gmra.mxu0 %v444
        %v1430 = vpop.f32.mrf.mxu0
        %v1431 = vadd.f32 0.0, %v1430
        %v1432 = vpop.f32.mrf.mxu0
        %1433 = vmatprep.mubr.f32.mxu0 0.0
        %1434 = vmatmul.mubr.f32.gmra.mxu0 %v445
        %v1435 = vpop.f32.mrf.mxu0
        %v1436 = vadd.f32 0.0, %v1435
        %v1437 = vpop.f32.mrf.mxu0
        %1438 = vmatprep.mubr.f32.mxu0 0.0
        %1439 = vmatmul.mubr.f32.gmra.mxu0 %v446
        %v1440 = vpop.f32.mrf.mxu0
        %v1441 = vadd.f32 0.0, %v1440
        %v1442 = vpop.f32.mrf.mxu0
        %1443 = vmatprep.mubr.f32.mxu0 0.0
        %1444 = vmatmul.mubr.f32.gmra.mxu0 %v447
        %v1445 = vpop.f32.mrf.mxu0
        %v1446 = vadd.f32 0.0, %v1445
        %v1447 = vpop.f32.mrf.mxu0
        %1448 = vmatprep.mubr.f32.mxu0 0.0
        %1449 = vmatmul.mubr.f32.gmra.mxu0 %v448
        %v1450 = vpop.f32.mrf.mxu0
        %v1451 = vadd.f32 0.0, %v1450
        %v1452 = vpop.f32.mrf.mxu0
        %1453 = vmatprep.mubr.f32.mxu0 0.0
        %1454 = vmatmul.mubr.f32.gmra.mxu0 %v449
        %v1455 = vpop.f32.mrf.mxu0
        %v1456 = vadd.f32 0.0, %v1455
        %v1457 = vpop.f32.mrf.mxu0
        %1458 = vmatprep.mubr.f32.mxu0 0.0
        %1459 = vmatmul.mubr.f32.gmra.mxu0 %v450
        %v1460 = vpop.f32.mrf.mxu0
        %v1461 = vadd.f32 0.0, %v1460
        %v1462 = vpop.f32.mrf.mxu0
        %1463 = vmatprep.mubr.f32.mxu0 0.0
        %1464 = vmatmul.mubr.f32.gmra.mxu0 %v451
        %v1465 = vpop.f32.mrf.mxu0
        %v1466 = vadd.f32 0.0, %v1465
        %v1467 = vpop.f32.mrf.mxu0
        %1468 = vmatprep.mubr.f32.mxu0 0.0
        %1469 = vmatmul.mubr.f32.gmra.mxu0 %v452
        %v1470 = vpop.f32.mrf.mxu0
        %v1471 = vadd.f32 0.0, %v1470
        %v1472 = vpop.f32.mrf.mxu0
        %1473 = vmatprep.mubr.f32.mxu0 0.0
        %1474 = vmatmul.mubr.f32.gmra.mxu0 %v453
        %v1475 = vpop.f32.mrf.mxu0
        %v1476 = vadd.f32 0.0, %v1475
        %v1477 = vpop.f32.mrf.mxu0
        %1478 = vmatprep.mubr.f32.mxu0 0.0
        %1479 = vmatmul.mubr.f32.gmra.mxu0 %v454
        %v1480 = vpop.f32.mrf.mxu0
        %v1481 = vadd.f32 0.0, %v1480
        %v1482 = vpop.f32.mrf.mxu0
        %1483 = vmatprep.mubr.f32.mxu0 0.0
        %1484 = vmatmul.mubr.f32.gmra.mxu0 %v455
        %v1485 = vpop.f32.mrf.mxu0
        %v1486 = vadd.f32 0.0, %v1485
        %v1487 = vpop.f32.mrf.mxu0
        %1488 = vmatprep.mubr.f32.mxu0 0.0
        %1489 = vmatmul.mubr.f32.gmra.mxu0 %v456
        %v1490 = vpop.f32.mrf.mxu0
        %v1491 = vadd.f32 0.0, %v1490
        %v1492 = vpop.f32.mrf.mxu0
        %1493 = vmatprep.mubr.f32.mxu0 0.0
        %1494 = vmatmul.mubr.f32.gmra.mxu0 %v457
        %v1495 = vpop.f32.mrf.mxu0
        %v1496 = vadd.f32 0.0, %v1495
        %v1497 = vpop.f32.mrf.mxu0
        %1498 = vmatprep.mubr.f32.mxu0 0.0
        %1499 = vmatmul.mubr.f32.gmra.mxu0 %v458
        %v1500 = vpop.f32.mrf.mxu0
        %v1501 = vadd.f32 0.0, %v1500
        %v1502 = vpop.f32.mrf.mxu0
        %1503 = vmatprep.mubr.f32.mxu0 0.0
        %1504 = vmatmul.mubr.f32.gmra.mxu0 %v459
        %v1505 = vpop.f32.mrf.mxu0
        %v1506 = vadd.f32 0.0, %v1505
        %v1507 = vpop.f32.mrf.mxu0
        %1508 = vmatprep.mubr.f32.mxu0 0.0
        %1509 = vmatmul.mubr.f32.gmra.mxu0 %v460
        %v1510 = vpop.f32.mrf.mxu0
        %v1511 = vadd.f32 0.0, %v1510
        %v1512 = vpop.f32.mrf.mxu0
        %1513 = vmatprep.mubr.f32.mxu0 0.0
        %1514 = vmatmul.mubr.f32.gmra.mxu0 %v461
        %v1515 = vpop.f32.mrf.mxu0
        %v1516 = vadd.f32 0.0, %v1515
        %v1517 = vpop.f32.mrf.mxu0
        %1518 = vmatprep.mubr.f32.mxu0 0.0
        %1519 = vmatmul.mubr.f32.gmra.mxu0 %v462
        %v1520 = vpop.f32.mrf.mxu0
        %v1521 = vadd.f32 0.0, %v1520
        %v1522 = vpop.f32.mrf.mxu0
        %1523 = vmatprep.mubr.f32.mxu0 0.0
        %1524 = vmatmul.mubr.f32.gmra.mxu0 %v463
        %v1525 = vpop.f32.mrf.mxu0
        %v1526 = vadd.f32 0.0, %v1525
        %v1527 = vpop.f32.mrf.mxu0
        %1528 = vmatprep.mubr.f32.mxu0 0.0
        %1529 = vmatmul.mubr.f32.gmra.mxu0 %v464
        %v1530 = vpop.f32.mrf.mxu0
        %v1531 = vadd.f32 0.0, %v1530
        %v1532 = vpop.f32.mrf.mxu0
        %1533 = vmatprep.mubr.f32.mxu0 0.0
        %1534 = vmatmul.mubr.f32.gmra.mxu0 %v465
        %v1535 = vpop.f32.mrf.mxu0
        %v1536 = vadd.f32 0.0, %v1535
        %v1537 = vpop.f32.mrf.mxu0
        %1538 = vmatprep.mubr.f32.mxu0 0.0
        %1539 = vmatmul.mubr.f32.gmra.mxu0 %v466
        %v1540 = vpop.f32.mrf.mxu0
        %v1541 = vadd.f32 0.0, %v1540
        %v1542 = vpop.f32.mrf.mxu0
        %1543 = vmatprep.mubr.f32.mxu0 0.0
        %1544 = vmatmul.mubr.f32.gmra.mxu0 %v467
        %v1545 = vpop.f32.mrf.mxu0
        %v1546 = vadd.f32 0.0, %v1545
        %v1547 = vpop.f32.mrf.mxu0
        %1548 = vmatprep.mubr.f32.mxu0 0.0
        %1549 = vmatmul.mubr.f32.gmra.mxu0 %v468
        %v1550 = vpop.f32.mrf.mxu0
        %v1551 = vadd.f32 0.0, %v1550
        %v1552 = vpop.f32.mrf.mxu0
        %1553 = vmatprep.mubr.f32.mxu0 0.0
        %1554 = vmatmul.mubr.f32.gmra.mxu0 %v469
        %v1555 = vpop.f32.mrf.mxu0
        %v1556 = vadd.f32 0.0, %v1555
        %v1557 = vpop.f32.mrf.mxu0
        %1558 = vmatprep.mubr.f32.mxu0 0.0
        %1559 = vmatmul.mubr.f32.gmra.mxu0 %v470
        %v1560 = vpop.f32.mrf.mxu0
        %v1561 = vadd.f32 0.0, %v1560
        %v1562 = vpop.f32.mrf.mxu0
        %1563 = vmatprep.mubr.f32.mxu0 0.0
        %1564 = vmatmul.mubr.f32.gmra.mxu0 %v471
        %v1565 = vpop.f32.mrf.mxu0
        %v1566 = vadd.f32 0.0, %v1565
        %v1567 = vpop.f32.mrf.mxu0
        %1568 = vmatprep.mubr.f32.mxu0 0.0
        %1569 = vmatmul.mubr.f32.gmra.mxu0 %v472
        %v1570 = vpop.f32.mrf.mxu0
        %v1571 = vadd.f32 0.0, %v1570
        %v1572 = vpop.f32.mrf.mxu0
        %1573 = vmatprep.mubr.f32.mxu0 0.0
        %1574 = vmatmul.mubr.f32.gmra.mxu0 %v473
        %v1575 = vpop.f32.mrf.mxu0
        %v1576 = vadd.f32 0.0, %v1575
        %v1577 = vpop.f32.mrf.mxu0
        %1578 = vmatprep.mubr.f32.mxu0 0.0
        %1579 = vmatmul.mubr.f32.gmra.mxu0 %v474
        %v1580 = vpop.f32.mrf.mxu0
        %v1581 = vadd.f32 0.0, %v1580
        %v1582 = vpop.f32.mrf.mxu0
        %1583 = vmatprep.mubr.f32.mxu0 0.0
        %1584 = vmatmul.mubr.f32.gmra.mxu0 %v475
        %v1585 = vpop.f32.mrf.mxu0
        %v1586 = vadd.f32 0.0, %v1585
        %v1587 = vpop.f32.mrf.mxu0
        %1588 = vmatprep.mubr.f32.mxu0 0.0
        %1589 = vmatmul.mubr.f32.gmra.mxu0 %v476
        %v1590 = vpop.f32.mrf.mxu0
        %v1591 = vadd.f32 0.0, %v1590
        %v1592 = vpop.f32.mrf.mxu0
        %1593 = vmatprep.mubr.f32.mxu0 0.0
        %1594 = vmatmul.mubr.f32.gmra.mxu0 %v477
        %v1595 = vpop.f32.mrf.mxu0
        %v1596 = vadd.f32 0.0, %v1595
        %v1597 = vpop.f32.mrf.mxu0
        %1598 = vmatprep.mubr.f32.mxu0 0.0
        %1599 = vmatmul.mubr.f32.gmra.mxu0 %v478
        %v1600 = vpop.f32.mrf.mxu0
        %v1601 = vadd.f32 0.0, %v1600
        %v1602 = vpop.f32.mrf.mxu0
        %1603 = vmatprep.mubr.f32.mxu0 0.0
        %1604 = vmatmul.mubr.f32.gmra.mxu0 %v479
        %v1605 = vpop.f32.mrf.mxu0
        %v1606 = vadd.f32 0.0, %v1605
        %v1607 = vpop.f32.mrf.mxu0
        %1608 = vmatprep.mubr.f32.mxu0 0.0
        %1609 = vmatmul.mubr.f32.gmra.mxu0 %v480
        %v1610 = vpop.f32.mrf.mxu0
        %v1611 = vadd.f32 0.0, %v1610
        %v1612 = vpop.f32.mrf.mxu0
        %1613 = vmatprep.mubr.f32.mxu0 0.0
        %1614 = vmatmul.mubr.f32.gmra.mxu0 %v481
        %v1615 = vpop.f32.mrf.mxu0
        %v1616 = vadd.f32 0.0, %v1615
        %v1617 = vpop.f32.mrf.mxu0
        %1618 = vmatprep.mubr.f32.mxu0 0.0
        %1619 = vmatmul.mubr.f32.gmra.mxu0 %v482
        %v1620 = vpop.f32.mrf.mxu0
        %v1621 = vadd.f32 0.0, %v1620
        %v1622 = vpop.f32.mrf.mxu0
        %1623 = vmatprep.mubr.f32.mxu0 0.0
        %1624 = vmatmul.mubr.f32.gmra.mxu0 %v483
        %v1625 = vpop.f32.mrf.mxu0
        %v1626 = vadd.f32 0.0, %v1625
        %v1627 = vpop.f32.mrf.mxu0
        %1628 = vmatprep.mubr.f32.mxu0 0.0
        %1629 = vmatmul.mubr.f32.gmra.mxu0 %v484
        %v1630 = vpop.f32.mrf.mxu0
        %v1631 = vadd.f32 0.0, %v1630
        %v1632 = vpop.f32.mrf.mxu0
        %1633 = vmatprep.mubr.f32.mxu0 0.0
        %1634 = vmatmul.mubr.f32.gmra.mxu0 %v485
        %v1635 = vpop.f32.mrf.mxu0
        %v1636 = vadd.f32 0.0, %v1635
        %v1637 = vpop.f32.mrf.mxu0
        %1638 = vmatprep.mubr.f32.mxu0 0.0
        %1639 = vmatmul.mubr.f32.gmra.mxu0 %v486
        %v1640 = vpop.f32.mrf.mxu0
        %v1641 = vadd.f32 0.0, %v1640
        %v1642 = vpop.f32.mrf.mxu0
        %1643 = vmatprep.mubr.f32.mxu0 0.0
        %1644 = vmatmul.mubr.f32.gmra.mxu0 %v487
        %v1645 = vpop.f32.mrf.mxu0
        %v1646 = vadd.f32 0.0, %v1645
        %v1647 = vpop.f32.mrf.mxu0
        %1648 = vmatprep.mubr.f32.mxu0 0.0
        %1649 = vmatmul.mubr.f32.gmra.mxu0 %v488
        %v1650 = vpop.f32.mrf.mxu0
        %v1651 = vadd.f32 0.0, %v1650
        %v1652 = vpop.f32.mrf.mxu0
        %1653 = vmatprep.mubr.f32.mxu0 0.0
        %1654 = vmatmul.mubr.f32.gmra.mxu0 %v489
        %v1655 = vpop.f32.mrf.mxu0
        %v1656 = vadd.f32 0.0, %v1655
        %v1657 = vpop.f32.mrf.mxu0
        %1658 = vmatprep.mubr.f32.mxu0 0.0
        %1659 = vmatmul.mubr.f32.gmra.mxu0 %v490
        %v1660 = vpop.f32.mrf.mxu0
        %v1661 = vadd.f32 0.0, %v1660
        %v1662 = vpop.f32.mrf.mxu0
        %1663 = vmatprep.mubr.f32.mxu0 0.0
        %1664 = vmatmul.mubr.f32.gmra.mxu0 %v491
        %v1665 = vpop.f32.mrf.mxu0
        %v1666 = vadd.f32 0.0, %v1665
        %v1667 = vpop.f32.mrf.mxu0
        %1668 = vmatprep.mubr.f32.mxu0 0.0
        %1669 = vmatmul.mubr.f32.gmra.mxu0 %v492
        %v1670 = vpop.f32.mrf.mxu0
        %v1671 = vadd.f32 0.0, %v1670
        %v1672 = vpop.f32.mrf.mxu0
        %1673 = vmatprep.mubr.f32.mxu0 0.0
        %1674 = vmatmul.mubr.f32.gmra.mxu0 %v493
        %v1675 = vpop.f32.mrf.mxu0
        %v1676 = vadd.f32 0.0, %v1675
        %v1677 = vpop.f32.mrf.mxu0
        %1678 = vmatprep.mubr.f32.mxu0 0.0
        %1679 = vmatmul.mubr.f32.gmra.mxu0 %v494
        %v1680 = vpop.f32.mrf.mxu0
        %v1681 = vadd.f32 0.0, %v1680
        %v1682 = vpop.f32.mrf.mxu0
        %1683 = vmatprep.mubr.f32.mxu0 0.0
        %1684 = vmatmul.mubr.f32.gmra.mxu0 %v495
        %v1685 = vpop.f32.mrf.mxu0
        %v1686 = vadd.f32 0.0, %v1685
        %v1687 = vpop.f32.mrf.mxu0
        %1688 = vmatprep.mubr.f32.mxu0 0.0
        %1689 = vmatmul.mubr.f32.gmra.mxu0 %v496
        %v1690 = vpop.f32.mrf.mxu0
        %v1691 = vadd.f32 0.0, %v1690
        %v1692 = vpop.f32.mrf.mxu0
        %1693 = vmatprep.mubr.f32.mxu0 0.0
        %1694 = vmatmul.mubr.f32.gmra.mxu0 %v497
        %v1695 = vpop.f32.mrf.mxu0
        %v1696 = vadd.f32 0.0, %v1695
        %v1697 = vpop.f32.mrf.mxu0
        %1698 = vmatprep.mubr.f32.mxu0 0.0
        %1699 = vmatmul.mubr.f32.gmra.mxu0 %v498
        %v1700 = vpop.f32.mrf.mxu0
        %v1701 = vadd.f32 0.0, %v1700
        %v1702 = vpop.f32.mrf.mxu0
        %1703 = vmatprep.mubr.f32.mxu0 0.0
        %1704 = vmatmul.mubr.f32.gmra.mxu0 %v499
        %v1705 = vpop.f32.mrf.mxu0
        %v1706 = vadd.f32 0.0, %v1705
        %v1707 = vpop.f32.mrf.mxu0
        %1708 = vmatprep.mubr.f32.mxu0 0.0
        %1709 = vmatmul.mubr.f32.gmra.mxu0 %v500
        %v1710 = vpop.f32.mrf.mxu0
        %v1711 = vadd.f32 0.0, %v1710
        %v1712 = vpop.f32.mrf.mxu0
        %1713 = vmatprep.mubr.f32.mxu0 0.0
        %1714 = vmatmul.mubr.f32.gmra.mxu0 %v501
        %v1715 = vpop.f32.mrf.mxu0
        %v1716 = vadd.f32 0.0, %v1715
        %v1717 = vpop.f32.mrf.mxu0
        %1718 = vmatprep.mubr.f32.mxu0 0.0
        %1719 = vmatmul.mubr.f32.gmra.mxu0 %v502
        %v1720 = vpop.f32.mrf.mxu0
        %v1721 = vadd.f32 0.0, %v1720
        %v1722 = vpop.f32.mrf.mxu0
        %1723 = vmatprep.mubr.f32.mxu0 0.0
        %1724 = vmatmul.mubr.f32.gmra.mxu0 %v503
        %v1725 = vpop.f32.mrf.mxu0
        %v1726 = vadd.f32 0.0, %v1725
        %v1727 = vpop.f32.mrf.mxu0
        %1728 = vmatprep.mubr.f32.mxu0 0.0
        %1729 = vmatmul.mubr.f32.gmra.mxu0 %v504
        %v1730 = vpop.f32.mrf.mxu0
        %v1731 = vadd.f32 0.0, %v1730
        %v1732 = vpop.f32.mrf.mxu0
        %1733 = vmatprep.mubr.f32.mxu0 0.0
        %1734 = vmatmul.mubr.f32.gmra.mxu0 %v505
        %v1735 = vpop.f32.mrf.mxu0
        %v1736 = vadd.f32 0.0, %v1735
        %v1737 = vpop.f32.mrf.mxu0
        %1738 = vmatprep.mubr.f32.mxu0 0.0
        %1739 = vmatmul.mubr.f32.gmra.mxu0 %v506
        %v1740 = vpop.f32.mrf.mxu0
        %v1741 = vadd.f32 0.0, %v1740
        %v1742 = vpop.f32.mrf.mxu0
        %1743 = vmatprep.mubr.f32.mxu0 0.0
        %1744 = vmatmul.mubr.f32.gmra.mxu0 %v507
        %v1745 = vpop.f32.mrf.mxu0
        %v1746 = vadd.f32 0.0, %v1745
        %v1747 = vpop.f32.mrf.mxu0
        %1748 = vmatprep.mubr.f32.mxu0 0.0
        %1749 = vmatmul.mubr.f32.gmra.mxu0 %v508
        %v1750 = vpop.f32.mrf.mxu0
        %v1751 = vadd.f32 0.0, %v1750
        %v1752 = vpop.f32.mrf.mxu0
        %1753 = vmatprep.mubr.f32.mxu0 0.0
        %1754 = vmatmul.mubr.f32.gmra.mxu0 %v509
        %v1755 = vpop.f32.mrf.mxu0
        %v1756 = vadd.f32 0.0, %v1755
        %v1757 = vpop.f32.mrf.mxu0
        %1758 = vmatprep.mubr.f32.mxu0 0.0
        %1759 = vmatmul.mubr.f32.gmra.mxu0 %v510
        %v1760 = vpop.f32.mrf.mxu0
        %v1761 = vadd.f32 0.0, %v1760
        %v1762 = vpop.f32.mrf.mxu0
        %1763 = vmatprep.mubr.f32.mxu0 0.0
        %1764 = vmatmul.mubr.f32.gmra.mxu0 %v511
        %v1765 = vpop.f32.mrf.mxu0
        %v1766 = vadd.f32 0.0, %v1765
        %v1767 = vpop.f32.mrf.mxu0
        %1768 = vmatprep.mubr.f32.mxu0 0.0
        %1769 = vmatmul.mubr.f32.gmra.mxu0 %v512
        %v1770 = vpop.f32.mrf.mxu0
        %v1771 = vadd.f32 0.0, %v1770
        %v1772 = vpop.f32.mrf.mxu0
        %1773 = vmatprep.mubr.f32.mxu0 0.0
        %1774 = vmatmul.mubr.f32.gmra.mxu0 %v513
        %v1775 = vpop.f32.mrf.mxu0
        %v1776 = vadd.f32 0.0, %v1775
        %v1777 = vpop.f32.mrf.mxu0
        %1778 = vmatprep.mubr.f32.mxu0 0.0
        %1779 = vmatmul.mubr.f32.gmra.mxu0 %v514
        %v1780 = vpop.f32.mrf.mxu0
        %v1781 = vadd.f32 0.0, %v1780
        %v1782 = vpop.f32.mrf.mxu0
        %1783 = vmatprep.mubr.f32.mxu0 0.0
        %1784 = vmatmul.mubr.f32.gmra.mxu0 %v515
        %v1785 = vpop.f32.mrf.mxu0
        %v1786 = vadd.f32 0.0, %v1785
        %v1787 = vpop.f32.mrf.mxu0
        %1788 = vmatprep.mubr.f32.mxu0 0.0
        %1789 = vmatmul.mubr.f32.gmra.mxu0 %v516
        %v1790 = vpop.f32.mrf.mxu0
        %v1791 = vadd.f32 0.0, %v1790
        %v1792 = vpop.f32.mrf.mxu0
        %1793 = vmatprep.mubr.f32.mxu0 0.0
        %1794 = vmatmul.mubr.f32.gmra.mxu0 %v517
        %v1795 = vpop.f32.mrf.mxu0
        %v1796 = vadd.f32 0.0, %v1795
        %v1797 = vpop.f32.mrf.mxu0
        %1798 = vmatprep.mubr.f32.mxu0 0.0
        %1799 = vmatmul.mubr.f32.gmra.mxu0 %v518
        %v1800 = vpop.f32.mrf.mxu0
        %v1801 = vadd.f32 0.0, %v1800
        %v1802 = vpop.f32.mrf.mxu0
        %1803 = vmatprep.mubr.f32.mxu0 0.0
        %1804 = vmatmul.mubr.f32.gmra.mxu0 %v519
        %v1805 = vpop.f32.mrf.mxu0
        %v1806 = vadd.f32 0.0, %v1805
        %v1807 = vpop.f32.mrf.mxu0
        %1808 = vmatprep.mubr.f32.mxu0 0.0
        %1809 = vmatmul.mubr.f32.gmra.mxu0 %v520
        %v1810 = vpop.f32.mrf.mxu0
        %v1811 = vadd.f32 0.0, %v1810
        %v1812 = vpop.f32.mrf.mxu0
        %1813 = vmatprep.mubr.f32.mxu0 0.0
        %1814 = vmatmul.mubr.f32.gmra.mxu0 %v521
        %v1815 = vpop.f32.mrf.mxu0
        %v1816 = vadd.f32 0.0, %v1815
        %v1817 = vpop.f32.mrf.mxu0
        %1818 = vmatprep.mubr.f32.mxu0 0.0
        %1819 = vmatmul.mubr.f32.gmra.mxu0 %v522
        %v1820 = vpop.f32.mrf.mxu0
        %v1821 = vadd.f32 0.0, %v1820
        %v1822 = vpop.f32.mrf.mxu0
        %1823 = vmatprep.mubr.f32.mxu0 0.0
        %1824 = vmatmul.mubr.f32.gmra.mxu0 %v523
        %v1825 = vpop.f32.mrf.mxu0
        %v1826 = vadd.f32 0.0, %v1825
        %v1827 = vpop.f32.mrf.mxu0
        %1828 = vmatprep.mubr.f32.mxu0 0.0
        %1829 = vmatmul.mubr.f32.gmra.mxu0 %v524
        %v1830 = vpop.f32.mrf.mxu0
        %v1831 = vadd.f32 0.0, %v1830
        %v1832 = vpop.f32.mrf.mxu0
        %1833 = vmatprep.mubr.f32.mxu0 0.0
        %1834 = vmatmul.mubr.f32.gmra.mxu0 %v525
        %v1835 = vpop.f32.mrf.mxu0
        %v1836 = vadd.f32 0.0, %v1835
        %v1837 = vpop.f32.mrf.mxu0
        %1838 = vmatprep.mubr.f32.mxu0 0.0
        %1839 = vmatmul.mubr.f32.gmra.mxu0 %v526
        %v1840 = vpop.f32.mrf.mxu0
        %v1841 = vadd.f32 0.0, %v1840
        %v1842 = vpop.f32.mrf.mxu0
        %1843 = vmatprep.mubr.f32.mxu0 0.0
        %1844 = vmatmul.mubr.f32.gmra.mxu0 %v527
        %v1845 = vpop.f32.mrf.mxu0
        %v1846 = vadd.f32 0.0, %v1845
        %v1847 = vpop.f32.mrf.mxu0
        %1848 = vmatprep.mubr.f32.mxu0 0.0
        %1849 = vmatmul.mubr.f32.gmra.mxu0 %v528
        %v1850 = vpop.f32.mrf.mxu0
        %v1851 = vadd.f32 0.0, %v1850
        %v1852 = vpop.f32.mrf.mxu0
        %1853 = vmatprep.mubr.f32.mxu0 0.0
        %1854 = vmatmul.mubr.f32.gmra.mxu0 %v529
        %v1855 = vpop.f32.mrf.mxu0
        %v1856 = vadd.f32 0.0, %v1855
        %v1857 = vpop.f32.mrf.mxu0
        %1858 = vmatprep.mubr.f32.mxu0 0.0
        %1859 = vmatmul.mubr.f32.gmra.mxu0 %v530
        %v1860 = vpop.f32.mrf.mxu0
        %v1861 = vadd.f32 0.0, %v1860
        %v1862 = vpop.f32.mrf.mxu0
        %1863 = vmatprep.mubr.f32.mxu0 0.0
        %1864 = vmatmul.mubr.f32.gmra.mxu0 %v531
        %v1865 = vpop.f32.mrf.mxu0
        %v1866 = vadd.f32 0.0, %v1865
        %v1867 = vpop.f32.mrf.mxu0
        %1868 = vmatprep.mubr.f32.mxu0 0.0
        %1869 = vmatmul.mubr.f32.gmra.mxu0 %v532
        %v1870 = vpop.f32.mrf.mxu0
        %v1871 = vadd.f32 0.0, %v1870
        %v1872 = vpop.f32.mrf.mxu0
        %1873 = vmatprep.mubr.f32.mxu0 0.0
        %1874 = vmatmul.mubr.f32.gmra.mxu0 %v533
        %v1875 = vpop.f32.mrf.mxu0
        %v1876 = vadd.f32 0.0, %v1875
        %v1877 = vpop.f32.mrf.mxu0
        %1878 = vmatprep.mubr.f32.mxu0 0.0
        %1879 = vmatmul.mubr.f32.gmra.mxu0 %v534
        %v1880 = vpop.f32.mrf.mxu0
        %v1881 = vadd.f32 0.0, %v1880
        %v1882 = vpop.f32.mrf.mxu0
        %1883 = vmatprep.mubr.f32.mxu0 0.0
        %1884 = vmatmul.mubr.f32.gmra.mxu0 %v535
        %v1885 = vpop.f32.mrf.mxu0
        %v1886 = vadd.f32 0.0, %v1885
        %v1887 = vpop.f32.mrf.mxu0
        %1888 = vmatprep.mubr.f32.mxu0 0.0
        %1889 = vmatmul.mubr.f32.gmra.mxu0 %v536
        %v1890 = vpop.f32.mrf.mxu0
        %v1891 = vadd.f32 0.0, %v1890
        %v1892 = vpop.f32.mrf.mxu0
        %1893 = vmatprep.mubr.f32.mxu0 0.0
        %1894 = vmatmul.mubr.f32.gmra.mxu0 %v537
        %v1895 = vpop.f32.mrf.mxu0
        %v1896 = vadd.f32 0.0, %v1895
        %v1897 = vpop.f32.mrf.mxu0
        %1898 = vdwg.mxu0
        %v1899 = vld [vmem:[%s238] sm:$0xff]
        %v1900 = vadd.f32 %v621, %v1899
        %v1901 = vadd.f32 %v626, %v1899
        %v1902 = vadd.f32 %v631, %v1899
        %v1903 = vadd.f32 %v636, %v1899
        %v1904 = vadd.f32 %v641, %v1899
        %v1905 = vadd.f32 %v646, %v1899
        %v1906 = vadd.f32 %v651, %v1899
        %v1907 = vadd.f32 %v656, %v1899
        %v1908 = vadd.f32 %v661, %v1899
        %v1909 = vadd.f32 %v666, %v1899
        %v1910 = vadd.f32 %v671, %v1899
        %v1911 = vadd.f32 %v676, %v1899
        %v1912 = vadd.f32 %v681, %v1899
        %v1913 = vadd.f32 %v686, %v1899
        %v1914 = vadd.f32 %v691, %v1899
        %v1915 = vadd.f32 %v696, %v1899
        %v1916 = vadd.f32 %v701, %v1899
        %v1917 = vadd.f32 %v706, %v1899
        %v1918 = vadd.f32 %v711, %v1899
        %v1919 = vadd.f32 %v716, %v1899
        %v1920 = vadd.f32 %v721, %v1899
        %v1921 = vadd.f32 %v726, %v1899
        %v1922 = vadd.f32 %v731, %v1899
        %v1923 = vadd.f32 %v736, %v1899
        %v1924 = vadd.f32 %v741, %v1899
        %v1925 = vadd.f32 %v746, %v1899
        %v1926 = vadd.f32 %v751, %v1899
        %v1927 = vadd.f32 %v756, %v1899
        %v1928 = vadd.f32 %v761, %v1899
        %v1929 = vadd.f32 %v766, %v1899
        %v1930 = vadd.f32 %v771, %v1899
        %v1931 = vadd.f32 %v776, %v1899
        %v1932 = vadd.f32 %v781, %v1899
        %v1933 = vadd.f32 %v786, %v1899
        %v1934 = vadd.f32 %v791, %v1899
        %v1935 = vadd.f32 %v796, %v1899
        %v1936 = vadd.f32 %v801, %v1899
        %v1937 = vadd.f32 %v806, %v1899
        %v1938 = vadd.f32 %v811, %v1899
        %v1939 = vadd.f32 %v816, %v1899
        %v1940 = vadd.f32 %v821, %v1899
        %v1941 = vadd.f32 %v826, %v1899
        %v1942 = vadd.f32 %v831, %v1899
        %v1943 = vadd.f32 %v836, %v1899
        %v1944 = vadd.f32 %v841, %v1899
        %v1945 = vadd.f32 %v846, %v1899
        %v1946 = vadd.f32 %v851, %v1899
        %v1947 = vadd.f32 %v856, %v1899
        %v1948 = vadd.f32 %v861, %v1899
        %v1949 = vadd.f32 %v866, %v1899
        %v1950 = vadd.f32 %v871, %v1899
        %v1951 = vadd.f32 %v876, %v1899
        %v1952 = vadd.f32 %v881, %v1899
        %v1953 = vadd.f32 %v886, %v1899
        %v1954 = vadd.f32 %v891, %v1899
        %v1955 = vadd.f32 %v896, %v1899
        %v1956 = vadd.f32 %v901, %v1899
        %v1957 = vadd.f32 %v906, %v1899
        %v1958 = vadd.f32 %v911, %v1899
        %v1959 = vadd.f32 %v916, %v1899
        %v1960 = vadd.f32 %v921, %v1899
        %v1961 = vadd.f32 %v926, %v1899
        %v1962 = vadd.f32 %v931, %v1899
        %v1963 = vadd.f32 %v936, %v1899
        %v1964 = vadd.f32 %v941, %v1899
        %v1965 = vadd.f32 %v946, %v1899
        %v1966 = vadd.f32 %v951, %v1899
        %v1967 = vadd.f32 %v956, %v1899
        %v1968 = vadd.f32 %v961, %v1899
        %v1969 = vadd.f32 %v966, %v1899
        %v1970 = vadd.f32 %v971, %v1899
        %v1971 = vadd.f32 %v976, %v1899
        %v1972 = vadd.f32 %v981, %v1899
        %v1973 = vadd.f32 %v986, %v1899
        %v1974 = vadd.f32 %v991, %v1899
        %v1975 = vadd.f32 %v996, %v1899
        %v1976 = vadd.f32 %v1001, %v1899
        %v1977 = vadd.f32 %v1006, %v1899
        %v1978 = vadd.f32 %v1011, %v1899
        %v1979 = vadd.f32 %v1016, %v1899
        %v1980 = vadd.f32 %v1021, %v1899
        %v1981 = vadd.f32 %v1026, %v1899
        %v1982 = vadd.f32 %v1031, %v1899
        %v1983 = vadd.f32 %v1036, %v1899
        %v1984 = vadd.f32 %v1041, %v1899
        %v1985 = vadd.f32 %v1046, %v1899
        %v1986 = vadd.f32 %v1051, %v1899
        %v1987 = vadd.f32 %v1056, %v1899
        %v1988 = vadd.f32 %v1061, %v1899
        %v1989 = vadd.f32 %v1066, %v1899
        %v1990 = vadd.f32 %v1071, %v1899
        %v1991 = vadd.f32 %v1076, %v1899
        %v1992 = vadd.f32 %v1081, %v1899
        %v1993 = vadd.f32 %v1086, %v1899
        %v1994 = vadd.f32 %v1091, %v1899
        %v1995 = vadd.f32 %v1096, %v1899
        %v1996 = vadd.f32 %v1101, %v1899
        %v1997 = vadd.f32 %v1106, %v1899
        %v1998 = vadd.f32 %v1111, %v1899
        %v1999 = vadd.f32 %v1116, %v1899
        %v2000 = vadd.f32 %v1121, %v1899
        %v2001 = vadd.f32 %v1126, %v1899
        %v2002 = vadd.f32 %v1131, %v1899
        %v2003 = vadd.f32 %v1136, %v1899
        %v2004 = vadd.f32 %v1141, %v1899
        %v2005 = vadd.f32 %v1146, %v1899
        %v2006 = vadd.f32 %v1151, %v1899
        %v2007 = vadd.f32 %v1156, %v1899
        %v2008 = vadd.f32 %v1161, %v1899
        %v2009 = vadd.f32 %v1166, %v1899
        %v2010 = vadd.f32 %v1171, %v1899
        %v2011 = vadd.f32 %v1176, %v1899
        %v2012 = vadd.f32 %v1181, %v1899
        %v2013 = vadd.f32 %v1186, %v1899
        %v2014 = vadd.f32 %v1191, %v1899
        %v2015 = vadd.f32 %v1196, %v1899
        %v2016 = vadd.f32 %v1201, %v1899
        %v2017 = vadd.f32 %v1206, %v1899
        %v2018 = vadd.f32 %v1211, %v1899
        %v2019 = vadd.f32 %v1216, %v1899
        %v2020 = vadd.f32 %v1221, %v1899
        %v2021 = vadd.f32 %v1226, %v1899
        %v2022 = vadd.f32 %v1231, %v1899
        %v2023 = vadd.f32 %v1236, %v1899
        %v2024 = vadd.f32 %v1241, %v1899
        %v2025 = vadd.f32 %v1246, %v1899
        %v2026 = vadd.f32 %v1251, %v1899
        %v2027 = vadd.f32 %v1256, %v1899
        %v2028 = vadd.f32 %v1261, %v1899
        %v2029 = vadd.f32 %v1266, %v1899
        %v2030 = vadd.f32 %v1271, %v1899
        %v2031 = vadd.f32 %v1276, %v1899
        %v2032 = vadd.f32 %v1281, %v1899
        %v2033 = vadd.f32 %v1286, %v1899
        %v2034 = vadd.f32 %v1291, %v1899
        %v2035 = vadd.f32 %v1296, %v1899
        %v2036 = vadd.f32 %v1301, %v1899
        %v2037 = vadd.f32 %v1306, %v1899
        %v2038 = vadd.f32 %v1311, %v1899
        %v2039 = vadd.f32 %v1316, %v1899
        %v2040 = vadd.f32 %v1321, %v1899
        %v2041 = vadd.f32 %v1326, %v1899
        %v2042 = vadd.f32 %v1331, %v1899
        %v2043 = vadd.f32 %v1336, %v1899
        %v2044 = vadd.f32 %v1341, %v1899
        %v2045 = vadd.f32 %v1346, %v1899
        %v2046 = vadd.f32 %v1351, %v1899
        %v2047 = vadd.f32 %v1356, %v1899
        %v2048 = vadd.f32 %v1361, %v1899
        %v2049 = vadd.f32 %v1366, %v1899
        %v2050 = vadd.f32 %v1371, %v1899
        %v2051 = vadd.f32 %v1376, %v1899
        %v2052 = vadd.f32 %v1381, %v1899
        %v2053 = vadd.f32 %v1386, %v1899
        %v2054 = vadd.f32 %v1391, %v1899
        %v2055 = vadd.f32 %v1396, %v1899
        %v2056 = vadd.f32 %v1401, %v1899
        %v2057 = vadd.f32 %v1406, %v1899
        %v2058 = vadd.f32 %v1411, %v1899
        %v2059 = vadd.f32 %v1416, %v1899
        %v2060 = vadd.f32 %v1421, %v1899
        %v2061 = vadd.f32 %v1426, %v1899
        %v2062 = vadd.f32 %v1431, %v1899
        %v2063 = vadd.f32 %v1436, %v1899
        %v2064 = vadd.f32 %v1441, %v1899
        %v2065 = vadd.f32 %v1446, %v1899
        %v2066 = vadd.f32 %v1451, %v1899
        %v2067 = vadd.f32 %v1456, %v1899
        %v2068 = vadd.f32 %v1461, %v1899
        %v2069 = vadd.f32 %v1466, %v1899
        %v2070 = vadd.f32 %v1471, %v1899
        %v2071 = vadd.f32 %v1476, %v1899
        %v2072 = vadd.f32 %v1481, %v1899
        %v2073 = vadd.f32 %v1486, %v1899
        %v2074 = vadd.f32 %v1491, %v1899
        %v2075 = vadd.f32 %v1496, %v1899
        %v2076 = vadd.f32 %v1501, %v1899
        %v2077 = vadd.f32 %v1506, %v1899
        %v2078 = vadd.f32 %v1511, %v1899
        %v2079 = vadd.f32 %v1516, %v1899
        %v2080 = vadd.f32 %v1521, %v1899
        %v2081 = vadd.f32 %v1526, %v1899
        %v2082 = vadd.f32 %v1531, %v1899
        %v2083 = vadd.f32 %v1536, %v1899
        %v2084 = vadd.f32 %v1541, %v1899
        %v2085 = vadd.f32 %v1546, %v1899
        %v2086 = vadd.f32 %v1551, %v1899
        %v2087 = vadd.f32 %v1556, %v1899
        %v2088 = vadd.f32 %v1561, %v1899
        %v2089 = vadd.f32 %v1566, %v1899
        %v2090 = vadd.f32 %v1571, %v1899
        %v2091 = vadd.f32 %v1576, %v1899
        %v2092 = vadd.f32 %v1581, %v1899
        %v2093 = vadd.f32 %v1586, %v1899
        %v2094 = vadd.f32 %v1591, %v1899
        %v2095 = vadd.f32 %v1596, %v1899
        %v2096 = vadd.f32 %v1601, %v1899
        %v2097 = vadd.f32 %v1606, %v1899
        %v2098 = vadd.f32 %v1611, %v1899
        %v2099 = vadd.f32 %v1616, %v1899
        %v2100 = vadd.f32 %v1621, %v1899
        %v2101 = vadd.f32 %v1626, %v1899
        %v2102 = vadd.f32 %v1631, %v1899
        %v2103 = vadd.f32 %v1636, %v1899
        %v2104 = vadd.f32 %v1641, %v1899
        %v2105 = vadd.f32 %v1646, %v1899
        %v2106 = vadd.f32 %v1651, %v1899
        %v2107 = vadd.f32 %v1656, %v1899
        %v2108 = vadd.f32 %v1661, %v1899
        %v2109 = vadd.f32 %v1666, %v1899
        %v2110 = vadd.f32 %v1671, %v1899
        %v2111 = vadd.f32 %v1676, %v1899
        %v2112 = vadd.f32 %v1681, %v1899
        %v2113 = vadd.f32 %v1686, %v1899
        %v2114 = vadd.f32 %v1691, %v1899
        %v2115 = vadd.f32 %v1696, %v1899
        %v2116 = vadd.f32 %v1701, %v1899
        %v2117 = vadd.f32 %v1706, %v1899
        %v2118 = vadd.f32 %v1711, %v1899
        %v2119 = vadd.f32 %v1716, %v1899
        %v2120 = vadd.f32 %v1721, %v1899
        %v2121 = vadd.f32 %v1726, %v1899
        %v2122 = vadd.f32 %v1731, %v1899
        %v2123 = vadd.f32 %v1736, %v1899
        %v2124 = vadd.f32 %v1741, %v1899
        %v2125 = vadd.f32 %v1746, %v1899
        %v2126 = vadd.f32 %v1751, %v1899
        %v2127 = vadd.f32 %v1756, %v1899
        %v2128 = vadd.f32 %v1761, %v1899
        %v2129 = vadd.f32 %v1766, %v1899
        %v2130 = vadd.f32 %v1771, %v1899
        %v2131 = vadd.f32 %v1776, %v1899
        %v2132 = vadd.f32 %v1781, %v1899
        %v2133 = vadd.f32 %v1786, %v1899
        %v2134 = vadd.f32 %v1791, %v1899
        %v2135 = vadd.f32 %v1796, %v1899
        %v2136 = vadd.f32 %v1801, %v1899
        %v2137 = vadd.f32 %v1806, %v1899
        %v2138 = vadd.f32 %v1811, %v1899
        %v2139 = vadd.f32 %v1816, %v1899
        %v2140 = vadd.f32 %v1821, %v1899
        %v2141 = vadd.f32 %v1826, %v1899
        %v2142 = vadd.f32 %v1831, %v1899
        %v2143 = vadd.f32 %v1836, %v1899
        %v2144 = vadd.f32 %v1841, %v1899
        %v2145 = vadd.f32 %v1846, %v1899
        %v2146 = vadd.f32 %v1851, %v1899
        %v2147 = vadd.f32 %v1856, %v1899
        %v2148 = vadd.f32 %v1861, %v1899
        %v2149 = vadd.f32 %v1866, %v1899
        %v2150 = vadd.f32 %v1871, %v1899
        %v2151 = vadd.f32 %v1876, %v1899
        %v2152 = vadd.f32 %v1881, %v1899
        %v2153 = vadd.f32 %v1886, %v1899
        %v2154 = vadd.f32 %v1891, %v1899
        %v2155 = vadd.f32 %v1896, %v1899
        %v2156 = vtanh.pop %v1900
        %v2157 = vtanh.pop %v1901
        %v2158 = vtanh.pop %v1902
        %v2159 = vtanh.pop %v1903
        %v2160 = vtanh.pop %v1904
        %v2161 = vtanh.pop %v1905
        %v2162 = vtanh.pop %v1906
        %v2163 = vtanh.pop %v1907
        %v2164 = vtanh.pop %v1908
        %v2165 = vtanh.pop %v1909
        %v2166 = vtanh.pop %v1910
        %v2167 = vtanh.pop %v1911
        %v2168 = vtanh.pop %v1912
        %v2169 = vtanh.pop %v1913
        %v2170 = vtanh.pop %v1914
        %v2171 = vtanh.pop %v1915
        %v2172 = vtanh.pop %v1916
        %v2173 = vtanh.pop %v1917
        %v2174 = vtanh.pop %v1918
        %v2175 = vtanh.pop %v1919
        %v2176 = vtanh.pop %v1920
        %v2177 = vtanh.pop %v1921
        %v2178 = vtanh.pop %v1922
        %v2179 = vtanh.pop %v1923
        %v2180 = vtanh.pop %v1924
        %v2181 = vtanh.pop %v1925
        %v2182 = vtanh.pop %v1926
        %v2183 = vtanh.pop %v1927
        %v2184 = vtanh.pop %v1928
        %v2185 = vtanh.pop %v1929
        %v2186 = vtanh.pop %v1930
        %v2187 = vtanh.pop %v1931
        %v2188 = vtanh.pop %v1932
        %v2189 = vtanh.pop %v1933
        %v2190 = vtanh.pop %v1934
        %v2191 = vtanh.pop %v1935
        %v2192 = vtanh.pop %v1936
        %v2193 = vtanh.pop %v1937
        %v2194 = vtanh.pop %v1938
        %v2195 = vtanh.pop %v1939
        %v2196 = vtanh.pop %v1940
        %v2197 = vtanh.pop %v1941
        %v2198 = vtanh.pop %v1942
        %v2199 = vtanh.pop %v1943
        %v2200 = vtanh.pop %v1944
        %v2201 = vtanh.pop %v1945
        %v2202 = vtanh.pop %v1946
        %v2203 = vtanh.pop %v1947
        %v2204 = vtanh.pop %v1948
        %v2205 = vtanh.pop %v1949
        %v2206 = vtanh.pop %v1950
        %v2207 = vtanh.pop %v1951
        %v2208 = vtanh.pop %v1952
        %v2209 = vtanh.pop %v1953
        %v2210 = vtanh.pop %v1954
        %v2211 = vtanh.pop %v1955
        %v2212 = vtanh.pop %v1956
        %v2213 = vtanh.pop %v1957
        %v2214 = vtanh.pop %v1958
        %v2215 = vtanh.pop %v1959
        %v2216 = vtanh.pop %v1960
        %v2217 = vtanh.pop %v1961
        %v2218 = vtanh.pop %v1962
        %v2219 = vtanh.pop %v1963
        %v2220 = vtanh.pop %v1964
        %v2221 = vtanh.pop %v1965
        %v2222 = vtanh.pop %v1966
        %v2223 = vtanh.pop %v1967
        %v2224 = vtanh.pop %v1968
        %v2225 = vtanh.pop %v1969
        %v2226 = vtanh.pop %v1970
        %v2227 = vtanh.pop %v1971
        %v2228 = vtanh.pop %v1972
        %v2229 = vtanh.pop %v1973
        %v2230 = vtanh.pop %v1974
        %v2231 = vtanh.pop %v1975
        %v2232 = vtanh.pop %v1976
        %v2233 = vtanh.pop %v1977
        %v2234 = vtanh.pop %v1978
        %v2235 = vtanh.pop %v1979
        %v2236 = vtanh.pop %v1980
        %v2237 = vtanh.pop %v1981
        %v2238 = vtanh.pop %v1982
        %v2239 = vtanh.pop %v1983
        %v2240 = vtanh.pop %v1984
        %v2241 = vtanh.pop %v1985
        %v2242 = vtanh.pop %v1986
        %v2243 = vtanh.pop %v1987
        %v2244 = vtanh.pop %v1988
        %v2245 = vtanh.pop %v1989
        %v2246 = vtanh.pop %v1990
        %v2247 = vtanh.pop %v1991
        %v2248 = vtanh.pop %v1992
        %v2249 = vtanh.pop %v1993
        %v2250 = vtanh.pop %v1994
        %v2251 = vtanh.pop %v1995
        %v2252 = vtanh.pop %v1996
        %v2253 = vtanh.pop %v1997
        %v2254 = vtanh.pop %v1998
        %v2255 = vtanh.pop %v1999
        %v2256 = vtanh.pop %v2000
        %v2257 = vtanh.pop %v2001
        %v2258 = vtanh.pop %v2002
        %v2259 = vtanh.pop %v2003
        %v2260 = vtanh.pop %v2004
        %v2261 = vtanh.pop %v2005
        %v2262 = vtanh.pop %v2006
        %v2263 = vtanh.pop %v2007
        %v2264 = vtanh.pop %v2008
        %v2265 = vtanh.pop %v2009
        %v2266 = vtanh.pop %v2010
        %v2267 = vtanh.pop %v2011
        %v2268 = vtanh.pop %v2012
        %v2269 = vtanh.pop %v2013
        %v2270 = vtanh.pop %v2014
        %v2271 = vtanh.pop %v2015
        %v2272 = vtanh.pop %v2016
        %v2273 = vtanh.pop %v2017
        %v2274 = vtanh.pop %v2018
        %v2275 = vtanh.pop %v2019
        %v2276 = vtanh.pop %v2020
        %v2277 = vtanh.pop %v2021
        %v2278 = vtanh.pop %v2022
        %v2279 = vtanh.pop %v2023
        %v2280 = vtanh.pop %v2024
        %v2281 = vtanh.pop %v2025
        %v2282 = vtanh.pop %v2026
        %v2283 = vtanh.pop %v2027
        %v2284 = vtanh.pop %v2028
        %v2285 = vtanh.pop %v2029
        %v2286 = vtanh.pop %v2030
        %v2287 = vtanh.pop %v2031
        %v2288 = vtanh.pop %v2032
        %v2289 = vtanh.pop %v2033
        %v2290 = vtanh.pop %v2034
        %v2291 = vtanh.pop %v2035
        %v2292 = vtanh.pop %v2036
        %v2293 = vtanh.pop %v2037
        %v2294 = vtanh.pop %v2038
        %v2295 = vtanh.pop %v2039
        %v2296 = vtanh.pop %v2040
        %v2297 = vtanh.pop %v2041
        %v2298 = vtanh.pop %v2042
        %v2299 = vtanh.pop %v2043
        %v2300 = vtanh.pop %v2044
        %v2301 = vtanh.pop %v2045
        %v2302 = vtanh.pop %v2046
        %v2303 = vtanh.pop %v2047
        %v2304 = vtanh.pop %v2048
        %v2305 = vtanh.pop %v2049
        %v2306 = vtanh.pop %v2050
        %v2307 = vtanh.pop %v2051
        %v2308 = vtanh.pop %v2052
        %v2309 = vtanh.pop %v2053
        %v2310 = vtanh.pop %v2054
        %v2311 = vtanh.pop %v2055
        %v2312 = vtanh.pop %v2056
        %v2313 = vtanh.pop %v2057
        %v2314 = vtanh.pop %v2058
        %v2315 = vtanh.pop %v2059
        %v2316 = vtanh.pop %v2060
        %v2317 = vtanh.pop %v2061
        %v2318 = vtanh.pop %v2062
        %v2319 = vtanh.pop %v2063
        %v2320 = vtanh.pop %v2064
        %v2321 = vtanh.pop %v2065
        %v2322 = vtanh.pop %v2066
        %v2323 = vtanh.pop %v2067
        %v2324 = vtanh.pop %v2068
        %v2325 = vtanh.pop %v2069
        %v2326 = vtanh.pop %v2070
        %v2327 = vtanh.pop %v2071
        %v2328 = vtanh.pop %v2072
        %v2329 = vtanh.pop %v2073
        %v2330 = vtanh.pop %v2074
        %v2331 = vtanh.pop %v2075
        %v2332 = vtanh.pop %v2076
        %v2333 = vtanh.pop %v2077
        %v2334 = vtanh.pop %v2078
        %v2335 = vtanh.pop %v2079
        %v2336 = vtanh.pop %v2080
        %v2337 = vtanh.pop %v2081
        %v2338 = vtanh.pop %v2082
        %v2339 = vtanh.pop %v2083
        %v2340 = vtanh.pop %v2084
        %v2341 = vtanh.pop %v2085
        %v2342 = vtanh.pop %v2086
        %v2343 = vtanh.pop %v2087
        %v2344 = vtanh.pop %v2088
        %v2345 = vtanh.pop %v2089
        %v2346 = vtanh.pop %v2090
        %v2347 = vtanh.pop %v2091
        %v2348 = vtanh.pop %v2092
        %v2349 = vtanh.pop %v2093
        %v2350 = vtanh.pop %v2094
        %v2351 = vtanh.pop %v2095
        %v2352 = vtanh.pop %v2096
        %v2353 = vtanh.pop %v2097
        %v2354 = vtanh.pop %v2098
        %v2355 = vtanh.pop %v2099
        %v2356 = vtanh.pop %v2100
        %v2357 = vtanh.pop %v2101
        %v2358 = vtanh.pop %v2102
        %v2359 = vtanh.pop %v2103
        %v2360 = vtanh.pop %v2104
        %v2361 = vtanh.pop %v2105
        %v2362 = vtanh.pop %v2106
        %v2363 = vtanh.pop %v2107
        %v2364 = vtanh.pop %v2108
        %v2365 = vtanh.pop %v2109
        %v2366 = vtanh.pop %v2110
        %v2367 = vtanh.pop %v2111
        %v2368 = vtanh.pop %v2112
        %v2369 = vtanh.pop %v2113
        %v2370 = vtanh.pop %v2114
        %v2371 = vtanh.pop %v2115
        %v2372 = vtanh.pop %v2116
        %v2373 = vtanh.pop %v2117
        %v2374 = vtanh.pop %v2118
        %v2375 = vtanh.pop %v2119
        %v2376 = vtanh.pop %v2120
        %v2377 = vtanh.pop %v2121
        %v2378 = vtanh.pop %v2122
        %v2379 = vtanh.pop %v2123
        %v2380 = vtanh.pop %v2124
        %v2381 = vtanh.pop %v2125
        %v2382 = vtanh.pop %v2126
        %v2383 = vtanh.pop %v2127
        %v2384 = vtanh.pop %v2128
        %v2385 = vtanh.pop %v2129
        %v2386 = vtanh.pop %v2130
        %v2387 = vtanh.pop %v2131
        %v2388 = vtanh.pop %v2132
        %v2389 = vtanh.pop %v2133
        %v2390 = vtanh.pop %v2134
        %v2391 = vtanh.pop %v2135
        %v2392 = vtanh.pop %v2136
        %v2393 = vtanh.pop %v2137
        %v2394 = vtanh.pop %v2138
        %v2395 = vtanh.pop %v2139
        %v2396 = vtanh.pop %v2140
        %v2397 = vtanh.pop %v2141
        %v2398 = vtanh.pop %v2142
        %v2399 = vtanh.pop %v2143
        %v2400 = vtanh.pop %v2144
        %v2401 = vtanh.pop %v2145
        %v2402 = vtanh.pop %v2146
        %v2403 = vtanh.pop %v2147
        %v2404 = vtanh.pop %v2148
        %v2405 = vtanh.pop %v2149
        %v2406 = vtanh.pop %v2150
        %v2407 = vtanh.pop %v2151
        %v2408 = vtanh.pop %v2152
        %v2409 = vtanh.pop %v2153
        %v2410 = vtanh.pop %v2154
        %v2411 = vtanh.pop %v2155
        %v2412 = vld [vmem:[#allocation7] sm:$0x1]
        %v2414 = vlaneseq
        %v2415 = vshrl.u32 %v2414, 7
        %v2416 = vsub.s32 0, %v2415
        %v2417 = vrot.slane %v2412, %v2416
        %v2419 = vmul.f32 %v2156, %v2417
        %v2420 = vmul.f32 %v2157, %v2417
        %v2421 = vmul.f32 %v2158, %v2417
        %v2422 = vmul.f32 %v2159, %v2417
        %v2423 = vmul.f32 %v2160, %v2417
        %v2424 = vmul.f32 %v2161, %v2417
        %v2425 = vmul.f32 %v2162, %v2417
        %v2426 = vmul.f32 %v2163, %v2417
        %v2427 = vmul.f32 %v2164, %v2417
        %v2428 = vmul.f32 %v2165, %v2417
        %v2429 = vmul.f32 %v2166, %v2417
        %v2430 = vmul.f32 %v2167, %v2417
        %v2431 = vmul.f32 %v2168, %v2417
        %v2432 = vmul.f32 %v2169, %v2417
        %v2433 = vmul.f32 %v2170, %v2417
        %v2434 = vmul.f32 %v2171, %v2417
        %v2435 = vmul.f32 %v2172, %v2417
        %v2436 = vmul.f32 %v2173, %v2417
        %v2437 = vmul.f32 %v2174, %v2417
        %v2438 = vmul.f32 %v2175, %v2417
        %v2439 = vmul.f32 %v2176, %v2417
        %v2440 = vmul.f32 %v2177, %v2417
        %v2441 = vmul.f32 %v2178, %v2417
        %v2442 = vmul.f32 %v2179, %v2417
        %v2443 = vmul.f32 %v2180, %v2417
        %v2444 = vmul.f32 %v2181, %v2417
        %v2445 = vmul.f32 %v2182, %v2417
        %v2446 = vmul.f32 %v2183, %v2417
        %v2447 = vmul.f32 %v2184, %v2417
        %v2448 = vmul.f32 %v2185, %v2417
        %v2449 = vmul.f32 %v2186, %v2417
        %v2450 = vmul.f32 %v2187, %v2417
        %v2451 = vmul.f32 %v2188, %v2417
        %v2452 = vmul.f32 %v2189, %v2417
        %v2453 = vmul.f32 %v2190, %v2417
        %v2454 = vmul.f32 %v2191, %v2417
        %v2455 = vmul.f32 %v2192, %v2417
        %v2456 = vmul.f32 %v2193, %v2417
        %v2457 = vmul.f32 %v2194, %v2417
        %v2458 = vmul.f32 %v2195, %v2417
        %v2459 = vmul.f32 %v2196, %v2417
        %v2460 = vmul.f32 %v2197, %v2417
        %v2461 = vmul.f32 %v2198, %v2417
        %v2462 = vmul.f32 %v2199, %v2417
        %v2463 = vmul.f32 %v2200, %v2417
        %v2464 = vmul.f32 %v2201, %v2417
        %v2465 = vmul.f32 %v2202, %v2417
        %v2466 = vmul.f32 %v2203, %v2417
        %v2467 = vmul.f32 %v2204, %v2417
        %v2468 = vmul.f32 %v2205, %v2417
        %v2469 = vmul.f32 %v2206, %v2417
        %v2470 = vmul.f32 %v2207, %v2417
        %v2471 = vmul.f32 %v2208, %v2417
        %v2472 = vmul.f32 %v2209, %v2417
        %v2473 = vmul.f32 %v2210, %v2417
        %v2474 = vmul.f32 %v2211, %v2417
        %v2475 = vmul.f32 %v2212, %v2417
        %v2476 = vmul.f32 %v2213, %v2417
        %v2477 = vmul.f32 %v2214, %v2417
        %v2478 = vmul.f32 %v2215, %v2417
        %v2479 = vmul.f32 %v2216, %v2417
        %v2480 = vmul.f32 %v2217, %v2417
        %v2481 = vmul.f32 %v2218, %v2417
        %v2482 = vmul.f32 %v2219, %v2417
        %v2483 = vmul.f32 %v2220, %v2417
        %v2484 = vmul.f32 %v2221, %v2417
        %v2485 = vmul.f32 %v2222, %v2417
        %v2486 = vmul.f32 %v2223, %v2417
        %v2487 = vmul.f32 %v2224, %v2417
        %v2488 = vmul.f32 %v2225, %v2417
        %v2489 = vmul.f32 %v2226, %v2417
        %v2490 = vmul.f32 %v2227, %v2417
        %v2491 = vmul.f32 %v2228, %v2417
        %v2492 = vmul.f32 %v2229, %v2417
        %v2493 = vmul.f32 %v2230, %v2417
        %v2494 = vmul.f32 %v2231, %v2417
        %v2495 = vmul.f32 %v2232, %v2417
        %v2496 = vmul.f32 %v2233, %v2417
        %v2497 = vmul.f32 %v2234, %v2417
        %v2498 = vmul.f32 %v2235, %v2417
        %v2499 = vmul.f32 %v2236, %v2417
        %v2500 = vmul.f32 %v2237, %v2417
        %v2501 = vmul.f32 %v2238, %v2417
        %v2502 = vmul.f32 %v2239, %v2417
        %v2503 = vmul.f32 %v2240, %v2417
        %v2504 = vmul.f32 %v2241, %v2417
        %v2505 = vmul.f32 %v2242, %v2417
        %v2506 = vmul.f32 %v2243, %v2417
        %v2507 = vmul.f32 %v2244, %v2417
        %v2508 = vmul.f32 %v2245, %v2417
        %v2509 = vmul.f32 %v2246, %v2417
        %v2510 = vmul.f32 %v2247, %v2417
        %v2511 = vmul.f32 %v2248, %v2417
        %v2512 = vmul.f32 %v2249, %v2417
        %v2513 = vmul.f32 %v2250, %v2417
        %v2514 = vmul.f32 %v2251, %v2417
        %v2515 = vmul.f32 %v2252, %v2417
        %v2516 = vmul.f32 %v2253, %v2417
        %v2517 = vmul.f32 %v2254, %v2417
        %v2518 = vmul.f32 %v2255, %v2417
        %v2519 = vmul.f32 %v2256, %v2417
        %v2520 = vmul.f32 %v2257, %v2417
        %v2521 = vmul.f32 %v2258, %v2417
        %v2522 = vmul.f32 %v2259, %v2417
        %v2523 = vmul.f32 %v2260, %v2417
        %v2524 = vmul.f32 %v2261, %v2417
        %v2525 = vmul.f32 %v2262, %v2417
        %v2526 = vmul.f32 %v2263, %v2417
        %v2527 = vmul.f32 %v2264, %v2417
        %v2528 = vmul.f32 %v2265, %v2417
        %v2529 = vmul.f32 %v2266, %v2417
        %v2530 = vmul.f32 %v2267, %v2417
        %v2531 = vmul.f32 %v2268, %v2417
        %v2532 = vmul.f32 %v2269, %v2417
        %v2533 = vmul.f32 %v2270, %v2417
        %v2534 = vmul.f32 %v2271, %v2417
        %v2535 = vmul.f32 %v2272, %v2417
        %v2536 = vmul.f32 %v2273, %v2417
        %v2537 = vmul.f32 %v2274, %v2417
        %v2538 = vmul.f32 %v2275, %v2417
        %v2539 = vmul.f32 %v2276, %v2417
        %v2540 = vmul.f32 %v2277, %v2417
        %v2541 = vmul.f32 %v2278, %v2417
        %v2542 = vmul.f32 %v2279, %v2417
        %v2543 = vmul.f32 %v2280, %v2417
        %v2544 = vmul.f32 %v2281, %v2417
        %v2545 = vmul.f32 %v2282, %v2417
        %v2546 = vmul.f32 %v2283, %v2417
        %v2547 = vmul.f32 %v2284, %v2417
        %v2548 = vmul.f32 %v2285, %v2417
        %v2549 = vmul.f32 %v2286, %v2417
        %v2550 = vmul.f32 %v2287, %v2417
        %v2551 = vmul.f32 %v2288, %v2417
        %v2552 = vmul.f32 %v2289, %v2417
        %v2553 = vmul.f32 %v2290, %v2417
        %v2554 = vmul.f32 %v2291, %v2417
        %v2555 = vmul.f32 %v2292, %v2417
        %v2556 = vmul.f32 %v2293, %v2417
        %v2557 = vmul.f32 %v2294, %v2417
        %v2558 = vmul.f32 %v2295, %v2417
        %v2559 = vmul.f32 %v2296, %v2417
        %v2560 = vmul.f32 %v2297, %v2417
        %v2561 = vmul.f32 %v2298, %v2417
        %v2562 = vmul.f32 %v2299, %v2417
        %v2563 = vmul.f32 %v2300, %v2417
        %v2564 = vmul.f32 %v2301, %v2417
        %v2565 = vmul.f32 %v2302, %v2417
        %v2566 = vmul.f32 %v2303, %v2417
        %v2567 = vmul.f32 %v2304, %v2417
        %v2568 = vmul.f32 %v2305, %v2417
        %v2569 = vmul.f32 %v2306, %v2417
        %v2570 = vmul.f32 %v2307, %v2417
        %v2571 = vmul.f32 %v2308, %v2417
        %v2572 = vmul.f32 %v2309, %v2417
        %v2573 = vmul.f32 %v2310, %v2417
        %v2574 = vmul.f32 %v2311, %v2417
        %v2575 = vmul.f32 %v2312, %v2417
        %v2576 = vmul.f32 %v2313, %v2417
        %v2577 = vmul.f32 %v2314, %v2417
        %v2578 = vmul.f32 %v2315, %v2417
        %v2579 = vmul.f32 %v2316, %v2417
        %v2580 = vmul.f32 %v2317, %v2417
        %v2581 = vmul.f32 %v2318, %v2417
        %v2582 = vmul.f32 %v2319, %v2417
        %v2583 = vmul.f32 %v2320, %v2417
        %v2584 = vmul.f32 %v2321, %v2417
        %v2585 = vmul.f32 %v2322, %v2417
        %v2586 = vmul.f32 %v2323, %v2417
        %v2587 = vmul.f32 %v2324, %v2417
        %v2588 = vmul.f32 %v2325, %v2417
        %v2589 = vmul.f32 %v2326, %v2417
        %v2590 = vmul.f32 %v2327, %v2417
        %v2591 = vmul.f32 %v2328, %v2417
        %v2592 = vmul.f32 %v2329, %v2417
        %v2593 = vmul.f32 %v2330, %v2417
        %v2594 = vmul.f32 %v2331, %v2417
        %v2595 = vmul.f32 %v2332, %v2417
        %v2596 = vmul.f32 %v2333, %v2417
        %v2597 = vmul.f32 %v2334, %v2417
        %v2598 = vmul.f32 %v2335, %v2417
        %v2599 = vmul.f32 %v2336, %v2417
        %v2600 = vmul.f32 %v2337, %v2417
        %v2601 = vmul.f32 %v2338, %v2417
        %v2602 = vmul.f32 %v2339, %v2417
        %v2603 = vmul.f32 %v2340, %v2417
        %v2604 = vmul.f32 %v2341, %v2417
        %v2605 = vmul.f32 %v2342, %v2417
        %v2606 = vmul.f32 %v2343, %v2417
        %v2607 = vmul.f32 %v2344, %v2417
        %v2608 = vmul.f32 %v2345, %v2417
        %v2609 = vmul.f32 %v2346, %v2417
        %v2610 = vmul.f32 %v2347, %v2417
        %v2611 = vmul.f32 %v2348, %v2417
        %v2612 = vmul.f32 %v2349, %v2417
        %v2613 = vmul.f32 %v2350, %v2417
        %v2614 = vmul.f32 %v2351, %v2417
        %v2615 = vmul.f32 %v2352, %v2417
        %v2616 = vmul.f32 %v2353, %v2417
        %v2617 = vmul.f32 %v2354, %v2417
        %v2618 = vmul.f32 %v2355, %v2417
        %v2619 = vmul.f32 %v2356, %v2417
        %v2620 = vmul.f32 %v2357, %v2417
        %v2621 = vmul.f32 %v2358, %v2417
        %v2622 = vmul.f32 %v2359, %v2417
        %v2623 = vmul.f32 %v2360, %v2417
        %v2624 = vmul.f32 %v2361, %v2417
        %v2625 = vmul.f32 %v2362, %v2417
        %v2626 = vmul.f32 %v2363, %v2417
        %v2627 = vmul.f32 %v2364, %v2417
        %v2628 = vmul.f32 %v2365, %v2417
        %v2629 = vmul.f32 %v2366, %v2417
        %v2630 = vmul.f32 %v2367, %v2417
        %v2631 = vmul.f32 %v2368, %v2417
        %v2632 = vmul.f32 %v2369, %v2417
        %v2633 = vmul.f32 %v2370, %v2417
        %v2634 = vmul.f32 %v2371, %v2417
        %v2635 = vmul.f32 %v2372, %v2417
        %v2636 = vmul.f32 %v2373, %v2417
        %v2637 = vmul.f32 %v2374, %v2417
        %v2638 = vmul.f32 %v2375, %v2417
        %v2639 = vmul.f32 %v2376, %v2417
        %v2640 = vmul.f32 %v2377, %v2417
        %v2641 = vmul.f32 %v2378, %v2417
        %v2642 = vmul.f32 %v2379, %v2417
        %v2643 = vmul.f32 %v2380, %v2417
        %v2644 = vmul.f32 %v2381, %v2417
        %v2645 = vmul.f32 %v2382, %v2417
        %v2646 = vmul.f32 %v2383, %v2417
        %v2647 = vmul.f32 %v2384, %v2417
        %v2648 = vmul.f32 %v2385, %v2417
        %v2649 = vmul.f32 %v2386, %v2417
        %v2650 = vmul.f32 %v2387, %v2417
        %v2651 = vmul.f32 %v2388, %v2417
        %v2652 = vmul.f32 %v2389, %v2417
        %v2653 = vmul.f32 %v2390, %v2417
        %v2654 = vmul.f32 %v2391, %v2417
        %v2655 = vmul.f32 %v2392, %v2417
        %v2656 = vmul.f32 %v2393, %v2417
        %v2657 = vmul.f32 %v2394, %v2417
        %v2658 = vmul.f32 %v2395, %v2417
        %v2659 = vmul.f32 %v2396, %v2417
        %v2660 = vmul.f32 %v2397, %v2417
        %v2661 = vmul.f32 %v2398, %v2417
        %v2662 = vmul.f32 %v2399, %v2417
        %v2663 = vmul.f32 %v2400, %v2417
        %v2664 = vmul.f32 %v2401, %v2417
        %v2665 = vmul.f32 %v2402, %v2417
        %v2666 = vmul.f32 %v2403, %v2417
        %v2667 = vmul.f32 %v2404, %v2417
        %v2668 = vmul.f32 %v2405, %v2417
        %v2669 = vmul.f32 %v2406, %v2417
        %v2670 = vmul.f32 %v2407, %v2417
        %v2671 = vmul.f32 %v2408, %v2417
        %v2672 = vmul.f32 %v2409, %v2417
        %v2673 = vmul.f32 %v2410, %v2417
        %v2674 = vmul.f32 %v2411, %v2417
        %vm2675 = vcmask 523264
        %v2676 = vsel %vm2675, %v2419, 0.0
        %2677 = vadd.xlane.f32.xlu0 %v2676
        %v2678 = vpop.xlane.xlu0 %2677
        %v2679 = vsel %vm2675, %v2420, 0.0
        %2680 = vadd.xlane.f32.xlu0 %v2679
        %v2681 = vpop.xlane.xlu0 %2680
        %v2682 = vsel %vm2675, %v2421, 0.0
        %2683 = vadd.xlane.f32.xlu0 %v2682
        %v2684 = vpop.xlane.xlu0 %2683
        %v2685 = vsel %vm2675, %v2422, 0.0
        %2686 = vadd.xlane.f32.xlu0 %v2685
        %v2687 = vpop.xlane.xlu0 %2686
        %v2688 = vsel %vm2675, %v2423, 0.0
        %2689 = vadd.xlane.f32.xlu0 %v2688
        %v2690 = vpop.xlane.xlu0 %2689
        %v2691 = vsel %vm2675, %v2424, 0.0
        %2692 = vadd.xlane.f32.xlu0 %v2691
        %v2693 = vpop.xlane.xlu0 %2692
        %v2694 = vsel %vm2675, %v2425, 0.0
        %2695 = vadd.xlane.f32.xlu0 %v2694
        %v2696 = vpop.xlane.xlu0 %2695
        %v2697 = vsel %vm2675, %v2426, 0.0
        %2698 = vadd.xlane.f32.xlu0 %v2697
        %v2699 = vpop.xlane.xlu0 %2698
        %v2700 = vsel %vm2675, %v2427, 0.0
        %2701 = vadd.xlane.f32.xlu0 %v2700
        %v2702 = vpop.xlane.xlu0 %2701
        %v2703 = vsel %vm2675, %v2428, 0.0
        %2704 = vadd.xlane.f32.xlu0 %v2703
        %v2705 = vpop.xlane.xlu0 %2704
        %v2706 = vsel %vm2675, %v2429, 0.0
        %2707 = vadd.xlane.f32.xlu0 %v2706
        %v2708 = vpop.xlane.xlu0 %2707
        %v2709 = vsel %vm2675, %v2430, 0.0
        %2710 = vadd.xlane.f32.xlu0 %v2709
        %v2711 = vpop.xlane.xlu0 %2710
        %v2712 = vsel %vm2675, %v2431, 0.0
        %2713 = vadd.xlane.f32.xlu0 %v2712
        %v2714 = vpop.xlane.xlu0 %2713
        %v2715 = vsel %vm2675, %v2432, 0.0
        %2716 = vadd.xlane.f32.xlu0 %v2715
        %v2717 = vpop.xlane.xlu0 %2716
        %v2718 = vsel %vm2675, %v2433, 0.0
        %2719 = vadd.xlane.f32.xlu0 %v2718
        %v2720 = vpop.xlane.xlu0 %2719
        %v2721 = vsel %vm2675, %v2434, 0.0
        %2722 = vadd.xlane.f32.xlu0 %v2721
        %v2723 = vpop.xlane.xlu0 %2722
        %v2724 = vsel %vm2675, %v2435, 0.0
        %2725 = vadd.xlane.f32.xlu0 %v2724
        %v2726 = vpop.xlane.xlu0 %2725
        %v2727 = vsel %vm2675, %v2436, 0.0
        %2728 = vadd.xlane.f32.xlu0 %v2727
        %v2729 = vpop.xlane.xlu0 %2728
        %v2730 = vsel %vm2675, %v2437, 0.0
        %2731 = vadd.xlane.f32.xlu0 %v2730
        %v2732 = vpop.xlane.xlu0 %2731
        %v2733 = vsel %vm2675, %v2438, 0.0
        %2734 = vadd.xlane.f32.xlu0 %v2733
        %v2735 = vpop.xlane.xlu0 %2734
        %v2736 = vsel %vm2675, %v2439, 0.0
        %2737 = vadd.xlane.f32.xlu0 %v2736
        %v2738 = vpop.xlane.xlu0 %2737
        %v2739 = vsel %vm2675, %v2440, 0.0
        %2740 = vadd.xlane.f32.xlu0 %v2739
        %v2741 = vpop.xlane.xlu0 %2740
        %v2742 = vsel %vm2675, %v2441, 0.0
        %2743 = vadd.xlane.f32.xlu0 %v2742
        %v2744 = vpop.xlane.xlu0 %2743
        %v2745 = vsel %vm2675, %v2442, 0.0
        %2746 = vadd.xlane.f32.xlu0 %v2745
        %v2747 = vpop.xlane.xlu0 %2746
        %v2748 = vsel %vm2675, %v2443, 0.0
        %2749 = vadd.xlane.f32.xlu0 %v2748
        %v2750 = vpop.xlane.xlu0 %2749
        %v2751 = vsel %vm2675, %v2444, 0.0
        %2752 = vadd.xlane.f32.xlu0 %v2751
        %v2753 = vpop.xlane.xlu0 %2752
        %v2754 = vsel %vm2675, %v2445, 0.0
        %2755 = vadd.xlane.f32.xlu0 %v2754
        %v2756 = vpop.xlane.xlu0 %2755
        %v2757 = vsel %vm2675, %v2446, 0.0
        %2758 = vadd.xlane.f32.xlu0 %v2757
        %v2759 = vpop.xlane.xlu0 %2758
        %v2760 = vsel %vm2675, %v2447, 0.0
        %2761 = vadd.xlane.f32.xlu0 %v2760
        %v2762 = vpop.xlane.xlu0 %2761
        %v2763 = vsel %vm2675, %v2448, 0.0
        %2764 = vadd.xlane.f32.xlu0 %v2763
        %v2765 = vpop.xlane.xlu0 %2764
        %v2766 = vsel %vm2675, %v2449, 0.0
        %2767 = vadd.xlane.f32.xlu0 %v2766
        %v2768 = vpop.xlane.xlu0 %2767
        %v2769 = vsel %vm2675, %v2450, 0.0
        %2770 = vadd.xlane.f32.xlu0 %v2769
        %v2771 = vpop.xlane.xlu0 %2770
        %v2772 = vsel %vm2675, %v2451, 0.0
        %2773 = vadd.xlane.f32.xlu0 %v2772
        %v2774 = vpop.xlane.xlu0 %2773
        %v2775 = vsel %vm2675, %v2452, 0.0
        %2776 = vadd.xlane.f32.xlu0 %v2775
        %v2777 = vpop.xlane.xlu0 %2776
        %v2778 = vsel %vm2675, %v2453, 0.0
        %2779 = vadd.xlane.f32.xlu0 %v2778
        %v2780 = vpop.xlane.xlu0 %2779
        %v2781 = vsel %vm2675, %v2454, 0.0
        %2782 = vadd.xlane.f32.xlu0 %v2781
        %v2783 = vpop.xlane.xlu0 %2782
        %v2784 = vsel %vm2675, %v2455, 0.0
        %2785 = vadd.xlane.f32.xlu0 %v2784
        %v2786 = vpop.xlane.xlu0 %2785
        %v2787 = vsel %vm2675, %v2456, 0.0
        %2788 = vadd.xlane.f32.xlu0 %v2787
        %v2789 = vpop.xlane.xlu0 %2788
        %v2790 = vsel %vm2675, %v2457, 0.0
        %2791 = vadd.xlane.f32.xlu0 %v2790
        %v2792 = vpop.xlane.xlu0 %2791
        %v2793 = vsel %vm2675, %v2458, 0.0
        %2794 = vadd.xlane.f32.xlu0 %v2793
        %v2795 = vpop.xlane.xlu0 %2794
        %v2796 = vsel %vm2675, %v2459, 0.0
        %2797 = vadd.xlane.f32.xlu0 %v2796
        %v2798 = vpop.xlane.xlu0 %2797
        %v2799 = vsel %vm2675, %v2460, 0.0
        %2800 = vadd.xlane.f32.xlu0 %v2799
        %v2801 = vpop.xlane.xlu0 %2800
        %v2802 = vsel %vm2675, %v2461, 0.0
        %2803 = vadd.xlane.f32.xlu0 %v2802
        %v2804 = vpop.xlane.xlu0 %2803
        %v2805 = vsel %vm2675, %v2462, 0.0
        %2806 = vadd.xlane.f32.xlu0 %v2805
        %v2807 = vpop.xlane.xlu0 %2806
        %v2808 = vsel %vm2675, %v2463, 0.0
        %2809 = vadd.xlane.f32.xlu0 %v2808
        %v2810 = vpop.xlane.xlu0 %2809
        %v2811 = vsel %vm2675, %v2464, 0.0
        %2812 = vadd.xlane.f32.xlu0 %v2811
        %v2813 = vpop.xlane.xlu0 %2812
        %v2814 = vsel %vm2675, %v2465, 0.0
        %2815 = vadd.xlane.f32.xlu0 %v2814
        %v2816 = vpop.xlane.xlu0 %2815
        %v2817 = vsel %vm2675, %v2466, 0.0
        %2818 = vadd.xlane.f32.xlu0 %v2817
        %v2819 = vpop.xlane.xlu0 %2818
        %v2820 = vsel %vm2675, %v2467, 0.0
        %2821 = vadd.xlane.f32.xlu0 %v2820
        %v2822 = vpop.xlane.xlu0 %2821
        %v2823 = vsel %vm2675, %v2468, 0.0
        %2824 = vadd.xlane.f32.xlu0 %v2823
        %v2825 = vpop.xlane.xlu0 %2824
        %v2826 = vsel %vm2675, %v2469, 0.0
        %2827 = vadd.xlane.f32.xlu0 %v2826
        %v2828 = vpop.xlane.xlu0 %2827
        %v2829 = vsel %vm2675, %v2470, 0.0
        %2830 = vadd.xlane.f32.xlu0 %v2829
        %v2831 = vpop.xlane.xlu0 %2830
        %v2832 = vsel %vm2675, %v2471, 0.0
        %2833 = vadd.xlane.f32.xlu0 %v2832
        %v2834 = vpop.xlane.xlu0 %2833
        %v2835 = vsel %vm2675, %v2472, 0.0
        %2836 = vadd.xlane.f32.xlu0 %v2835
        %v2837 = vpop.xlane.xlu0 %2836
        %v2838 = vsel %vm2675, %v2473, 0.0
        %2839 = vadd.xlane.f32.xlu0 %v2838
        %v2840 = vpop.xlane.xlu0 %2839
        %v2841 = vsel %vm2675, %v2474, 0.0
        %2842 = vadd.xlane.f32.xlu0 %v2841
        %v2843 = vpop.xlane.xlu0 %2842
        %v2844 = vsel %vm2675, %v2475, 0.0
        %2845 = vadd.xlane.f32.xlu0 %v2844
        %v2846 = vpop.xlane.xlu0 %2845
        %v2847 = vsel %vm2675, %v2476, 0.0
        %2848 = vadd.xlane.f32.xlu0 %v2847
        %v2849 = vpop.xlane.xlu0 %2848
        %v2850 = vsel %vm2675, %v2477, 0.0
        %2851 = vadd.xlane.f32.xlu0 %v2850
        %v2852 = vpop.xlane.xlu0 %2851
        %v2853 = vsel %vm2675, %v2478, 0.0
        %2854 = vadd.xlane.f32.xlu0 %v2853
        %v2855 = vpop.xlane.xlu0 %2854
        %v2856 = vsel %vm2675, %v2479, 0.0
        %2857 = vadd.xlane.f32.xlu0 %v2856
        %v2858 = vpop.xlane.xlu0 %2857
        %v2859 = vsel %vm2675, %v2480, 0.0
        %2860 = vadd.xlane.f32.xlu0 %v2859
        %v2861 = vpop.xlane.xlu0 %2860
        %v2862 = vsel %vm2675, %v2481, 0.0
        %2863 = vadd.xlane.f32.xlu0 %v2862
        %v2864 = vpop.xlane.xlu0 %2863
        %v2865 = vsel %vm2675, %v2482, 0.0
        %2866 = vadd.xlane.f32.xlu0 %v2865
        %v2867 = vpop.xlane.xlu0 %2866
        %v2868 = vsel %vm2675, %v2483, 0.0
        %2869 = vadd.xlane.f32.xlu0 %v2868
        %v2870 = vpop.xlane.xlu0 %2869
        %v2871 = vsel %vm2675, %v2484, 0.0
        %2872 = vadd.xlane.f32.xlu0 %v2871
        %v2873 = vpop.xlane.xlu0 %2872
        %v2874 = vsel %vm2675, %v2485, 0.0
        %2875 = vadd.xlane.f32.xlu0 %v2874
        %v2876 = vpop.xlane.xlu0 %2875
        %v2877 = vsel %vm2675, %v2486, 0.0
        %2878 = vadd.xlane.f32.xlu0 %v2877
        %v2879 = vpop.xlane.xlu0 %2878
        %v2880 = vsel %vm2675, %v2487, 0.0
        %2881 = vadd.xlane.f32.xlu0 %v2880
        %v2882 = vpop.xlane.xlu0 %2881
        %v2883 = vsel %vm2675, %v2488, 0.0
        %2884 = vadd.xlane.f32.xlu0 %v2883
        %v2885 = vpop.xlane.xlu0 %2884
        %v2886 = vsel %vm2675, %v2489, 0.0
        %2887 = vadd.xlane.f32.xlu0 %v2886
        %v2888 = vpop.xlane.xlu0 %2887
        %v2889 = vsel %vm2675, %v2490, 0.0
        %2890 = vadd.xlane.f32.xlu0 %v2889
        %v2891 = vpop.xlane.xlu0 %2890
        %v2892 = vsel %vm2675, %v2491, 0.0
        %2893 = vadd.xlane.f32.xlu0 %v2892
        %v2894 = vpop.xlane.xlu0 %2893
        %v2895 = vsel %vm2675, %v2492, 0.0
        %2896 = vadd.xlane.f32.xlu0 %v2895
        %v2897 = vpop.xlane.xlu0 %2896
        %v2898 = vsel %vm2675, %v2493, 0.0
        %2899 = vadd.xlane.f32.xlu0 %v2898
        %v2900 = vpop.xlane.xlu0 %2899
        %v2901 = vsel %vm2675, %v2494, 0.0
        %2902 = vadd.xlane.f32.xlu0 %v2901
        %v2903 = vpop.xlane.xlu0 %2902
        %v2904 = vsel %vm2675, %v2495, 0.0
        %2905 = vadd.xlane.f32.xlu0 %v2904
        %v2906 = vpop.xlane.xlu0 %2905
        %v2907 = vsel %vm2675, %v2496, 0.0
        %2908 = vadd.xlane.f32.xlu0 %v2907
        %v2909 = vpop.xlane.xlu0 %2908
        %v2910 = vsel %vm2675, %v2497, 0.0
        %2911 = vadd.xlane.f32.xlu0 %v2910
        %v2912 = vpop.xlane.xlu0 %2911
        %v2913 = vsel %vm2675, %v2498, 0.0
        %2914 = vadd.xlane.f32.xlu0 %v2913
        %v2915 = vpop.xlane.xlu0 %2914
        %v2916 = vsel %vm2675, %v2499, 0.0
        %2917 = vadd.xlane.f32.xlu0 %v2916
        %v2918 = vpop.xlane.xlu0 %2917
        %v2919 = vsel %vm2675, %v2500, 0.0
        %2920 = vadd.xlane.f32.xlu0 %v2919
        %v2921 = vpop.xlane.xlu0 %2920
        %v2922 = vsel %vm2675, %v2501, 0.0
        %2923 = vadd.xlane.f32.xlu0 %v2922
        %v2924 = vpop.xlane.xlu0 %2923
        %v2925 = vsel %vm2675, %v2502, 0.0
        %2926 = vadd.xlane.f32.xlu0 %v2925
        %v2927 = vpop.xlane.xlu0 %2926
        %v2928 = vsel %vm2675, %v2503, 0.0
        %2929 = vadd.xlane.f32.xlu0 %v2928
        %v2930 = vpop.xlane.xlu0 %2929
        %v2931 = vsel %vm2675, %v2504, 0.0
        %2932 = vadd.xlane.f32.xlu0 %v2931
        %v2933 = vpop.xlane.xlu0 %2932
        %v2934 = vsel %vm2675, %v2505, 0.0
        %2935 = vadd.xlane.f32.xlu0 %v2934
        %v2936 = vpop.xlane.xlu0 %2935
        %v2937 = vsel %vm2675, %v2506, 0.0
        %2938 = vadd.xlane.f32.xlu0 %v2937
        %v2939 = vpop.xlane.xlu0 %2938
        %v2940 = vsel %vm2675, %v2507, 0.0
        %2941 = vadd.xlane.f32.xlu0 %v2940
        %v2942 = vpop.xlane.xlu0 %2941
        %v2943 = vsel %vm2675, %v2508, 0.0
        %2944 = vadd.xlane.f32.xlu0 %v2943
        %v2945 = vpop.xlane.xlu0 %2944
        %v2946 = vsel %vm2675, %v2509, 0.0
        %2947 = vadd.xlane.f32.xlu0 %v2946
        %v2948 = vpop.xlane.xlu0 %2947
        %v2949 = vsel %vm2675, %v2510, 0.0
        %2950 = vadd.xlane.f32.xlu0 %v2949
        %v2951 = vpop.xlane.xlu0 %2950
        %v2952 = vsel %vm2675, %v2511, 0.0
        %2953 = vadd.xlane.f32.xlu0 %v2952
        %v2954 = vpop.xlane.xlu0 %2953
        %v2955 = vsel %vm2675, %v2512, 0.0
        %2956 = vadd.xlane.f32.xlu0 %v2955
        %v2957 = vpop.xlane.xlu0 %2956
        %v2958 = vsel %vm2675, %v2513, 0.0
        %2959 = vadd.xlane.f32.xlu0 %v2958
        %v2960 = vpop.xlane.xlu0 %2959
        %v2961 = vsel %vm2675, %v2514, 0.0
        %2962 = vadd.xlane.f32.xlu0 %v2961
        %v2963 = vpop.xlane.xlu0 %2962
        %v2964 = vsel %vm2675, %v2515, 0.0
        %2965 = vadd.xlane.f32.xlu0 %v2964
        %v2966 = vpop.xlane.xlu0 %2965
        %v2967 = vsel %vm2675, %v2516, 0.0
        %2968 = vadd.xlane.f32.xlu0 %v2967
        %v2969 = vpop.xlane.xlu0 %2968
        %v2970 = vsel %vm2675, %v2517, 0.0
        %2971 = vadd.xlane.f32.xlu0 %v2970
        %v2972 = vpop.xlane.xlu0 %2971
        %v2973 = vsel %vm2675, %v2518, 0.0
        %2974 = vadd.xlane.f32.xlu0 %v2973
        %v2975 = vpop.xlane.xlu0 %2974
        %v2976 = vsel %vm2675, %v2519, 0.0
        %2977 = vadd.xlane.f32.xlu0 %v2976
        %v2978 = vpop.xlane.xlu0 %2977
        %v2979 = vsel %vm2675, %v2520, 0.0
        %2980 = vadd.xlane.f32.xlu0 %v2979
        %v2981 = vpop.xlane.xlu0 %2980
        %v2982 = vsel %vm2675, %v2521, 0.0
        %2983 = vadd.xlane.f32.xlu0 %v2982
        %v2984 = vpop.xlane.xlu0 %2983
        %v2985 = vsel %vm2675, %v2522, 0.0
        %2986 = vadd.xlane.f32.xlu0 %v2985
        %v2987 = vpop.xlane.xlu0 %2986
        %v2988 = vsel %vm2675, %v2523, 0.0
        %2989 = vadd.xlane.f32.xlu0 %v2988
        %v2990 = vpop.xlane.xlu0 %2989
        %v2991 = vsel %vm2675, %v2524, 0.0
        %2992 = vadd.xlane.f32.xlu0 %v2991
        %v2993 = vpop.xlane.xlu0 %2992
        %v2994 = vsel %vm2675, %v2525, 0.0
        %2995 = vadd.xlane.f32.xlu0 %v2994
        %v2996 = vpop.xlane.xlu0 %2995
        %v2997 = vsel %vm2675, %v2526, 0.0
        %2998 = vadd.xlane.f32.xlu0 %v2997
        %v2999 = vpop.xlane.xlu0 %2998
        %v3000 = vsel %vm2675, %v2527, 0.0
        %3001 = vadd.xlane.f32.xlu0 %v3000
        %v3002 = vpop.xlane.xlu0 %3001
        %v3003 = vsel %vm2675, %v2528, 0.0
        %3004 = vadd.xlane.f32.xlu0 %v3003
        %v3005 = vpop.xlane.xlu0 %3004
        %v3006 = vsel %vm2675, %v2529, 0.0
        %3007 = vadd.xlane.f32.xlu0 %v3006
        %v3008 = vpop.xlane.xlu0 %3007
        %v3009 = vsel %vm2675, %v2530, 0.0
        %3010 = vadd.xlane.f32.xlu0 %v3009
        %v3011 = vpop.xlane.xlu0 %3010
        %v3012 = vsel %vm2675, %v2531, 0.0
        %3013 = vadd.xlane.f32.xlu0 %v3012
        %v3014 = vpop.xlane.xlu0 %3013
        %v3015 = vsel %vm2675, %v2532, 0.0
        %3016 = vadd.xlane.f32.xlu0 %v3015
        %v3017 = vpop.xlane.xlu0 %3016
        %v3018 = vsel %vm2675, %v2533, 0.0
        %3019 = vadd.xlane.f32.xlu0 %v3018
        %v3020 = vpop.xlane.xlu0 %3019
        %v3021 = vsel %vm2675, %v2534, 0.0
        %3022 = vadd.xlane.f32.xlu0 %v3021
        %v3023 = vpop.xlane.xlu0 %3022
        %v3024 = vsel %vm2675, %v2535, 0.0
        %3025 = vadd.xlane.f32.xlu0 %v3024
        %v3026 = vpop.xlane.xlu0 %3025
        %v3027 = vsel %vm2675, %v2536, 0.0
        %3028 = vadd.xlane.f32.xlu0 %v3027
        %v3029 = vpop.xlane.xlu0 %3028
        %v3030 = vsel %vm2675, %v2537, 0.0
        %3031 = vadd.xlane.f32.xlu0 %v3030
        %v3032 = vpop.xlane.xlu0 %3031
        %v3033 = vsel %vm2675, %v2538, 0.0
        %3034 = vadd.xlane.f32.xlu0 %v3033
        %v3035 = vpop.xlane.xlu0 %3034
        %v3036 = vsel %vm2675, %v2539, 0.0
        %3037 = vadd.xlane.f32.xlu0 %v3036
        %v3038 = vpop.xlane.xlu0 %3037
        %v3039 = vsel %vm2675, %v2540, 0.0
        %3040 = vadd.xlane.f32.xlu0 %v3039
        %v3041 = vpop.xlane.xlu0 %3040
        %v3042 = vsel %vm2675, %v2541, 0.0
        %3043 = vadd.xlane.f32.xlu0 %v3042
        %v3044 = vpop.xlane.xlu0 %3043
        %v3045 = vsel %vm2675, %v2542, 0.0
        %3046 = vadd.xlane.f32.xlu0 %v3045
        %v3047 = vpop.xlane.xlu0 %3046
        %v3048 = vsel %vm2675, %v2543, 0.0
        %3049 = vadd.xlane.f32.xlu0 %v3048
        %v3050 = vpop.xlane.xlu0 %3049
        %v3051 = vsel %vm2675, %v2544, 0.0
        %3052 = vadd.xlane.f32.xlu0 %v3051
        %v3053 = vpop.xlane.xlu0 %3052
        %v3054 = vsel %vm2675, %v2545, 0.0
        %3055 = vadd.xlane.f32.xlu0 %v3054
        %v3056 = vpop.xlane.xlu0 %3055
        %v3057 = vsel %vm2675, %v2546, 0.0
        %3058 = vadd.xlane.f32.xlu0 %v3057
        %v3059 = vpop.xlane.xlu0 %3058
        %v3060 = vsel %vm2675, %v2547, 0.0
        %3061 = vadd.xlane.f32.xlu0 %v3060
        %v3062 = vpop.xlane.xlu0 %3061
        %v3063 = vsel %vm2675, %v2548, 0.0
        %3064 = vadd.xlane.f32.xlu0 %v3063
        %v3065 = vpop.xlane.xlu0 %3064
        %v3066 = vsel %vm2675, %v2549, 0.0
        %3067 = vadd.xlane.f32.xlu0 %v3066
        %v3068 = vpop.xlane.xlu0 %3067
        %v3069 = vsel %vm2675, %v2550, 0.0
        %3070 = vadd.xlane.f32.xlu0 %v3069
        %v3071 = vpop.xlane.xlu0 %3070
        %v3072 = vsel %vm2675, %v2551, 0.0
        %3073 = vadd.xlane.f32.xlu0 %v3072
        %v3074 = vpop.xlane.xlu0 %3073
        %v3075 = vsel %vm2675, %v2552, 0.0
        %3076 = vadd.xlane.f32.xlu0 %v3075
        %v3077 = vpop.xlane.xlu0 %3076
        %v3078 = vsel %vm2675, %v2553, 0.0
        %3079 = vadd.xlane.f32.xlu0 %v3078
        %v3080 = vpop.xlane.xlu0 %3079
        %v3081 = vsel %vm2675, %v2554, 0.0
        %3082 = vadd.xlane.f32.xlu0 %v3081
        %v3083 = vpop.xlane.xlu0 %3082
        %v3084 = vsel %vm2675, %v2555, 0.0
        %3085 = vadd.xlane.f32.xlu0 %v3084
        %v3086 = vpop.xlane.xlu0 %3085
        %v3087 = vsel %vm2675, %v2556, 0.0
        %3088 = vadd.xlane.f32.xlu0 %v3087
        %v3089 = vpop.xlane.xlu0 %3088
        %v3090 = vsel %vm2675, %v2557, 0.0
        %3091 = vadd.xlane.f32.xlu0 %v3090
        %v3092 = vpop.xlane.xlu0 %3091
        %v3093 = vsel %vm2675, %v2558, 0.0
        %3094 = vadd.xlane.f32.xlu0 %v3093
        %v3095 = vpop.xlane.xlu0 %3094
        %v3096 = vsel %vm2675, %v2559, 0.0
        %3097 = vadd.xlane.f32.xlu0 %v3096
        %v3098 = vpop.xlane.xlu0 %3097
        %v3099 = vsel %vm2675, %v2560, 0.0
        %3100 = vadd.xlane.f32.xlu0 %v3099
        %v3101 = vpop.xlane.xlu0 %3100
        %v3102 = vsel %vm2675, %v2561, 0.0
        %3103 = vadd.xlane.f32.xlu0 %v3102
        %v3104 = vpop.xlane.xlu0 %3103
        %v3105 = vsel %vm2675, %v2562, 0.0
        %3106 = vadd.xlane.f32.xlu0 %v3105
        %v3107 = vpop.xlane.xlu0 %3106
        %v3108 = vsel %vm2675, %v2563, 0.0
        %3109 = vadd.xlane.f32.xlu0 %v3108
        %v3110 = vpop.xlane.xlu0 %3109
        %v3111 = vsel %vm2675, %v2564, 0.0
        %3112 = vadd.xlane.f32.xlu0 %v3111
        %v3113 = vpop.xlane.xlu0 %3112
        %v3114 = vsel %vm2675, %v2565, 0.0
        %3115 = vadd.xlane.f32.xlu0 %v3114
        %v3116 = vpop.xlane.xlu0 %3115
        %v3117 = vsel %vm2675, %v2566, 0.0
        %3118 = vadd.xlane.f32.xlu0 %v3117
        %v3119 = vpop.xlane.xlu0 %3118
        %v3120 = vsel %vm2675, %v2567, 0.0
        %3121 = vadd.xlane.f32.xlu0 %v3120
        %v3122 = vpop.xlane.xlu0 %3121
        %v3123 = vsel %vm2675, %v2568, 0.0
        %3124 = vadd.xlane.f32.xlu0 %v3123
        %v3125 = vpop.xlane.xlu0 %3124
        %v3126 = vsel %vm2675, %v2569, 0.0
        %3127 = vadd.xlane.f32.xlu0 %v3126
        %v3128 = vpop.xlane.xlu0 %3127
        %v3129 = vsel %vm2675, %v2570, 0.0
        %3130 = vadd.xlane.f32.xlu0 %v3129
        %v3131 = vpop.xlane.xlu0 %3130
        %v3132 = vsel %vm2675, %v2571, 0.0
        %3133 = vadd.xlane.f32.xlu0 %v3132
        %v3134 = vpop.xlane.xlu0 %3133
        %v3135 = vsel %vm2675, %v2572, 0.0
        %3136 = vadd.xlane.f32.xlu0 %v3135
        %v3137 = vpop.xlane.xlu0 %3136
        %v3138 = vsel %vm2675, %v2573, 0.0
        %3139 = vadd.xlane.f32.xlu0 %v3138
        %v3140 = vpop.xlane.xlu0 %3139
        %v3141 = vsel %vm2675, %v2574, 0.0
        %3142 = vadd.xlane.f32.xlu0 %v3141
        %v3143 = vpop.xlane.xlu0 %3142
        %v3144 = vsel %vm2675, %v2575, 0.0
        %3145 = vadd.xlane.f32.xlu0 %v3144
        %v3146 = vpop.xlane.xlu0 %3145
        %v3147 = vsel %vm2675, %v2576, 0.0
        %3148 = vadd.xlane.f32.xlu0 %v3147
        %v3149 = vpop.xlane.xlu0 %3148
        %v3150 = vsel %vm2675, %v2577, 0.0
        %3151 = vadd.xlane.f32.xlu0 %v3150
        %v3152 = vpop.xlane.xlu0 %3151
        %v3153 = vsel %vm2675, %v2578, 0.0
        %3154 = vadd.xlane.f32.xlu0 %v3153
        %v3155 = vpop.xlane.xlu0 %3154
        %v3156 = vsel %vm2675, %v2579, 0.0
        %3157 = vadd.xlane.f32.xlu0 %v3156
        %v3158 = vpop.xlane.xlu0 %3157
        %v3159 = vsel %vm2675, %v2580, 0.0
        %3160 = vadd.xlane.f32.xlu0 %v3159
        %v3161 = vpop.xlane.xlu0 %3160
        %v3162 = vsel %vm2675, %v2581, 0.0
        %3163 = vadd.xlane.f32.xlu0 %v3162
        %v3164 = vpop.xlane.xlu0 %3163
        %v3165 = vsel %vm2675, %v2582, 0.0
        %3166 = vadd.xlane.f32.xlu0 %v3165
        %v3167 = vpop.xlane.xlu0 %3166
        %v3168 = vsel %vm2675, %v2583, 0.0
        %3169 = vadd.xlane.f32.xlu0 %v3168
        %v3170 = vpop.xlane.xlu0 %3169
        %v3171 = vsel %vm2675, %v2584, 0.0
        %3172 = vadd.xlane.f32.xlu0 %v3171
        %v3173 = vpop.xlane.xlu0 %3172
        %v3174 = vsel %vm2675, %v2585, 0.0
        %3175 = vadd.xlane.f32.xlu0 %v3174
        %v3176 = vpop.xlane.xlu0 %3175
        %v3177 = vsel %vm2675, %v2586, 0.0
        %3178 = vadd.xlane.f32.xlu0 %v3177
        %v3179 = vpop.xlane.xlu0 %3178
        %v3180 = vsel %vm2675, %v2587, 0.0
        %3181 = vadd.xlane.f32.xlu0 %v3180
        %v3182 = vpop.xlane.xlu0 %3181
        %v3183 = vsel %vm2675, %v2588, 0.0
        %3184 = vadd.xlane.f32.xlu0 %v3183
        %v3185 = vpop.xlane.xlu0 %3184
        %v3186 = vsel %vm2675, %v2589, 0.0
        %3187 = vadd.xlane.f32.xlu0 %v3186
        %v3188 = vpop.xlane.xlu0 %3187
        %v3189 = vsel %vm2675, %v2590, 0.0
        %3190 = vadd.xlane.f32.xlu0 %v3189
        %v3191 = vpop.xlane.xlu0 %3190
        %v3192 = vsel %vm2675, %v2591, 0.0
        %3193 = vadd.xlane.f32.xlu0 %v3192
        %v3194 = vpop.xlane.xlu0 %3193
        %v3195 = vsel %vm2675, %v2592, 0.0
        %3196 = vadd.xlane.f32.xlu0 %v3195
        %v3197 = vpop.xlane.xlu0 %3196
        %v3198 = vsel %vm2675, %v2593, 0.0
        %3199 = vadd.xlane.f32.xlu0 %v3198
        %v3200 = vpop.xlane.xlu0 %3199
        %v3201 = vsel %vm2675, %v2594, 0.0
        %3202 = vadd.xlane.f32.xlu0 %v3201
        %v3203 = vpop.xlane.xlu0 %3202
        %v3204 = vsel %vm2675, %v2595, 0.0
        %3205 = vadd.xlane.f32.xlu0 %v3204
        %v3206 = vpop.xlane.xlu0 %3205
        %v3207 = vsel %vm2675, %v2596, 0.0
        %3208 = vadd.xlane.f32.xlu0 %v3207
        %v3209 = vpop.xlane.xlu0 %3208
        %v3210 = vsel %vm2675, %v2597, 0.0
        %3211 = vadd.xlane.f32.xlu0 %v3210
        %v3212 = vpop.xlane.xlu0 %3211
        %v3213 = vsel %vm2675, %v2598, 0.0
        %3214 = vadd.xlane.f32.xlu0 %v3213
        %v3215 = vpop.xlane.xlu0 %3214
        %v3216 = vsel %vm2675, %v2599, 0.0
        %3217 = vadd.xlane.f32.xlu0 %v3216
        %v3218 = vpop.xlane.xlu0 %3217
        %v3219 = vsel %vm2675, %v2600, 0.0
        %3220 = vadd.xlane.f32.xlu0 %v3219
        %v3221 = vpop.xlane.xlu0 %3220
        %v3222 = vsel %vm2675, %v2601, 0.0
        %3223 = vadd.xlane.f32.xlu0 %v3222
        %v3224 = vpop.xlane.xlu0 %3223
        %v3225 = vsel %vm2675, %v2602, 0.0
        %3226 = vadd.xlane.f32.xlu0 %v3225
        %v3227 = vpop.xlane.xlu0 %3226
        %v3228 = vsel %vm2675, %v2603, 0.0
        %3229 = vadd.xlane.f32.xlu0 %v3228
        %v3230 = vpop.xlane.xlu0 %3229
        %v3231 = vsel %vm2675, %v2604, 0.0
        %3232 = vadd.xlane.f32.xlu0 %v3231
        %v3233 = vpop.xlane.xlu0 %3232
        %v3234 = vsel %vm2675, %v2605, 0.0
        %3235 = vadd.xlane.f32.xlu0 %v3234
        %v3236 = vpop.xlane.xlu0 %3235
        %v3237 = vsel %vm2675, %v2606, 0.0
        %3238 = vadd.xlane.f32.xlu0 %v3237
        %v3239 = vpop.xlane.xlu0 %3238
        %v3240 = vsel %vm2675, %v2607, 0.0
        %3241 = vadd.xlane.f32.xlu0 %v3240
        %v3242 = vpop.xlane.xlu0 %3241
        %v3243 = vsel %vm2675, %v2608, 0.0
        %3244 = vadd.xlane.f32.xlu0 %v3243
        %v3245 = vpop.xlane.xlu0 %3244
        %v3246 = vsel %vm2675, %v2609, 0.0
        %3247 = vadd.xlane.f32.xlu0 %v3246
        %v3248 = vpop.xlane.xlu0 %3247
        %v3249 = vsel %vm2675, %v2610, 0.0
        %3250 = vadd.xlane.f32.xlu0 %v3249
        %v3251 = vpop.xlane.xlu0 %3250
        %v3252 = vsel %vm2675, %v2611, 0.0
        %3253 = vadd.xlane.f32.xlu0 %v3252
        %v3254 = vpop.xlane.xlu0 %3253
        %v3255 = vsel %vm2675, %v2612, 0.0
        %3256 = vadd.xlane.f32.xlu0 %v3255
        %v3257 = vpop.xlane.xlu0 %3256
        %v3258 = vsel %vm2675, %v2613, 0.0
        %3259 = vadd.xlane.f32.xlu0 %v3258
        %v3260 = vpop.xlane.xlu0 %3259
        %v3261 = vsel %vm2675, %v2614, 0.0
        %3262 = vadd.xlane.f32.xlu0 %v3261
        %v3263 = vpop.xlane.xlu0 %3262
        %v3264 = vsel %vm2675, %v2615, 0.0
        %3265 = vadd.xlane.f32.xlu0 %v3264
        %v3266 = vpop.xlane.xlu0 %3265
        %v3267 = vsel %vm2675, %v2616, 0.0
        %3268 = vadd.xlane.f32.xlu0 %v3267
        %v3269 = vpop.xlane.xlu0 %3268
        %v3270 = vsel %vm2675, %v2617, 0.0
        %3271 = vadd.xlane.f32.xlu0 %v3270
        %v3272 = vpop.xlane.xlu0 %3271
        %v3273 = vsel %vm2675, %v2618, 0.0
        %3274 = vadd.xlane.f32.xlu0 %v3273
        %v3275 = vpop.xlane.xlu0 %3274
        %v3276 = vsel %vm2675, %v2619, 0.0
        %3277 = vadd.xlane.f32.xlu0 %v3276
        %v3278 = vpop.xlane.xlu0 %3277
        %v3279 = vsel %vm2675, %v2620, 0.0
        %3280 = vadd.xlane.f32.xlu0 %v3279
        %v3281 = vpop.xlane.xlu0 %3280
        %v3282 = vsel %vm2675, %v2621, 0.0
        %3283 = vadd.xlane.f32.xlu0 %v3282
        %v3284 = vpop.xlane.xlu0 %3283
        %v3285 = vsel %vm2675, %v2622, 0.0
        %3286 = vadd.xlane.f32.xlu0 %v3285
        %v3287 = vpop.xlane.xlu0 %3286
        %v3288 = vsel %vm2675, %v2623, 0.0
        %3289 = vadd.xlane.f32.xlu0 %v3288
        %v3290 = vpop.xlane.xlu0 %3289
        %v3291 = vsel %vm2675, %v2624, 0.0
        %3292 = vadd.xlane.f32.xlu0 %v3291
        %v3293 = vpop.xlane.xlu0 %3292
        %v3294 = vsel %vm2675, %v2625, 0.0
        %3295 = vadd.xlane.f32.xlu0 %v3294
        %v3296 = vpop.xlane.xlu0 %3295
        %v3297 = vsel %vm2675, %v2626, 0.0
        %3298 = vadd.xlane.f32.xlu0 %v3297
        %v3299 = vpop.xlane.xlu0 %3298
        %v3300 = vsel %vm2675, %v2627, 0.0
        %3301 = vadd.xlane.f32.xlu0 %v3300
        %v3302 = vpop.xlane.xlu0 %3301
        %v3303 = vsel %vm2675, %v2628, 0.0
        %3304 = vadd.xlane.f32.xlu0 %v3303
        %v3305 = vpop.xlane.xlu0 %3304
        %v3306 = vsel %vm2675, %v2629, 0.0
        %3307 = vadd.xlane.f32.xlu0 %v3306
        %v3308 = vpop.xlane.xlu0 %3307
        %v3309 = vsel %vm2675, %v2630, 0.0
        %3310 = vadd.xlane.f32.xlu0 %v3309
        %v3311 = vpop.xlane.xlu0 %3310
        %v3312 = vsel %vm2675, %v2631, 0.0
        %3313 = vadd.xlane.f32.xlu0 %v3312
        %v3314 = vpop.xlane.xlu0 %3313
        %v3315 = vsel %vm2675, %v2632, 0.0
        %3316 = vadd.xlane.f32.xlu0 %v3315
        %v3317 = vpop.xlane.xlu0 %3316
        %v3318 = vsel %vm2675, %v2633, 0.0
        %3319 = vadd.xlane.f32.xlu0 %v3318
        %v3320 = vpop.xlane.xlu0 %3319
        %v3321 = vsel %vm2675, %v2634, 0.0
        %3322 = vadd.xlane.f32.xlu0 %v3321
        %v3323 = vpop.xlane.xlu0 %3322
        %v3324 = vsel %vm2675, %v2635, 0.0
        %3325 = vadd.xlane.f32.xlu0 %v3324
        %v3326 = vpop.xlane.xlu0 %3325
        %v3327 = vsel %vm2675, %v2636, 0.0
        %3328 = vadd.xlane.f32.xlu0 %v3327
        %v3329 = vpop.xlane.xlu0 %3328
        %v3330 = vsel %vm2675, %v2637, 0.0
        %3331 = vadd.xlane.f32.xlu0 %v3330
        %v3332 = vpop.xlane.xlu0 %3331
        %v3333 = vsel %vm2675, %v2638, 0.0
        %3334 = vadd.xlane.f32.xlu0 %v3333
        %v3335 = vpop.xlane.xlu0 %3334
        %v3336 = vsel %vm2675, %v2639, 0.0
        %3337 = vadd.xlane.f32.xlu0 %v3336
        %v3338 = vpop.xlane.xlu0 %3337
        %v3339 = vsel %vm2675, %v2640, 0.0
        %3340 = vadd.xlane.f32.xlu0 %v3339
        %v3341 = vpop.xlane.xlu0 %3340
        %v3342 = vsel %vm2675, %v2641, 0.0
        %3343 = vadd.xlane.f32.xlu0 %v3342
        %v3344 = vpop.xlane.xlu0 %3343
        %v3345 = vsel %vm2675, %v2642, 0.0
        %3346 = vadd.xlane.f32.xlu0 %v3345
        %v3347 = vpop.xlane.xlu0 %3346
        %v3348 = vsel %vm2675, %v2643, 0.0
        %3349 = vadd.xlane.f32.xlu0 %v3348
        %v3350 = vpop.xlane.xlu0 %3349
        %v3351 = vsel %vm2675, %v2644, 0.0
        %3352 = vadd.xlane.f32.xlu0 %v3351
        %v3353 = vpop.xlane.xlu0 %3352
        %v3354 = vsel %vm2675, %v2645, 0.0
        %3355 = vadd.xlane.f32.xlu0 %v3354
        %v3356 = vpop.xlane.xlu0 %3355
        %v3357 = vsel %vm2675, %v2646, 0.0
        %3358 = vadd.xlane.f32.xlu0 %v3357
        %v3359 = vpop.xlane.xlu0 %3358
        %v3360 = vsel %vm2675, %v2647, 0.0
        %3361 = vadd.xlane.f32.xlu0 %v3360
        %v3362 = vpop.xlane.xlu0 %3361
        %v3363 = vsel %vm2675, %v2648, 0.0
        %3364 = vadd.xlane.f32.xlu0 %v3363
        %v3365 = vpop.xlane.xlu0 %3364
        %v3366 = vsel %vm2675, %v2649, 0.0
        %3367 = vadd.xlane.f32.xlu0 %v3366
        %v3368 = vpop.xlane.xlu0 %3367
        %v3369 = vsel %vm2675, %v2650, 0.0
        %3370 = vadd.xlane.f32.xlu0 %v3369
        %v3371 = vpop.xlane.xlu0 %3370
        %v3372 = vsel %vm2675, %v2651, 0.0
        %3373 = vadd.xlane.f32.xlu0 %v3372
        %v3374 = vpop.xlane.xlu0 %3373
        %v3375 = vsel %vm2675, %v2652, 0.0
        %3376 = vadd.xlane.f32.xlu0 %v3375
        %v3377 = vpop.xlane.xlu0 %3376
        %v3378 = vsel %vm2675, %v2653, 0.0
        %3379 = vadd.xlane.f32.xlu0 %v3378
        %v3380 = vpop.xlane.xlu0 %3379
        %v3381 = vsel %vm2675, %v2654, 0.0
        %3382 = vadd.xlane.f32.xlu0 %v3381
        %v3383 = vpop.xlane.xlu0 %3382
        %v3384 = vsel %vm2675, %v2655, 0.0
        %3385 = vadd.xlane.f32.xlu0 %v3384
        %v3386 = vpop.xlane.xlu0 %3385
        %v3387 = vsel %vm2675, %v2656, 0.0
        %3388 = vadd.xlane.f32.xlu0 %v3387
        %v3389 = vpop.xlane.xlu0 %3388
        %v3390 = vsel %vm2675, %v2657, 0.0
        %3391 = vadd.xlane.f32.xlu0 %v3390
        %v3392 = vpop.xlane.xlu0 %3391
        %v3393 = vsel %vm2675, %v2658, 0.0
        %3394 = vadd.xlane.f32.xlu0 %v3393
        %v3395 = vpop.xlane.xlu0 %3394
        %v3396 = vsel %vm2675, %v2659, 0.0
        %3397 = vadd.xlane.f32.xlu0 %v3396
        %v3398 = vpop.xlane.xlu0 %3397
        %v3399 = vsel %vm2675, %v2660, 0.0
        %3400 = vadd.xlane.f32.xlu0 %v3399
        %v3401 = vpop.xlane.xlu0 %3400
        %v3402 = vsel %vm2675, %v2661, 0.0
        %3403 = vadd.xlane.f32.xlu0 %v3402
        %v3404 = vpop.xlane.xlu0 %3403
        %v3405 = vsel %vm2675, %v2662, 0.0
        %3406 = vadd.xlane.f32.xlu0 %v3405
        %v3407 = vpop.xlane.xlu0 %3406
        %v3408 = vsel %vm2675, %v2663, 0.0
        %3409 = vadd.xlane.f32.xlu0 %v3408
        %v3410 = vpop.xlane.xlu0 %3409
        %v3411 = vsel %vm2675, %v2664, 0.0
        %3412 = vadd.xlane.f32.xlu0 %v3411
        %v3413 = vpop.xlane.xlu0 %3412
        %v3414 = vsel %vm2675, %v2665, 0.0
        %3415 = vadd.xlane.f32.xlu0 %v3414
        %v3416 = vpop.xlane.xlu0 %3415
        %v3417 = vsel %vm2675, %v2666, 0.0
        %3418 = vadd.xlane.f32.xlu0 %v3417
        %v3419 = vpop.xlane.xlu0 %3418
        %v3420 = vsel %vm2675, %v2667, 0.0
        %3421 = vadd.xlane.f32.xlu0 %v3420
        %v3422 = vpop.xlane.xlu0 %3421
        %v3423 = vsel %vm2675, %v2668, 0.0
        %3424 = vadd.xlane.f32.xlu0 %v3423
        %v3425 = vpop.xlane.xlu0 %3424
        %v3426 = vsel %vm2675, %v2669, 0.0
        %3427 = vadd.xlane.f32.xlu0 %v3426
        %v3428 = vpop.xlane.xlu0 %3427
        %v3429 = vsel %vm2675, %v2670, 0.0
        %3430 = vadd.xlane.f32.xlu0 %v3429
        %v3431 = vpop.xlane.xlu0 %3430
        %v3432 = vsel %vm2675, %v2671, 0.0
        %3433 = vadd.xlane.f32.xlu0 %v3432
        %v3434 = vpop.xlane.xlu0 %3433
        %v3435 = vsel %vm2675, %v2672, 0.0
        %3436 = vadd.xlane.f32.xlu0 %v3435
        %v3437 = vpop.xlane.xlu0 %3436
        %v3438 = vsel %vm2675, %v2673, 0.0
        %3439 = vadd.xlane.f32.xlu0 %v3438
        %v3440 = vpop.xlane.xlu0 %3439
        %v3441 = vsel %vm2675, %v2674, 0.0
        %3442 = vadd.xlane.f32.xlu0 %v3441
        %v3443 = vpop.xlane.xlu0 %3442
        %s3444 = smul.u32 %s29, 256
        %v3701 = vlaneseq
        %v3702 = vand.u32 %v3701, 127
        %v3703 = vlaneseq
        %v3704 = vshrl.u32 %v3703, 7
        %v3705 = vsub.s32 %v3702, %v3704
        %v3706 = vrot.slane %v2678, %v3705
        %v3707 = vlaneseq
        %v3708 = vshrl.u32 %v3707, 7
        %v3709 = vsub.s32 %v3702, %v3708
        %v3710 = vrot.slane %v2681, %v3709
        %v3711 = vlaneseq
        %v3712 = vshrl.u32 %v3711, 7
        %v3713 = vsub.s32 %v3702, %v3712
        %v3714 = vrot.slane %v2684, %v3713
        %v3715 = vlaneseq
        %v3716 = vshrl.u32 %v3715, 7
        %v3717 = vsub.s32 %v3702, %v3716
        %v3718 = vrot.slane %v2687, %v3717
        %v3719 = vlaneseq
        %v3720 = vshrl.u32 %v3719, 7
        %v3721 = vsub.s32 %v3702, %v3720
        %v3722 = vrot.slane %v2690, %v3721
        %v3723 = vlaneseq
        %v3724 = vshrl.u32 %v3723, 7
        %v3725 = vsub.s32 %v3702, %v3724
        %v3726 = vrot.slane %v2693, %v3725
        %v3727 = vlaneseq
        %v3728 = vshrl.u32 %v3727, 7
        %v3729 = vsub.s32 %v3702, %v3728
        %v3730 = vrot.slane %v2696, %v3729
        %v3731 = vlaneseq
        %v3732 = vshrl.u32 %v3731, 7
        %v3733 = vsub.s32 %v3702, %v3732
        %v3734 = vrot.slane %v2699, %v3733
        %v3735 = vlaneseq
        %v3736 = vshrl.u32 %v3735, 7
        %v3737 = vsub.s32 %v3702, %v3736
        %v3738 = vrot.slane %v2702, %v3737
        %v3739 = vlaneseq
        %v3740 = vshrl.u32 %v3739, 7
        %v3741 = vsub.s32 %v3702, %v3740
        %v3742 = vrot.slane %v2705, %v3741
        %v3743 = vlaneseq
        %v3744 = vshrl.u32 %v3743, 7
        %v3745 = vsub.s32 %v3702, %v3744
        %v3746 = vrot.slane %v2708, %v3745
        %v3747 = vlaneseq
        %v3748 = vshrl.u32 %v3747, 7
        %v3749 = vsub.s32 %v3702, %v3748
        %v3750 = vrot.slane %v2711, %v3749
        %v3751 = vlaneseq
        %v3752 = vshrl.u32 %v3751, 7
        %v3753 = vsub.s32 %v3702, %v3752
        %v3754 = vrot.slane %v2714, %v3753
        %v3755 = vlaneseq
        %v3756 = vshrl.u32 %v3755, 7
        %v3757 = vsub.s32 %v3702, %v3756
        %v3758 = vrot.slane %v2717, %v3757
        %v3759 = vlaneseq
        %v3760 = vshrl.u32 %v3759, 7
        %v3761 = vsub.s32 %v3702, %v3760
        %v3762 = vrot.slane %v2720, %v3761
        %v3763 = vlaneseq
        %v3764 = vshrl.u32 %v3763, 7
        %v3765 = vsub.s32 %v3702, %v3764
        %v3766 = vrot.slane %v2723, %v3765
        %v3767 = vlaneseq
        %v3768 = vshrl.u32 %v3767, 7
        %v3769 = vsub.s32 %v3702, %v3768
        %v3770 = vrot.slane %v2726, %v3769
        %v3771 = vlaneseq
        %v3772 = vshrl.u32 %v3771, 7
        %v3773 = vsub.s32 %v3702, %v3772
        %v3774 = vrot.slane %v2729, %v3773
        %v3775 = vlaneseq
        %v3776 = vshrl.u32 %v3775, 7
        %v3777 = vsub.s32 %v3702, %v3776
        %v3778 = vrot.slane %v2732, %v3777
        %v3779 = vlaneseq
        %v3780 = vshrl.u32 %v3779, 7
        %v3781 = vsub.s32 %v3702, %v3780
        %v3782 = vrot.slane %v2735, %v3781
        %v3783 = vlaneseq
        %v3784 = vshrl.u32 %v3783, 7
        %v3785 = vsub.s32 %v3702, %v3784
        %v3786 = vrot.slane %v2738, %v3785
        %v3787 = vlaneseq
        %v3788 = vshrl.u32 %v3787, 7
        %v3789 = vsub.s32 %v3702, %v3788
        %v3790 = vrot.slane %v2741, %v3789
        %v3791 = vlaneseq
        %v3792 = vshrl.u32 %v3791, 7
        %v3793 = vsub.s32 %v3702, %v3792
        %v3794 = vrot.slane %v2744, %v3793
        %v3795 = vlaneseq
        %v3796 = vshrl.u32 %v3795, 7
        %v3797 = vsub.s32 %v3702, %v3796
        %v3798 = vrot.slane %v2747, %v3797
        %v3799 = vlaneseq
        %v3800 = vshrl.u32 %v3799, 7
        %v3801 = vsub.s32 %v3702, %v3800
        %v3802 = vrot.slane %v2750, %v3801
        %v3803 = vlaneseq
        %v3804 = vshrl.u32 %v3803, 7
        %v3805 = vsub.s32 %v3702, %v3804
        %v3806 = vrot.slane %v2753, %v3805
        %v3807 = vlaneseq
        %v3808 = vshrl.u32 %v3807, 7
        %v3809 = vsub.s32 %v3702, %v3808
        %v3810 = vrot.slane %v2756, %v3809
        %v3811 = vlaneseq
        %v3812 = vshrl.u32 %v3811, 7
        %v3813 = vsub.s32 %v3702, %v3812
        %v3814 = vrot.slane %v2759, %v3813
        %v3815 = vlaneseq
        %v3816 = vshrl.u32 %v3815, 7
        %v3817 = vsub.s32 %v3702, %v3816
        %v3818 = vrot.slane %v2762, %v3817
        %v3819 = vlaneseq
        %v3820 = vshrl.u32 %v3819, 7
        %v3821 = vsub.s32 %v3702, %v3820
        %v3822 = vrot.slane %v2765, %v3821
        %v3823 = vlaneseq
        %v3824 = vshrl.u32 %v3823, 7
        %v3825 = vsub.s32 %v3702, %v3824
        %v3826 = vrot.slane %v2768, %v3825
        %v3827 = vlaneseq
        %v3828 = vshrl.u32 %v3827, 7
        %v3829 = vsub.s32 %v3702, %v3828
        %v3830 = vrot.slane %v2771, %v3829
        %v3831 = vlaneseq
        %v3832 = vshrl.u32 %v3831, 7
        %v3833 = vsub.s32 %v3702, %v3832
        %v3834 = vrot.slane %v2774, %v3833
        %v3835 = vlaneseq
        %v3836 = vshrl.u32 %v3835, 7
        %v3837 = vsub.s32 %v3702, %v3836
        %v3838 = vrot.slane %v2777, %v3837
        %v3839 = vlaneseq
        %v3840 = vshrl.u32 %v3839, 7
        %v3841 = vsub.s32 %v3702, %v3840
        %v3842 = vrot.slane %v2780, %v3841
        %v3843 = vlaneseq
        %v3844 = vshrl.u32 %v3843, 7
        %v3845 = vsub.s32 %v3702, %v3844
        %v3846 = vrot.slane %v2783, %v3845
        %v3847 = vlaneseq
        %v3848 = vshrl.u32 %v3847, 7
        %v3849 = vsub.s32 %v3702, %v3848
        %v3850 = vrot.slane %v2786, %v3849
        %v3851 = vlaneseq
        %v3852 = vshrl.u32 %v3851, 7
        %v3853 = vsub.s32 %v3702, %v3852
        %v3854 = vrot.slane %v2789, %v3853
        %v3855 = vlaneseq
        %v3856 = vshrl.u32 %v3855, 7
        %v3857 = vsub.s32 %v3702, %v3856
        %v3858 = vrot.slane %v2792, %v3857
        %v3859 = vlaneseq
        %v3860 = vshrl.u32 %v3859, 7
        %v3861 = vsub.s32 %v3702, %v3860
        %v3862 = vrot.slane %v2795, %v3861
        %v3863 = vlaneseq
        %v3864 = vshrl.u32 %v3863, 7
        %v3865 = vsub.s32 %v3702, %v3864
        %v3866 = vrot.slane %v2798, %v3865
        %v3867 = vlaneseq
        %v3868 = vshrl.u32 %v3867, 7
        %v3869 = vsub.s32 %v3702, %v3868
        %v3870 = vrot.slane %v2801, %v3869
        %v3871 = vlaneseq
        %v3872 = vshrl.u32 %v3871, 7
        %v3873 = vsub.s32 %v3702, %v3872
        %v3874 = vrot.slane %v2804, %v3873
        %v3875 = vlaneseq
        %v3876 = vshrl.u32 %v3875, 7
        %v3877 = vsub.s32 %v3702, %v3876
        %v3878 = vrot.slane %v2807, %v3877
        %v3879 = vlaneseq
        %v3880 = vshrl.u32 %v3879, 7
        %v3881 = vsub.s32 %v3702, %v3880
        %v3882 = vrot.slane %v2810, %v3881
        %v3883 = vlaneseq
        %v3884 = vshrl.u32 %v3883, 7
        %v3885 = vsub.s32 %v3702, %v3884
        %v3886 = vrot.slane %v2813, %v3885
        %v3887 = vlaneseq
        %v3888 = vshrl.u32 %v3887, 7
        %v3889 = vsub.s32 %v3702, %v3888
        %v3890 = vrot.slane %v2816, %v3889
        %v3891 = vlaneseq
        %v3892 = vshrl.u32 %v3891, 7
        %v3893 = vsub.s32 %v3702, %v3892
        %v3894 = vrot.slane %v2819, %v3893
        %v3895 = vlaneseq
        %v3896 = vshrl.u32 %v3895, 7
        %v3897 = vsub.s32 %v3702, %v3896
        %v3898 = vrot.slane %v2822, %v3897
        %v3899 = vlaneseq
        %v3900 = vshrl.u32 %v3899, 7
        %v3901 = vsub.s32 %v3702, %v3900
        %v3902 = vrot.slane %v2825, %v3901
        %v3903 = vlaneseq
        %v3904 = vshrl.u32 %v3903, 7
        %v3905 = vsub.s32 %v3702, %v3904
        %v3906 = vrot.slane %v2828, %v3905
        %v3907 = vlaneseq
        %v3908 = vshrl.u32 %v3907, 7
        %v3909 = vsub.s32 %v3702, %v3908
        %v3910 = vrot.slane %v2831, %v3909
        %v3911 = vlaneseq
        %v3912 = vshrl.u32 %v3911, 7
        %v3913 = vsub.s32 %v3702, %v3912
        %v3914 = vrot.slane %v2834, %v3913
        %v3915 = vlaneseq
        %v3916 = vshrl.u32 %v3915, 7
        %v3917 = vsub.s32 %v3702, %v3916
        %v3918 = vrot.slane %v2837, %v3917
        %v3919 = vlaneseq
        %v3920 = vshrl.u32 %v3919, 7
        %v3921 = vsub.s32 %v3702, %v3920
        %v3922 = vrot.slane %v2840, %v3921
        %v3923 = vlaneseq
        %v3924 = vshrl.u32 %v3923, 7
        %v3925 = vsub.s32 %v3702, %v3924
        %v3926 = vrot.slane %v2843, %v3925
        %v3927 = vlaneseq
        %v3928 = vshrl.u32 %v3927, 7
        %v3929 = vsub.s32 %v3702, %v3928
        %v3930 = vrot.slane %v2846, %v3929
        %v3931 = vlaneseq
        %v3932 = vshrl.u32 %v3931, 7
        %v3933 = vsub.s32 %v3702, %v3932
        %v3934 = vrot.slane %v2849, %v3933
        %v3935 = vlaneseq
        %v3936 = vshrl.u32 %v3935, 7
        %v3937 = vsub.s32 %v3702, %v3936
        %v3938 = vrot.slane %v2852, %v3937
        %v3939 = vlaneseq
        %v3940 = vshrl.u32 %v3939, 7
        %v3941 = vsub.s32 %v3702, %v3940
        %v3942 = vrot.slane %v2855, %v3941
        %v3943 = vlaneseq
        %v3944 = vshrl.u32 %v3943, 7
        %v3945 = vsub.s32 %v3702, %v3944
        %v3946 = vrot.slane %v2858, %v3945
        %v3947 = vlaneseq
        %v3948 = vshrl.u32 %v3947, 7
        %v3949 = vsub.s32 %v3702, %v3948
        %v3950 = vrot.slane %v2861, %v3949
        %v3951 = vlaneseq
        %v3952 = vshrl.u32 %v3951, 7
        %v3953 = vsub.s32 %v3702, %v3952
        %v3954 = vrot.slane %v2864, %v3953
        %v3955 = vlaneseq
        %v3956 = vshrl.u32 %v3955, 7
        %v3957 = vsub.s32 %v3702, %v3956
        %v3958 = vrot.slane %v2867, %v3957
        %v3959 = vlaneseq
        %v3960 = vshrl.u32 %v3959, 7
        %v3961 = vsub.s32 %v3702, %v3960
        %v3962 = vrot.slane %v2870, %v3961
        %v3963 = vlaneseq
        %v3964 = vshrl.u32 %v3963, 7
        %v3965 = vsub.s32 %v3702, %v3964
        %v3966 = vrot.slane %v2873, %v3965
        %v3967 = vlaneseq
        %v3968 = vshrl.u32 %v3967, 7
        %v3969 = vsub.s32 %v3702, %v3968
        %v3970 = vrot.slane %v2876, %v3969
        %v3971 = vlaneseq
        %v3972 = vshrl.u32 %v3971, 7
        %v3973 = vsub.s32 %v3702, %v3972
        %v3974 = vrot.slane %v2879, %v3973
        %v3975 = vlaneseq
        %v3976 = vshrl.u32 %v3975, 7
        %v3977 = vsub.s32 %v3702, %v3976
        %v3978 = vrot.slane %v2882, %v3977
        %v3979 = vlaneseq
        %v3980 = vshrl.u32 %v3979, 7
        %v3981 = vsub.s32 %v3702, %v3980
        %v3982 = vrot.slane %v2885, %v3981
        %v3983 = vlaneseq
        %v3984 = vshrl.u32 %v3983, 7
        %v3985 = vsub.s32 %v3702, %v3984
        %v3986 = vrot.slane %v2888, %v3985
        %v3987 = vlaneseq
        %v3988 = vshrl.u32 %v3987, 7
        %v3989 = vsub.s32 %v3702, %v3988
        %v3990 = vrot.slane %v2891, %v3989
        %v3991 = vlaneseq
        %v3992 = vshrl.u32 %v3991, 7
        %v3993 = vsub.s32 %v3702, %v3992
        %v3994 = vrot.slane %v2894, %v3993
        %v3995 = vlaneseq
        %v3996 = vshrl.u32 %v3995, 7
        %v3997 = vsub.s32 %v3702, %v3996
        %v3998 = vrot.slane %v2897, %v3997
        %v3999 = vlaneseq
        %v4000 = vshrl.u32 %v3999, 7
        %v4001 = vsub.s32 %v3702, %v4000
        %v4002 = vrot.slane %v2900, %v4001
        %v4003 = vlaneseq
        %v4004 = vshrl.u32 %v4003, 7
        %v4005 = vsub.s32 %v3702, %v4004
        %v4006 = vrot.slane %v2903, %v4005
        %v4007 = vlaneseq
        %v4008 = vshrl.u32 %v4007, 7
        %v4009 = vsub.s32 %v3702, %v4008
        %v4010 = vrot.slane %v2906, %v4009
        %v4011 = vlaneseq
        %v4012 = vshrl.u32 %v4011, 7
        %v4013 = vsub.s32 %v3702, %v4012
        %v4014 = vrot.slane %v2909, %v4013
        %v4015 = vlaneseq
        %v4016 = vshrl.u32 %v4015, 7
        %v4017 = vsub.s32 %v3702, %v4016
        %v4018 = vrot.slane %v2912, %v4017
        %v4019 = vlaneseq
        %v4020 = vshrl.u32 %v4019, 7
        %v4021 = vsub.s32 %v3702, %v4020
        %v4022 = vrot.slane %v2915, %v4021
        %v4023 = vlaneseq
        %v4024 = vshrl.u32 %v4023, 7
        %v4025 = vsub.s32 %v3702, %v4024
        %v4026 = vrot.slane %v2918, %v4025
        %v4027 = vlaneseq
        %v4028 = vshrl.u32 %v4027, 7
        %v4029 = vsub.s32 %v3702, %v4028
        %v4030 = vrot.slane %v2921, %v4029
        %v4031 = vlaneseq
        %v4032 = vshrl.u32 %v4031, 7
        %v4033 = vsub.s32 %v3702, %v4032
        %v4034 = vrot.slane %v2924, %v4033
        %v4035 = vlaneseq
        %v4036 = vshrl.u32 %v4035, 7
        %v4037 = vsub.s32 %v3702, %v4036
        %v4038 = vrot.slane %v2927, %v4037
        %v4039 = vlaneseq
        %v4040 = vshrl.u32 %v4039, 7
        %v4041 = vsub.s32 %v3702, %v4040
        %v4042 = vrot.slane %v2930, %v4041
        %v4043 = vlaneseq
        %v4044 = vshrl.u32 %v4043, 7
        %v4045 = vsub.s32 %v3702, %v4044
        %v4046 = vrot.slane %v2933, %v4045
        %v4047 = vlaneseq
        %v4048 = vshrl.u32 %v4047, 7
        %v4049 = vsub.s32 %v3702, %v4048
        %v4050 = vrot.slane %v2936, %v4049
        %v4051 = vlaneseq
        %v4052 = vshrl.u32 %v4051, 7
        %v4053 = vsub.s32 %v3702, %v4052
        %v4054 = vrot.slane %v2939, %v4053
        %v4055 = vlaneseq
        %v4056 = vshrl.u32 %v4055, 7
        %v4057 = vsub.s32 %v3702, %v4056
        %v4058 = vrot.slane %v2942, %v4057
        %v4059 = vlaneseq
        %v4060 = vshrl.u32 %v4059, 7
        %v4061 = vsub.s32 %v3702, %v4060
        %v4062 = vrot.slane %v2945, %v4061
        %v4063 = vlaneseq
        %v4064 = vshrl.u32 %v4063, 7
        %v4065 = vsub.s32 %v3702, %v4064
        %v4066 = vrot.slane %v2948, %v4065
        %v4067 = vlaneseq
        %v4068 = vshrl.u32 %v4067, 7
        %v4069 = vsub.s32 %v3702, %v4068
        %v4070 = vrot.slane %v2951, %v4069
        %v4071 = vlaneseq
        %v4072 = vshrl.u32 %v4071, 7
        %v4073 = vsub.s32 %v3702, %v4072
        %v4074 = vrot.slane %v2954, %v4073
        %v4075 = vlaneseq
        %v4076 = vshrl.u32 %v4075, 7
        %v4077 = vsub.s32 %v3702, %v4076
        %v4078 = vrot.slane %v2957, %v4077
        %v4079 = vlaneseq
        %v4080 = vshrl.u32 %v4079, 7
        %v4081 = vsub.s32 %v3702, %v4080
        %v4082 = vrot.slane %v2960, %v4081
        %v4083 = vlaneseq
        %v4084 = vshrl.u32 %v4083, 7
        %v4085 = vsub.s32 %v3702, %v4084
        %v4086 = vrot.slane %v2963, %v4085
        %v4087 = vlaneseq
        %v4088 = vshrl.u32 %v4087, 7
        %v4089 = vsub.s32 %v3702, %v4088
        %v4090 = vrot.slane %v2966, %v4089
        %v4091 = vlaneseq
        %v4092 = vshrl.u32 %v4091, 7
        %v4093 = vsub.s32 %v3702, %v4092
        %v4094 = vrot.slane %v2969, %v4093
        %v4095 = vlaneseq
        %v4096 = vshrl.u32 %v4095, 7
        %v4097 = vsub.s32 %v3702, %v4096
        %v4098 = vrot.slane %v2972, %v4097
        %v4099 = vlaneseq
        %v4100 = vshrl.u32 %v4099, 7
        %v4101 = vsub.s32 %v3702, %v4100
        %v4102 = vrot.slane %v2975, %v4101
        %v4103 = vlaneseq
        %v4104 = vshrl.u32 %v4103, 7
        %v4105 = vsub.s32 %v3702, %v4104
        %v4106 = vrot.slane %v2978, %v4105
        %v4107 = vlaneseq
        %v4108 = vshrl.u32 %v4107, 7
        %v4109 = vsub.s32 %v3702, %v4108
        %v4110 = vrot.slane %v2981, %v4109
        %v4111 = vlaneseq
        %v4112 = vshrl.u32 %v4111, 7
        %v4113 = vsub.s32 %v3702, %v4112
        %v4114 = vrot.slane %v2984, %v4113
        %v4115 = vlaneseq
        %v4116 = vshrl.u32 %v4115, 7
        %v4117 = vsub.s32 %v3702, %v4116
        %v4118 = vrot.slane %v2987, %v4117
        %v4119 = vlaneseq
        %v4120 = vshrl.u32 %v4119, 7
        %v4121 = vsub.s32 %v3702, %v4120
        %v4122 = vrot.slane %v2990, %v4121
        %v4123 = vlaneseq
        %v4124 = vshrl.u32 %v4123, 7
        %v4125 = vsub.s32 %v3702, %v4124
        %v4126 = vrot.slane %v2993, %v4125
        %v4127 = vlaneseq
        %v4128 = vshrl.u32 %v4127, 7
        %v4129 = vsub.s32 %v3702, %v4128
        %v4130 = vrot.slane %v2996, %v4129
        %v4131 = vlaneseq
        %v4132 = vshrl.u32 %v4131, 7
        %v4133 = vsub.s32 %v3702, %v4132
        %v4134 = vrot.slane %v2999, %v4133
        %v4135 = vlaneseq
        %v4136 = vshrl.u32 %v4135, 7
        %v4137 = vsub.s32 %v3702, %v4136
        %v4138 = vrot.slane %v3002, %v4137
        %v4139 = vlaneseq
        %v4140 = vshrl.u32 %v4139, 7
        %v4141 = vsub.s32 %v3702, %v4140
        %v4142 = vrot.slane %v3005, %v4141
        %v4143 = vlaneseq
        %v4144 = vshrl.u32 %v4143, 7
        %v4145 = vsub.s32 %v3702, %v4144
        %v4146 = vrot.slane %v3008, %v4145
        %v4147 = vlaneseq
        %v4148 = vshrl.u32 %v4147, 7
        %v4149 = vsub.s32 %v3702, %v4148
        %v4150 = vrot.slane %v3011, %v4149
        %v4151 = vlaneseq
        %v4152 = vshrl.u32 %v4151, 7
        %v4153 = vsub.s32 %v3702, %v4152
        %v4154 = vrot.slane %v3014, %v4153
        %v4155 = vlaneseq
        %v4156 = vshrl.u32 %v4155, 7
        %v4157 = vsub.s32 %v3702, %v4156
        %v4158 = vrot.slane %v3017, %v4157
        %v4159 = vlaneseq
        %v4160 = vshrl.u32 %v4159, 7
        %v4161 = vsub.s32 %v3702, %v4160
        %v4162 = vrot.slane %v3020, %v4161
        %v4163 = vlaneseq
        %v4164 = vshrl.u32 %v4163, 7
        %v4165 = vsub.s32 %v3702, %v4164
        %v4166 = vrot.slane %v3023, %v4165
        %v4167 = vlaneseq
        %v4168 = vshrl.u32 %v4167, 7
        %v4169 = vsub.s32 %v3702, %v4168
        %v4170 = vrot.slane %v3026, %v4169
        %v4171 = vlaneseq
        %v4172 = vshrl.u32 %v4171, 7
        %v4173 = vsub.s32 %v3702, %v4172
        %v4174 = vrot.slane %v3029, %v4173
        %v4175 = vlaneseq
        %v4176 = vshrl.u32 %v4175, 7
        %v4177 = vsub.s32 %v3702, %v4176
        %v4178 = vrot.slane %v3032, %v4177
        %v4179 = vlaneseq
        %v4180 = vshrl.u32 %v4179, 7
        %v4181 = vsub.s32 %v3702, %v4180
        %v4182 = vrot.slane %v3035, %v4181
        %v4183 = vlaneseq
        %v4184 = vshrl.u32 %v4183, 7
        %v4185 = vsub.s32 %v3702, %v4184
        %v4186 = vrot.slane %v3038, %v4185
        %v4187 = vlaneseq
        %v4188 = vshrl.u32 %v4187, 7
        %v4189 = vsub.s32 %v3702, %v4188
        %v4190 = vrot.slane %v3041, %v4189
        %v4191 = vlaneseq
        %v4192 = vshrl.u32 %v4191, 7
        %v4193 = vsub.s32 %v3702, %v4192
        %v4194 = vrot.slane %v3044, %v4193
        %v4195 = vlaneseq
        %v4196 = vshrl.u32 %v4195, 7
        %v4197 = vsub.s32 %v3702, %v4196
        %v4198 = vrot.slane %v3047, %v4197
        %v4199 = vlaneseq
        %v4200 = vshrl.u32 %v4199, 7
        %v4201 = vsub.s32 %v3702, %v4200
        %v4202 = vrot.slane %v3050, %v4201
        %v4203 = vlaneseq
        %v4204 = vshrl.u32 %v4203, 7
        %v4205 = vsub.s32 %v3702, %v4204
        %v4206 = vrot.slane %v3053, %v4205
        %v4207 = vlaneseq
        %v4208 = vshrl.u32 %v4207, 7
        %v4209 = vsub.s32 %v3702, %v4208
        %v4210 = vrot.slane %v3056, %v4209
        %v4211 = vlaneseq
        %v4212 = vshrl.u32 %v4211, 7
        %v4213 = vsub.s32 %v3702, %v4212
        %v4214 = vrot.slane %v3059, %v4213
        %v4215 = vlaneseq
        %v4216 = vshrl.u32 %v4215, 7
        %v4217 = vsub.s32 %v3702, %v4216
        %v4218 = vrot.slane %v3062, %v4217
        %v4219 = vlaneseq
        %v4220 = vshrl.u32 %v4219, 7
        %v4221 = vsub.s32 %v3702, %v4220
        %v4222 = vrot.slane %v3065, %v4221
        %v4223 = vlaneseq
        %v4224 = vshrl.u32 %v4223, 7
        %v4225 = vsub.s32 %v3702, %v4224
        %v4226 = vrot.slane %v3068, %v4225
        %v4227 = vlaneseq
        %v4228 = vshrl.u32 %v4227, 7
        %v4229 = vsub.s32 %v3702, %v4228
        %v4230 = vrot.slane %v3071, %v4229
        %v4231 = vlaneseq
        %v4232 = vshrl.u32 %v4231, 7
        %v4233 = vsub.s32 %v3702, %v4232
        %v4234 = vrot.slane %v3074, %v4233
        %v4235 = vlaneseq
        %v4236 = vshrl.u32 %v4235, 7
        %v4237 = vsub.s32 %v3702, %v4236
        %v4238 = vrot.slane %v3077, %v4237
        %v4239 = vlaneseq
        %v4240 = vshrl.u32 %v4239, 7
        %v4241 = vsub.s32 %v3702, %v4240
        %v4242 = vrot.slane %v3080, %v4241
        %v4243 = vlaneseq
        %v4244 = vshrl.u32 %v4243, 7
        %v4245 = vsub.s32 %v3702, %v4244
        %v4246 = vrot.slane %v3083, %v4245
        %v4247 = vlaneseq
        %v4248 = vshrl.u32 %v4247, 7
        %v4249 = vsub.s32 %v3702, %v4248
        %v4250 = vrot.slane %v3086, %v4249
        %v4251 = vlaneseq
        %v4252 = vshrl.u32 %v4251, 7
        %v4253 = vsub.s32 %v3702, %v4252
        %v4254 = vrot.slane %v3089, %v4253
        %v4255 = vlaneseq
        %v4256 = vshrl.u32 %v4255, 7
        %v4257 = vsub.s32 %v3702, %v4256
        %v4258 = vrot.slane %v3092, %v4257
        %v4259 = vlaneseq
        %v4260 = vshrl.u32 %v4259, 7
        %v4261 = vsub.s32 %v3702, %v4260
        %v4262 = vrot.slane %v3095, %v4261
        %v4263 = vlaneseq
        %v4264 = vshrl.u32 %v4263, 7
        %v4265 = vsub.s32 %v3702, %v4264
        %v4266 = vrot.slane %v3098, %v4265
        %v4267 = vlaneseq
        %v4268 = vshrl.u32 %v4267, 7
        %v4269 = vsub.s32 %v3702, %v4268
        %v4270 = vrot.slane %v3101, %v4269
        %v4271 = vlaneseq
        %v4272 = vshrl.u32 %v4271, 7
        %v4273 = vsub.s32 %v3702, %v4272
        %v4274 = vrot.slane %v3104, %v4273
        %v4275 = vlaneseq
        %v4276 = vshrl.u32 %v4275, 7
        %v4277 = vsub.s32 %v3702, %v4276
        %v4278 = vrot.slane %v3107, %v4277
        %v4279 = vlaneseq
        %v4280 = vshrl.u32 %v4279, 7
        %v4281 = vsub.s32 %v3702, %v4280
        %v4282 = vrot.slane %v3110, %v4281
        %v4283 = vlaneseq
        %v4284 = vshrl.u32 %v4283, 7
        %v4285 = vsub.s32 %v3702, %v4284
        %v4286 = vrot.slane %v3113, %v4285
        %v4287 = vlaneseq
        %v4288 = vshrl.u32 %v4287, 7
        %v4289 = vsub.s32 %v3702, %v4288
        %v4290 = vrot.slane %v3116, %v4289
        %v4291 = vlaneseq
        %v4292 = vshrl.u32 %v4291, 7
        %v4293 = vsub.s32 %v3702, %v4292
        %v4294 = vrot.slane %v3119, %v4293
        %v4295 = vlaneseq
        %v4296 = vshrl.u32 %v4295, 7
        %v4297 = vsub.s32 %v3702, %v4296
        %v4298 = vrot.slane %v3122, %v4297
        %v4299 = vlaneseq
        %v4300 = vshrl.u32 %v4299, 7
        %v4301 = vsub.s32 %v3702, %v4300
        %v4302 = vrot.slane %v3125, %v4301
        %v4303 = vlaneseq
        %v4304 = vshrl.u32 %v4303, 7
        %v4305 = vsub.s32 %v3702, %v4304
        %v4306 = vrot.slane %v3128, %v4305
        %v4307 = vlaneseq
        %v4308 = vshrl.u32 %v4307, 7
        %v4309 = vsub.s32 %v3702, %v4308
        %v4310 = vrot.slane %v3131, %v4309
        %v4311 = vlaneseq
        %v4312 = vshrl.u32 %v4311, 7
        %v4313 = vsub.s32 %v3702, %v4312
        %v4314 = vrot.slane %v3134, %v4313
        %v4315 = vlaneseq
        %v4316 = vshrl.u32 %v4315, 7
        %v4317 = vsub.s32 %v3702, %v4316
        %v4318 = vrot.slane %v3137, %v4317
        %v4319 = vlaneseq
        %v4320 = vshrl.u32 %v4319, 7
        %v4321 = vsub.s32 %v3702, %v4320
        %v4322 = vrot.slane %v3140, %v4321
        %v4323 = vlaneseq
        %v4324 = vshrl.u32 %v4323, 7
        %v4325 = vsub.s32 %v3702, %v4324
        %v4326 = vrot.slane %v3143, %v4325
        %v4327 = vlaneseq
        %v4328 = vshrl.u32 %v4327, 7
        %v4329 = vsub.s32 %v3702, %v4328
        %v4330 = vrot.slane %v3146, %v4329
        %v4331 = vlaneseq
        %v4332 = vshrl.u32 %v4331, 7
        %v4333 = vsub.s32 %v3702, %v4332
        %v4334 = vrot.slane %v3149, %v4333
        %v4335 = vlaneseq
        %v4336 = vshrl.u32 %v4335, 7
        %v4337 = vsub.s32 %v3702, %v4336
        %v4338 = vrot.slane %v3152, %v4337
        %v4339 = vlaneseq
        %v4340 = vshrl.u32 %v4339, 7
        %v4341 = vsub.s32 %v3702, %v4340
        %v4342 = vrot.slane %v3155, %v4341
        %v4343 = vlaneseq
        %v4344 = vshrl.u32 %v4343, 7
        %v4345 = vsub.s32 %v3702, %v4344
        %v4346 = vrot.slane %v3158, %v4345
        %v4347 = vlaneseq
        %v4348 = vshrl.u32 %v4347, 7
        %v4349 = vsub.s32 %v3702, %v4348
        %v4350 = vrot.slane %v3161, %v4349
        %v4351 = vlaneseq
        %v4352 = vshrl.u32 %v4351, 7
        %v4353 = vsub.s32 %v3702, %v4352
        %v4354 = vrot.slane %v3164, %v4353
        %v4355 = vlaneseq
        %v4356 = vshrl.u32 %v4355, 7
        %v4357 = vsub.s32 %v3702, %v4356
        %v4358 = vrot.slane %v3167, %v4357
        %v4359 = vlaneseq
        %v4360 = vshrl.u32 %v4359, 7
        %v4361 = vsub.s32 %v3702, %v4360
        %v4362 = vrot.slane %v3170, %v4361
        %v4363 = vlaneseq
        %v4364 = vshrl.u32 %v4363, 7
        %v4365 = vsub.s32 %v3702, %v4364
        %v4366 = vrot.slane %v3173, %v4365
        %v4367 = vlaneseq
        %v4368 = vshrl.u32 %v4367, 7
        %v4369 = vsub.s32 %v3702, %v4368
        %v4370 = vrot.slane %v3176, %v4369
        %v4371 = vlaneseq
        %v4372 = vshrl.u32 %v4371, 7
        %v4373 = vsub.s32 %v3702, %v4372
        %v4374 = vrot.slane %v3179, %v4373
        %v4375 = vlaneseq
        %v4376 = vshrl.u32 %v4375, 7
        %v4377 = vsub.s32 %v3702, %v4376
        %v4378 = vrot.slane %v3182, %v4377
        %v4379 = vlaneseq
        %v4380 = vshrl.u32 %v4379, 7
        %v4381 = vsub.s32 %v3702, %v4380
        %v4382 = vrot.slane %v3185, %v4381
        %v4383 = vlaneseq
        %v4384 = vshrl.u32 %v4383, 7
        %v4385 = vsub.s32 %v3702, %v4384
        %v4386 = vrot.slane %v3188, %v4385
        %v4387 = vlaneseq
        %v4388 = vshrl.u32 %v4387, 7
        %v4389 = vsub.s32 %v3702, %v4388
        %v4390 = vrot.slane %v3191, %v4389
        %v4391 = vlaneseq
        %v4392 = vshrl.u32 %v4391, 7
        %v4393 = vsub.s32 %v3702, %v4392
        %v4394 = vrot.slane %v3194, %v4393
        %v4395 = vlaneseq
        %v4396 = vshrl.u32 %v4395, 7
        %v4397 = vsub.s32 %v3702, %v4396
        %v4398 = vrot.slane %v3197, %v4397
        %v4399 = vlaneseq
        %v4400 = vshrl.u32 %v4399, 7
        %v4401 = vsub.s32 %v3702, %v4400
        %v4402 = vrot.slane %v3200, %v4401
        %v4403 = vlaneseq
        %v4404 = vshrl.u32 %v4403, 7
        %v4405 = vsub.s32 %v3702, %v4404
        %v4406 = vrot.slane %v3203, %v4405
        %v4407 = vlaneseq
        %v4408 = vshrl.u32 %v4407, 7
        %v4409 = vsub.s32 %v3702, %v4408
        %v4410 = vrot.slane %v3206, %v4409
        %v4411 = vlaneseq
        %v4412 = vshrl.u32 %v4411, 7
        %v4413 = vsub.s32 %v3702, %v4412
        %v4414 = vrot.slane %v3209, %v4413
        %v4415 = vlaneseq
        %v4416 = vshrl.u32 %v4415, 7
        %v4417 = vsub.s32 %v3702, %v4416
        %v4418 = vrot.slane %v3212, %v4417
        %v4419 = vlaneseq
        %v4420 = vshrl.u32 %v4419, 7
        %v4421 = vsub.s32 %v3702, %v4420
        %v4422 = vrot.slane %v3215, %v4421
        %v4423 = vlaneseq
        %v4424 = vshrl.u32 %v4423, 7
        %v4425 = vsub.s32 %v3702, %v4424
        %v4426 = vrot.slane %v3218, %v4425
        %v4427 = vlaneseq
        %v4428 = vshrl.u32 %v4427, 7
        %v4429 = vsub.s32 %v3702, %v4428
        %v4430 = vrot.slane %v3221, %v4429
        %v4431 = vlaneseq
        %v4432 = vshrl.u32 %v4431, 7
        %v4433 = vsub.s32 %v3702, %v4432
        %v4434 = vrot.slane %v3224, %v4433
        %v4435 = vlaneseq
        %v4436 = vshrl.u32 %v4435, 7
        %v4437 = vsub.s32 %v3702, %v4436
        %v4438 = vrot.slane %v3227, %v4437
        %v4439 = vlaneseq
        %v4440 = vshrl.u32 %v4439, 7
        %v4441 = vsub.s32 %v3702, %v4440
        %v4442 = vrot.slane %v3230, %v4441
        %v4443 = vlaneseq
        %v4444 = vshrl.u32 %v4443, 7
        %v4445 = vsub.s32 %v3702, %v4444
        %v4446 = vrot.slane %v3233, %v4445
        %v4447 = vlaneseq
        %v4448 = vshrl.u32 %v4447, 7
        %v4449 = vsub.s32 %v3702, %v4448
        %v4450 = vrot.slane %v3236, %v4449
        %v4451 = vlaneseq
        %v4452 = vshrl.u32 %v4451, 7
        %v4453 = vsub.s32 %v3702, %v4452
        %v4454 = vrot.slane %v3239, %v4453
        %v4455 = vlaneseq
        %v4456 = vshrl.u32 %v4455, 7
        %v4457 = vsub.s32 %v3702, %v4456
        %v4458 = vrot.slane %v3242, %v4457
        %v4459 = vlaneseq
        %v4460 = vshrl.u32 %v4459, 7
        %v4461 = vsub.s32 %v3702, %v4460
        %v4462 = vrot.slane %v3245, %v4461
        %v4463 = vlaneseq
        %v4464 = vshrl.u32 %v4463, 7
        %v4465 = vsub.s32 %v3702, %v4464
        %v4466 = vrot.slane %v3248, %v4465
        %v4467 = vlaneseq
        %v4468 = vshrl.u32 %v4467, 7
        %v4469 = vsub.s32 %v3702, %v4468
        %v4470 = vrot.slane %v3251, %v4469
        %v4471 = vlaneseq
        %v4472 = vshrl.u32 %v4471, 7
        %v4473 = vsub.s32 %v3702, %v4472
        %v4474 = vrot.slane %v3254, %v4473
        %v4475 = vlaneseq
        %v4476 = vshrl.u32 %v4475, 7
        %v4477 = vsub.s32 %v3702, %v4476
        %v4478 = vrot.slane %v3257, %v4477
        %v4479 = vlaneseq
        %v4480 = vshrl.u32 %v4479, 7
        %v4481 = vsub.s32 %v3702, %v4480
        %v4482 = vrot.slane %v3260, %v4481
        %v4483 = vlaneseq
        %v4484 = vshrl.u32 %v4483, 7
        %v4485 = vsub.s32 %v3702, %v4484
        %v4486 = vrot.slane %v3263, %v4485
        %v4487 = vlaneseq
        %v4488 = vshrl.u32 %v4487, 7
        %v4489 = vsub.s32 %v3702, %v4488
        %v4490 = vrot.slane %v3266, %v4489
        %v4491 = vlaneseq
        %v4492 = vshrl.u32 %v4491, 7
        %v4493 = vsub.s32 %v3702, %v4492
        %v4494 = vrot.slane %v3269, %v4493
        %v4495 = vlaneseq
        %v4496 = vshrl.u32 %v4495, 7
        %v4497 = vsub.s32 %v3702, %v4496
        %v4498 = vrot.slane %v3272, %v4497
        %v4499 = vlaneseq
        %v4500 = vshrl.u32 %v4499, 7
        %v4501 = vsub.s32 %v3702, %v4500
        %v4502 = vrot.slane %v3275, %v4501
        %v4503 = vlaneseq
        %v4504 = vshrl.u32 %v4503, 7
        %v4505 = vsub.s32 %v3702, %v4504
        %v4506 = vrot.slane %v3278, %v4505
        %v4507 = vlaneseq
        %v4508 = vshrl.u32 %v4507, 7
        %v4509 = vsub.s32 %v3702, %v4508
        %v4510 = vrot.slane %v3281, %v4509
        %v4511 = vlaneseq
        %v4512 = vshrl.u32 %v4511, 7
        %v4513 = vsub.s32 %v3702, %v4512
        %v4514 = vrot.slane %v3284, %v4513
        %v4515 = vlaneseq
        %v4516 = vshrl.u32 %v4515, 7
        %v4517 = vsub.s32 %v3702, %v4516
        %v4518 = vrot.slane %v3287, %v4517
        %v4519 = vlaneseq
        %v4520 = vshrl.u32 %v4519, 7
        %v4521 = vsub.s32 %v3702, %v4520
        %v4522 = vrot.slane %v3290, %v4521
        %v4523 = vlaneseq
        %v4524 = vshrl.u32 %v4523, 7
        %v4525 = vsub.s32 %v3702, %v4524
        %v4526 = vrot.slane %v3293, %v4525
        %v4527 = vlaneseq
        %v4528 = vshrl.u32 %v4527, 7
        %v4529 = vsub.s32 %v3702, %v4528
        %v4530 = vrot.slane %v3296, %v4529
        %v4531 = vlaneseq
        %v4532 = vshrl.u32 %v4531, 7
        %v4533 = vsub.s32 %v3702, %v4532
        %v4534 = vrot.slane %v3299, %v4533
        %v4535 = vlaneseq
        %v4536 = vshrl.u32 %v4535, 7
        %v4537 = vsub.s32 %v3702, %v4536
        %v4538 = vrot.slane %v3302, %v4537
        %v4539 = vlaneseq
        %v4540 = vshrl.u32 %v4539, 7
        %v4541 = vsub.s32 %v3702, %v4540
        %v4542 = vrot.slane %v3305, %v4541
        %v4543 = vlaneseq
        %v4544 = vshrl.u32 %v4543, 7
        %v4545 = vsub.s32 %v3702, %v4544
        %v4546 = vrot.slane %v3308, %v4545
        %v4547 = vlaneseq
        %v4548 = vshrl.u32 %v4547, 7
        %v4549 = vsub.s32 %v3702, %v4548
        %v4550 = vrot.slane %v3311, %v4549
        %v4551 = vlaneseq
        %v4552 = vshrl.u32 %v4551, 7
        %v4553 = vsub.s32 %v3702, %v4552
        %v4554 = vrot.slane %v3314, %v4553
        %v4555 = vlaneseq
        %v4556 = vshrl.u32 %v4555, 7
        %v4557 = vsub.s32 %v3702, %v4556
        %v4558 = vrot.slane %v3317, %v4557
        %v4559 = vlaneseq
        %v4560 = vshrl.u32 %v4559, 7
        %v4561 = vsub.s32 %v3702, %v4560
        %v4562 = vrot.slane %v3320, %v4561
        %v4563 = vlaneseq
        %v4564 = vshrl.u32 %v4563, 7
        %v4565 = vsub.s32 %v3702, %v4564
        %v4566 = vrot.slane %v3323, %v4565
        %v4567 = vlaneseq
        %v4568 = vshrl.u32 %v4567, 7
        %v4569 = vsub.s32 %v3702, %v4568
        %v4570 = vrot.slane %v3326, %v4569
        %v4571 = vlaneseq
        %v4572 = vshrl.u32 %v4571, 7
        %v4573 = vsub.s32 %v3702, %v4572
        %v4574 = vrot.slane %v3329, %v4573
        %v4575 = vlaneseq
        %v4576 = vshrl.u32 %v4575, 7
        %v4577 = vsub.s32 %v3702, %v4576
        %v4578 = vrot.slane %v3332, %v4577
        %v4579 = vlaneseq
        %v4580 = vshrl.u32 %v4579, 7
        %v4581 = vsub.s32 %v3702, %v4580
        %v4582 = vrot.slane %v3335, %v4581
        %v4583 = vlaneseq
        %v4584 = vshrl.u32 %v4583, 7
        %v4585 = vsub.s32 %v3702, %v4584
        %v4586 = vrot.slane %v3338, %v4585
        %v4587 = vlaneseq
        %v4588 = vshrl.u32 %v4587, 7
        %v4589 = vsub.s32 %v3702, %v4588
        %v4590 = vrot.slane %v3341, %v4589
        %v4591 = vlaneseq
        %v4592 = vshrl.u32 %v4591, 7
        %v4593 = vsub.s32 %v3702, %v4592
        %v4594 = vrot.slane %v3344, %v4593
        %v4595 = vlaneseq
        %v4596 = vshrl.u32 %v4595, 7
        %v4597 = vsub.s32 %v3702, %v4596
        %v4598 = vrot.slane %v3347, %v4597
        %v4599 = vlaneseq
        %v4600 = vshrl.u32 %v4599, 7
        %v4601 = vsub.s32 %v3702, %v4600
        %v4602 = vrot.slane %v3350, %v4601
        %v4603 = vlaneseq
        %v4604 = vshrl.u32 %v4603, 7
        %v4605 = vsub.s32 %v3702, %v4604
        %v4606 = vrot.slane %v3353, %v4605
        %v4607 = vlaneseq
        %v4608 = vshrl.u32 %v4607, 7
        %v4609 = vsub.s32 %v3702, %v4608
        %v4610 = vrot.slane %v3356, %v4609
        %v4611 = vlaneseq
        %v4612 = vshrl.u32 %v4611, 7
        %v4613 = vsub.s32 %v3702, %v4612
        %v4614 = vrot.slane %v3359, %v4613
        %v4615 = vlaneseq
        %v4616 = vshrl.u32 %v4615, 7
        %v4617 = vsub.s32 %v3702, %v4616
        %v4618 = vrot.slane %v3362, %v4617
        %v4619 = vlaneseq
        %v4620 = vshrl.u32 %v4619, 7
        %v4621 = vsub.s32 %v3702, %v4620
        %v4622 = vrot.slane %v3365, %v4621
        %v4623 = vlaneseq
        %v4624 = vshrl.u32 %v4623, 7
        %v4625 = vsub.s32 %v3702, %v4624
        %v4626 = vrot.slane %v3368, %v4625
        %v4627 = vlaneseq
        %v4628 = vshrl.u32 %v4627, 7
        %v4629 = vsub.s32 %v3702, %v4628
        %v4630 = vrot.slane %v3371, %v4629
        %v4631 = vlaneseq
        %v4632 = vshrl.u32 %v4631, 7
        %v4633 = vsub.s32 %v3702, %v4632
        %v4634 = vrot.slane %v3374, %v4633
        %v4635 = vlaneseq
        %v4636 = vshrl.u32 %v4635, 7
        %v4637 = vsub.s32 %v3702, %v4636
        %v4638 = vrot.slane %v3377, %v4637
        %v4639 = vlaneseq
        %v4640 = vshrl.u32 %v4639, 7
        %v4641 = vsub.s32 %v3702, %v4640
        %v4642 = vrot.slane %v3380, %v4641
        %v4643 = vlaneseq
        %v4644 = vshrl.u32 %v4643, 7
        %v4645 = vsub.s32 %v3702, %v4644
        %v4646 = vrot.slane %v3383, %v4645
        %v4647 = vlaneseq
        %v4648 = vshrl.u32 %v4647, 7
        %v4649 = vsub.s32 %v3702, %v4648
        %v4650 = vrot.slane %v3386, %v4649
        %v4651 = vlaneseq
        %v4652 = vshrl.u32 %v4651, 7
        %v4653 = vsub.s32 %v3702, %v4652
        %v4654 = vrot.slane %v3389, %v4653
        %v4655 = vlaneseq
        %v4656 = vshrl.u32 %v4655, 7
        %v4657 = vsub.s32 %v3702, %v4656
        %v4658 = vrot.slane %v3392, %v4657
        %v4659 = vlaneseq
        %v4660 = vshrl.u32 %v4659, 7
        %v4661 = vsub.s32 %v3702, %v4660
        %v4662 = vrot.slane %v3395, %v4661
        %v4663 = vlaneseq
        %v4664 = vshrl.u32 %v4663, 7
        %v4665 = vsub.s32 %v3702, %v4664
        %v4666 = vrot.slane %v3398, %v4665
        %v4667 = vlaneseq
        %v4668 = vshrl.u32 %v4667, 7
        %v4669 = vsub.s32 %v3702, %v4668
        %v4670 = vrot.slane %v3401, %v4669
        %v4671 = vlaneseq
        %v4672 = vshrl.u32 %v4671, 7
        %v4673 = vsub.s32 %v3702, %v4672
        %v4674 = vrot.slane %v3404, %v4673
        %v4675 = vlaneseq
        %v4676 = vshrl.u32 %v4675, 7
        %v4677 = vsub.s32 %v3702, %v4676
        %v4678 = vrot.slane %v3407, %v4677
        %v4679 = vlaneseq
        %v4680 = vshrl.u32 %v4679, 7
        %v4681 = vsub.s32 %v3702, %v4680
        %v4682 = vrot.slane %v3410, %v4681
        %v4683 = vlaneseq
        %v4684 = vshrl.u32 %v4683, 7
        %v4685 = vsub.s32 %v3702, %v4684
        %v4686 = vrot.slane %v3413, %v4685
        %v4687 = vlaneseq
        %v4688 = vshrl.u32 %v4687, 7
        %v4689 = vsub.s32 %v3702, %v4688
        %v4690 = vrot.slane %v3416, %v4689
        %v4691 = vlaneseq
        %v4692 = vshrl.u32 %v4691, 7
        %v4693 = vsub.s32 %v3702, %v4692
        %v4694 = vrot.slane %v3419, %v4693
        %v4695 = vlaneseq
        %v4696 = vshrl.u32 %v4695, 7
        %v4697 = vsub.s32 %v3702, %v4696
        %v4698 = vrot.slane %v3422, %v4697
        %v4699 = vlaneseq
        %v4700 = vshrl.u32 %v4699, 7
        %v4701 = vsub.s32 %v3702, %v4700
        %v4702 = vrot.slane %v3425, %v4701
        %v4703 = vlaneseq
        %v4704 = vshrl.u32 %v4703, 7
        %v4705 = vsub.s32 %v3702, %v4704
        %v4706 = vrot.slane %v3428, %v4705
        %v4707 = vlaneseq
        %v4708 = vshrl.u32 %v4707, 7
        %v4709 = vsub.s32 %v3702, %v4708
        %v4710 = vrot.slane %v3431, %v4709
        %v4711 = vlaneseq
        %v4712 = vshrl.u32 %v4711, 7
        %v4713 = vsub.s32 %v3702, %v4712
        %v4714 = vrot.slane %v3434, %v4713
        %v4715 = vlaneseq
        %v4716 = vshrl.u32 %v4715, 7
        %v4717 = vsub.s32 %v3702, %v4716
        %v4718 = vrot.slane %v3437, %v4717
        %v4719 = vlaneseq
        %v4720 = vshrl.u32 %v4719, 7
        %v4721 = vsub.s32 %v3702, %v4720
        %v4722 = vrot.slane %v3440, %v4721
        %v4723 = vlaneseq
        %v4724 = vshrl.u32 %v4723, 7
        %v4725 = vsub.s32 %v3702, %v4724
        %v4726 = vrot.slane %v3443, %v4725
        %vm4727 = vcmask 1041409
        %v4728 = vsel %vm4727, %v3710, %v3706
        %vm4729 = vcmask 1042434
        %v4730 = vsel %vm4729, %v3714, %v4728
        %vm4731 = vcmask 1043459
        %v4732 = vsel %vm4731, %v3718, %v4730
        %vm4733 = vcmask 1044484
        %v4734 = vsel %vm4733, %v3722, %v4732
        %vm4735 = vcmask 1045509
        %v4736 = vsel %vm4735, %v3726, %v4734
        %vm4737 = vcmask 1046534
        %v4738 = vsel %vm4737, %v3730, %v4736
        %vm4739 = vcmask 1047559
        %v4740 = vsel %vm4739, %v3734, %v4738
        %v4741 = vsel %vm4727, %v3742, %v3738
        %v4742 = vsel %vm4729, %v3746, %v4741
        %v4743 = vsel %vm4731, %v3750, %v4742
        %v4744 = vsel %vm4733, %v3754, %v4743
        %v4745 = vsel %vm4735, %v3758, %v4744
        %v4746 = vsel %vm4737, %v3762, %v4745
        %v4747 = vsel %vm4739, %v3766, %v4746
        %v4748 = vsel %vm4727, %v3774, %v3770
        %v4749 = vsel %vm4729, %v3778, %v4748
        %v4750 = vsel %vm4731, %v3782, %v4749
        %v4751 = vsel %vm4733, %v3786, %v4750
        %v4752 = vsel %vm4735, %v3790, %v4751
        %v4753 = vsel %vm4737, %v3794, %v4752
        %v4754 = vsel %vm4739, %v3798, %v4753
        %v4755 = vsel %vm4727, %v3806, %v3802
        %v4756 = vsel %vm4729, %v3810, %v4755
        %v4757 = vsel %vm4731, %v3814, %v4756
        %v4758 = vsel %vm4733, %v3818, %v4757
        %v4759 = vsel %vm4735, %v3822, %v4758
        %v4760 = vsel %vm4737, %v3826, %v4759
        %v4761 = vsel %vm4739, %v3830, %v4760
        %v4762 = vsel %vm4727, %v3838, %v3834
        %v4763 = vsel %vm4729, %v3842, %v4762
        %v4764 = vsel %vm4731, %v3846, %v4763
        %v4765 = vsel %vm4733, %v3850, %v4764
        %v4766 = vsel %vm4735, %v3854, %v4765
        %v4767 = vsel %vm4737, %v3858, %v4766
        %v4768 = vsel %vm4739, %v3862, %v4767
        %v4769 = vsel %vm4727, %v3870, %v3866
        %v4770 = vsel %vm4729, %v3874, %v4769
        %v4771 = vsel %vm4731, %v3878, %v4770
        %v4772 = vsel %vm4733, %v3882, %v4771
        %v4773 = vsel %vm4735, %v3886, %v4772
        %v4774 = vsel %vm4737, %v3890, %v4773
        %v4775 = vsel %vm4739, %v3894, %v4774
        %v4776 = vsel %vm4727, %v3902, %v3898
        %v4777 = vsel %vm4729, %v3906, %v4776
        %v4778 = vsel %vm4731, %v3910, %v4777
        %v4779 = vsel %vm4733, %v3914, %v4778
        %v4780 = vsel %vm4735, %v3918, %v4779
        %v4781 = vsel %vm4737, %v3922, %v4780
        %v4782 = vsel %vm4739, %v3926, %v4781
        %v4783 = vsel %vm4727, %v3934, %v3930
        %v4784 = vsel %vm4729, %v3938, %v4783
        %v4785 = vsel %vm4731, %v3942, %v4784
        %v4786 = vsel %vm4733, %v3946, %v4785
        %v4787 = vsel %vm4735, %v3950, %v4786
        %v4788 = vsel %vm4737, %v3954, %v4787
        %v4789 = vsel %vm4739, %v3958, %v4788
        %v4790 = vsel %vm4727, %v3966, %v3962
        %v4791 = vsel %vm4729, %v3970, %v4790
        %v4792 = vsel %vm4731, %v3974, %v4791
        %v4793 = vsel %vm4733, %v3978, %v4792
        %v4794 = vsel %vm4735, %v3982, %v4793
        %v4795 = vsel %vm4737, %v3986, %v4794
        %v4796 = vsel %vm4739, %v3990, %v4795
        %v4797 = vsel %vm4727, %v3998, %v3994
        %v4798 = vsel %vm4729, %v4002, %v4797
        %v4799 = vsel %vm4731, %v4006, %v4798
        %v4800 = vsel %vm4733, %v4010, %v4799
        %v4801 = vsel %vm4735, %v4014, %v4800
        %v4802 = vsel %vm4737, %v4018, %v4801
        %v4803 = vsel %vm4739, %v4022, %v4802
        %v4804 = vsel %vm4727, %v4030, %v4026
        %v4805 = vsel %vm4729, %v4034, %v4804
        %v4806 = vsel %vm4731, %v4038, %v4805
        %v4807 = vsel %vm4733, %v4042, %v4806
        %v4808 = vsel %vm4735, %v4046, %v4807
        %v4809 = vsel %vm4737, %v4050, %v4808
        %v4810 = vsel %vm4739, %v4054, %v4809
        %v4811 = vsel %vm4727, %v4062, %v4058
        %v4812 = vsel %vm4729, %v4066, %v4811
        %v4813 = vsel %vm4731, %v4070, %v4812
        %v4814 = vsel %vm4733, %v4074, %v4813
        %v4815 = vsel %vm4735, %v4078, %v4814
        %v4816 = vsel %vm4737, %v4082, %v4815
        %v4817 = vsel %vm4739, %v4086, %v4816
        %v4818 = vsel %vm4727, %v4094, %v4090
        %v4819 = vsel %vm4729, %v4098, %v4818
        %v4820 = vsel %vm4731, %v4102, %v4819
        %v4821 = vsel %vm4733, %v4106, %v4820
        %v4822 = vsel %vm4735, %v4110, %v4821
        %v4823 = vsel %vm4737, %v4114, %v4822
        %v4824 = vsel %vm4739, %v4118, %v4823
        %v4825 = vsel %vm4727, %v4126, %v4122
        %v4826 = vsel %vm4729, %v4130, %v4825
        %v4827 = vsel %vm4731, %v4134, %v4826
        %v4828 = vsel %vm4733, %v4138, %v4827
        %v4829 = vsel %vm4735, %v4142, %v4828
        %v4830 = vsel %vm4737, %v4146, %v4829
        %v4831 = vsel %vm4739, %v4150, %v4830
        %v4832 = vsel %vm4727, %v4158, %v4154
        %v4833 = vsel %vm4729, %v4162, %v4832
        %v4834 = vsel %vm4731, %v4166, %v4833
        %v4835 = vsel %vm4733, %v4170, %v4834
        %v4836 = vsel %vm4735, %v4174, %v4835
        %v4837 = vsel %vm4737, %v4178, %v4836
        %v4838 = vsel %vm4739, %v4182, %v4837
        %v4839 = vsel %vm4727, %v4190, %v4186
        %v4840 = vsel %vm4729, %v4194, %v4839
        %v4841 = vsel %vm4731, %v4198, %v4840
        %v4842 = vsel %vm4733, %v4202, %v4841
        %v4843 = vsel %vm4735, %v4206, %v4842
        %v4844 = vsel %vm4737, %v4210, %v4843
        %v4845 = vsel %vm4739, %v4214, %v4844
        %v4846 = vsel %vm4727, %v4222, %v4218
        %v4847 = vsel %vm4729, %v4226, %v4846
        %v4848 = vsel %vm4731, %v4230, %v4847
        %v4849 = vsel %vm4733, %v4234, %v4848
        %v4850 = vsel %vm4735, %v4238, %v4849
        %v4851 = vsel %vm4737, %v4242, %v4850
        %v4852 = vsel %vm4739, %v4246, %v4851
        %v4853 = vsel %vm4727, %v4254, %v4250
        %v4854 = vsel %vm4729, %v4258, %v4853
        %v4855 = vsel %vm4731, %v4262, %v4854
        %v4856 = vsel %vm4733, %v4266, %v4855
        %v4857 = vsel %vm4735, %v4270, %v4856
        %v4858 = vsel %vm4737, %v4274, %v4857
        %v4859 = vsel %vm4739, %v4278, %v4858
        %v4860 = vsel %vm4727, %v4286, %v4282
        %v4861 = vsel %vm4729, %v4290, %v4860
        %v4862 = vsel %vm4731, %v4294, %v4861
        %v4863 = vsel %vm4733, %v4298, %v4862
        %v4864 = vsel %vm4735, %v4302, %v4863
        %v4865 = vsel %vm4737, %v4306, %v4864
        %v4866 = vsel %vm4739, %v4310, %v4865
        %v4867 = vsel %vm4727, %v4318, %v4314
        %v4868 = vsel %vm4729, %v4322, %v4867
        %v4869 = vsel %vm4731, %v4326, %v4868
        %v4870 = vsel %vm4733, %v4330, %v4869
        %v4871 = vsel %vm4735, %v4334, %v4870
        %v4872 = vsel %vm4737, %v4338, %v4871
        %v4873 = vsel %vm4739, %v4342, %v4872
        %v4874 = vsel %vm4727, %v4350, %v4346
        %v4875 = vsel %vm4729, %v4354, %v4874
        %v4876 = vsel %vm4731, %v4358, %v4875
        %v4877 = vsel %vm4733, %v4362, %v4876
        %v4878 = vsel %vm4735, %v4366, %v4877
        %v4879 = vsel %vm4737, %v4370, %v4878
        %v4880 = vsel %vm4739, %v4374, %v4879
        %v4881 = vsel %vm4727, %v4382, %v4378
        %v4882 = vsel %vm4729, %v4386, %v4881
        %v4883 = vsel %vm4731, %v4390, %v4882
        %v4884 = vsel %vm4733, %v4394, %v4883
        %v4885 = vsel %vm4735, %v4398, %v4884
        %v4886 = vsel %vm4737, %v4402, %v4885
        %v4887 = vsel %vm4739, %v4406, %v4886
        %v4888 = vsel %vm4727, %v4414, %v4410
        %v4889 = vsel %vm4729, %v4418, %v4888
        %v4890 = vsel %vm4731, %v4422, %v4889
        %v4891 = vsel %vm4733, %v4426, %v4890
        %v4892 = vsel %vm4735, %v4430, %v4891
        %v4893 = vsel %vm4737, %v4434, %v4892
        %v4894 = vsel %vm4739, %v4438, %v4893
        %v4895 = vsel %vm4727, %v4446, %v4442
        %v4896 = vsel %vm4729, %v4450, %v4895
        %v4897 = vsel %vm4731, %v4454, %v4896
        %v4898 = vsel %vm4733, %v4458, %v4897
        %v4899 = vsel %vm4735, %v4462, %v4898
        %v4900 = vsel %vm4737, %v4466, %v4899
        %v4901 = vsel %vm4739, %v4470, %v4900
        %v4902 = vsel %vm4727, %v4478, %v4474
        %v4903 = vsel %vm4729, %v4482, %v4902
        %v4904 = vsel %vm4731, %v4486, %v4903
        %v4905 = vsel %vm4733, %v4490, %v4904
        %v4906 = vsel %vm4735, %v4494, %v4905
        %v4907 = vsel %vm4737, %v4498, %v4906
        %v4908 = vsel %vm4739, %v4502, %v4907
        %v4909 = vsel %vm4727, %v4510, %v4506
        %v4910 = vsel %vm4729, %v4514, %v4909
        %v4911 = vsel %vm4731, %v4518, %v4910
        %v4912 = vsel %vm4733, %v4522, %v4911
        %v4913 = vsel %vm4735, %v4526, %v4912
        %v4914 = vsel %vm4737, %v4530, %v4913
        %v4915 = vsel %vm4739, %v4534, %v4914
        %v4916 = vsel %vm4727, %v4542, %v4538
        %v4917 = vsel %vm4729, %v4546, %v4916
        %v4918 = vsel %vm4731, %v4550, %v4917
        %v4919 = vsel %vm4733, %v4554, %v4918
        %v4920 = vsel %vm4735, %v4558, %v4919
        %v4921 = vsel %vm4737, %v4562, %v4920
        %v4922 = vsel %vm4739, %v4566, %v4921
        %v4923 = vsel %vm4727, %v4574, %v4570
        %v4924 = vsel %vm4729, %v4578, %v4923
        %v4925 = vsel %vm4731, %v4582, %v4924
        %v4926 = vsel %vm4733, %v4586, %v4925
        %v4927 = vsel %vm4735, %v4590, %v4926
        %v4928 = vsel %vm4737, %v4594, %v4927
        %v4929 = vsel %vm4739, %v4598, %v4928
        %v4930 = vsel %vm4727, %v4606, %v4602
        %v4931 = vsel %vm4729, %v4610, %v4930
        %v4932 = vsel %vm4731, %v4614, %v4931
        %v4933 = vsel %vm4733, %v4618, %v4932
        %v4934 = vsel %vm4735, %v4622, %v4933
        %v4935 = vsel %vm4737, %v4626, %v4934
        %v4936 = vsel %vm4739, %v4630, %v4935
        %v4937 = vsel %vm4727, %v4638, %v4634
        %v4938 = vsel %vm4729, %v4642, %v4937
        %v4939 = vsel %vm4731, %v4646, %v4938
        %v4940 = vsel %vm4733, %v4650, %v4939
        %v4941 = vsel %vm4735, %v4654, %v4940
        %v4942 = vsel %vm4737, %v4658, %v4941
        %v4943 = vsel %vm4739, %v4662, %v4942
        %v4944 = vsel %vm4727, %v4670, %v4666
        %v4945 = vsel %vm4729, %v4674, %v4944
        %v4946 = vsel %vm4731, %v4678, %v4945
        %v4947 = vsel %vm4733, %v4682, %v4946
        %v4948 = vsel %vm4735, %v4686, %v4947
        %v4949 = vsel %vm4737, %v4690, %v4948
        %v4950 = vsel %vm4739, %v4694, %v4949
        %v4951 = vsel %vm4727, %v4702, %v4698
        %v4952 = vsel %vm4729, %v4706, %v4951
        %v4953 = vsel %vm4731, %v4710, %v4952
        %v4954 = vsel %vm4733, %v4714, %v4953
        %v4955 = vsel %vm4735, %v4718, %v4954
        %v4956 = vsel %vm4737, %v4722, %v4955
        %v4957 = vsel %vm4739, %v4726, %v4956
        %4990 = vxpose.xlu0.b32.start [1/16] %v4740, 128
        %4991 = vxpose.xlu0.b32.cont [2/16] %v4747, 128
        %4992 = vxpose.xlu0.b32.cont [3/16] %v4754, 128
        %4993 = vxpose.xlu0.b32.cont [4/16] %v4761, 128
        %4994 = vxpose.xlu0.b32.cont [5/16] %v4768, 128
        %4995 = vxpose.xlu0.b32.cont [6/16] %v4775, 128
        %4996 = vxpose.xlu0.b32.cont [7/16] %v4782, 128
        %4997 = vxpose.xlu0.b32.cont [8/16] %v4789, 128
        %4998 = vxpose.xlu0.b32.cont [9/16] %v4796, 128
        %4999 = vxpose.xlu0.b32.cont [10/16] %v4803, 128
        %5000 = vxpose.xlu0.b32.cont [11/16] %v4810, 128
        %5001 = vxpose.xlu0.b32.cont [12/16] %v4817, 128
        %5002 = vxpose.xlu0.b32.cont [13/16] %v4824, 128
        %5003 = vxpose.xlu0.b32.cont [14/16] %v4831, 128
        %5004 = vxpose.xlu0.b32.cont [15/16] %v4838, 128
        %5005 = vxpose.xlu0.b32.end [16/16] %v4845, 128
        %v5006 = vpop.trf.xlu0
        %v5007 = vpop.trf.xlu0
        %v5008 = vpop.trf.xlu0
        %v5009 = vpop.trf.xlu0
        %v5010 = vpop.trf.xlu0
        %v5011 = vpop.trf.xlu0
        %v5012 = vpop.trf.xlu0
        %v5013 = vpop.trf.xlu0
        %v5014 = vpop.trf.xlu0
        %v5015 = vpop.trf.xlu0
        %v5016 = vpop.trf.xlu0
        %v5017 = vpop.trf.xlu0
        %v5018 = vpop.trf.xlu0
        %v5019 = vpop.trf.xlu0
        %v5020 = vpop.trf.xlu0
        %v5021 = vpop.trf.xlu0
        %5022 = vxpose.xlu0.b32.start [1/16] %v4852, 128
        %5023 = vxpose.xlu0.b32.cont [2/16] %v4859, 128
        %5024 = vxpose.xlu0.b32.cont [3/16] %v4866, 128
        %5025 = vxpose.xlu0.b32.cont [4/16] %v4873, 128
        %5026 = vxpose.xlu0.b32.cont [5/16] %v4880, 128
        %5027 = vxpose.xlu0.b32.cont [6/16] %v4887, 128
        %5028 = vxpose.xlu0.b32.cont [7/16] %v4894, 128
        %5029 = vxpose.xlu0.b32.cont [8/16] %v4901, 128
        %5030 = vxpose.xlu0.b32.cont [9/16] %v4908, 128
        %5031 = vxpose.xlu0.b32.cont [10/16] %v4915, 128
        %5032 = vxpose.xlu0.b32.cont [11/16] %v4922, 128
        %5033 = vxpose.xlu0.b32.cont [12/16] %v4929, 128
        %5034 = vxpose.xlu0.b32.cont [13/16] %v4936, 128
        %5035 = vxpose.xlu0.b32.cont [14/16] %v4943, 128
        %5036 = vxpose.xlu0.b32.cont [15/16] %v4950, 128
        %5037 = vxpose.xlu0.b32.end [16/16] %v4957, 128
        %v5038 = vpop.trf.xlu0
        %v5039 = vpop.trf.xlu0
        %v5040 = vpop.trf.xlu0
        %v5041 = vpop.trf.xlu0
        %v5042 = vpop.trf.xlu0
        %v5043 = vpop.trf.xlu0
        %v5044 = vpop.trf.xlu0
        %v5045 = vpop.trf.xlu0
        %v5046 = vpop.trf.xlu0
        %v5047 = vpop.trf.xlu0
        %v5048 = vpop.trf.xlu0
        %v5049 = vpop.trf.xlu0
        %v5050 = vpop.trf.xlu0
        %v5051 = vpop.trf.xlu0
        %v5052 = vpop.trf.xlu0
        %v5053 = vpop.trf.xlu0
        %s5054 = sshra.s32 %s3444, 7
        %s5055 = sand.u32 %s3444, 127
        %s5056 = smul.addr %s5054, 8
        %s5057 = scalar_lea.vmem %s280, %s5056 [#allocation8]
        %5058 = vst [vmem:[%s5057] sm:$0xff] %v5006
        %5059 = vst [vmem:[%s5057 + $0x8] sm:$0xff] %v5038
        %p5060 = scmp.eq.s32.totalorder %s29, 0
        // Predicated region
        $region49: #{tpu_custom_call.1} parent=35 // pred_check
          %p5061 = pneg %p5060
        $region50: #{tpu_custom_call.1} parent=35 // pred_check_branch
          %5063 = sbr.rel (%p5061) target = $region52
        $region51: #{tpu_custom_call.1} parent=35 // pred_region
          %v5064 = vld [vmem:[%s280] sm:$0xff]
          %v5065 = vld [vmem:[%s280 + $0x8] sm:$0xff]
          %v5066 = vmax.f32 %v5064, %v5065
          %5067 = vmax.xlane.f32.xlu0 %v5066
          %v5068 = vpop.xlane.xlu0 %5067
          %v5069 = vsub.f32 %v5064, %v5068
          %v5070 = vsub.f32 %v5065, %v5068
          %v5071 = vmul.f32 %v5069, 1.442695
          %v5072 = vpow.pop %v5071
          %v5073 = vmul.f32 %v5070, 1.442695
          %v5074 = vpow.pop %v5073
          %v5075 = vadd.f32 %v5072, %v5074
          %5076 = vadd.xlane.f32.xlu0 %v5075
          %v5077 = vpop.xlane.xlu0 %5076
          %v5078 = vrcp.pop %v5077
          %v5079 = vmul.f32 %v5072, %v5078
          %v5080 = vmul.f32 %v5074, %v5078
          %5081 = vst [vmem:[%s280] sm:$0xff] %v5079
          %5082 = vst [vmem:[%s280 + $0x8] sm:$0xff] %v5080
        $region52: #{tpu_custom_call.1} parent=35 // pred_fallthru
          _
        %s5083 = sand.u32 %s140, 1
        %s5084 = scalar_lea.sflag [#allocation4], %s5083
        %s5085 = sand.u32 %s140, 1
        %s5086 = smul.addr %s5085, 16
        %s5087 = scalar_lea.vmem [#allocation8], %s5086
        // Predicated region
        $region53: #{tpu_custom_call.1} parent=35 // pred_check
          %p5088 = pneg %p150
        $region54: #{tpu_custom_call.1} parent=35 // pred_check_branch
          %5090 = sbr.rel (%p5088) target = $region56
        $region55: #{tpu_custom_call.1} parent=35 // pred_region
          %s5092 = ssub.s32 256, 256
          %5093 = vsyncadd %s5084, %s5092
          %s5094 = smul.addr %s28, 2
          %s5095 = smul.addr %s5094, 128
          %s5096 = scalar_lea.hbm %s4, %s5095
          %s5098 = sshll.u32 %s5087, 4
          %s5099 = int_to_ptr.vmem [resolvable:$true] %s5098
          %5101 = dma.vmem_to_hbm [thread:$0]  %s5099, 256, %s5096, %s5084
        $region56: #{tpu_custom_call.1} parent=35 // pred_fallthru
          _
      $region36: #{tpu_custom_call.1} parent=5 // pred_fallthru
        _
      %p5102 = scmp.le.s32.totalorder 2, %s19
      // Predicated region
      $region57: #{tpu_custom_call.1} parent=5 // pred_check
        %p5103 = pneg %p5102
      $region58: #{tpu_custom_call.1} parent=5 // pred_check_branch
        %5105 = sbr.rel (%p5103) target = $region60
      $region59: #{tpu_custom_call.1} parent=5 // pred_region
        %s5106 = ssub.s32 %s19, 2
        // Predicated region
        $region61: #{tpu_custom_call.1} parent=59 // pred_check
          %p5107 = pneg %p156
        $region62: #{tpu_custom_call.1} parent=59 // pred_check_branch
          %5109 = sbr.rel (%p5107) target = $region64
        $region63: #{tpu_custom_call.1} parent=59 // pred_region
          %s5110 = sand.u32 %s141, 1
          %s5111 = scalar_lea.sflag [#allocation4], %s5110
          %s5112 = sand.u32 %s141, 1
          %s5113 = smul.addr %s5112, 16
          %s5114 = scalar_lea.vmem [#allocation8], %s5113
          %5115 = dma.done %s5111, 256
        $region64: #{tpu_custom_call.1} parent=59 // pred_fallthru
          _
      $region60: #{tpu_custom_call.1} parent=5 // pred_fallthru
        _
    $region6: #{tpu_custom_call.1} parent=1 // loop_footer
      %s23 = sadd.s32 1, %s19
    $region7: #{tpu_custom_call.1} parent=1 // loop_footer_branch
      %18 = sbr.rel target = $region3
    $region8: #{tpu_custom_call.1} parent=1 // loop_exit
      _
    %5116 = vsyncpa [#allocation3], 1
    %s5117 = scalar_lea.sflag [#allocation3], 1
    %5118 = vsyncpa %s5117, 1
    %5119 = vsyncpa [#allocation6], 1
    %s5120 = scalar_lea.sflag [#allocation6], 1
    %5121 = vsyncpa %s5120, 1
    %5122 = vsyncpa [#allocation4], 1
    %s5123 = scalar_lea.sflag [#allocation4], 1
    %5124 = vsyncpa %s5123, 1

</llo_original>
